<compile_context>
chip_gen: v7x
topology: tpu7x:2x2x1
jax: 0.10.0
libtpu: 0.0.40
codegen_flags: <defaults>
</compile_context>

<pallas_src>
import math
import functools

import numpy as np
import jax
import jax.numpy as jnp
from jax import lax
from jax.experimental import pallas as pl
from jax.experimental.pallas import tpu as pltpu


# --------------------------------------------------------------------------
# Kernel: one site-tile per grid step.  KDE for all bins (bin-major on the
# matmul M axis), fused gated MLPs (bf16 MXU), softmax over reads, attention
# pooling, single lane-dense store in the final concatenated layout.
# --------------------------------------------------------------------------
def _kde_gated_attention_fused_kernel(
    x_ref,                        # (Nb*R, C)        f32
    w1_ref, b1_ref,               # fused layer 1 [v|h]: (C, 2*H0) bf16, (1, 2*H0) f32
    w2_ref, b2_ref,               # fused layer 2 blockdiag: (2*H0, 2*H1) bf16, (1, 2*H1) f32
    wa1_ref, ba1_ref,             # score MLP layer 1: (H1, Ha) bf16, (1, Ha) f32
    wa2_ref, ba2_ref,             # score MLP layer 2: (Ha, K) bf16, (1, K) f32
    o_ref,                        # (Nb, n_bins*K*H1)  lane-dense output, cat layout
    *, n_reads, var, bin_values,
):
    Mrows, C = x_ref.shape
    R = n_reads
    Nb = Mrows // R
    n_bins = len(bin_values)
    H0 = w1_ref.shape[1] // 2
    H1 = w2_ref.shape[1] // 2
    K = ba2_ref.shape[1]

    x = x_ref[...]                                           # (Nb*R, C) f32
    neg_inv_2var = -1.0 / (2.0 * var)

    # Hoist x*x once; each bin's exponent is an FMA chain:
    #   -(x-v)^2/(2var) = neg_inv_2var*x^2 + (v/var)*x - v^2/(2var)
    # Bin values are static Python floats (torch.linspace); the 1/sqrt(2*pi*var)
    # normalizer is folded into w1 by the wrapper.
    x2s = neg_inv_2var * (x * x)
    kde_blocks = []
    for v in bin_values:
        expo = x2s + (v / var) * x + (neg_inv_2var * v * v)
        kde_blocks.append(jnp.exp(expo))                     # f32 EUP exp
    kde = jnp.concatenate(kde_blocks, axis=0)                # (n_bins*Nb*R, C)

    # Fused gated layer 1: one bf16 MXU matmul for [v-branch | h-branch];
    # relu on the first H0 lanes, tanh-form sigmoid (single EUP push) on the
    # rest, split by a lane mask (no relayout).
    h1 = jnp.dot(kde.astype(jnp.bfloat16), w1_ref[...],
                 preferred_element_type=jnp.float32) + b1_ref[...]
    lane = lax.broadcasted_iota(jnp.int32, (1, 2 * H0), 1)
    sig = 0.5 * (jnp.tanh(0.5 * h1) + 1.0)
    act = jnp.where(lane < H0, jnp.maximum(h1, 0.0), sig)    # (rows, 2*H0)

    # Fused gated layer 2 (block-diagonal weights): lanes [0,H1)=a_v,
    # lanes [H1,2*H1)=a_h.  Gate them elementwise.
    g = jnp.dot(act.astype(jnp.bfloat16), w2_ref[...],
                preferred_element_type=jnp.float32) + b2_ref[...]
    z2 = g[:, :H1] * g[:, H1:]                               # (rows, H1) f32

    # Inner attention-score MLP (relu, then linear to K heads).
    ha = jnp.maximum(
        jnp.dot(z2.astype(jnp.bfloat16), wa1_ref[...],
                preferred_element_type=jnp.float32) + ba1_ref[...], 0.0)
    s2 = jnp.dot(ha.astype(jnp.bfloat16), wa2_ref[...],
                 preferred_element_type=jnp.float32) + ba2_ref[...]

    B = n_bins * Nb
    z = z2.reshape(B, R, H1)                                 # (B, R, H1)
    s = s2.reshape(B, R, K)                                  # (B, R, K)

    # Softmax over the reads axis (sublane), K stays on the lane axis: no
    # swapaxes / XLU transpose.  EUP reciprocal for the denominator.
    s = s - jnp.max(s, axis=1, keepdims=True)
    p = jnp.exp(s)
    w_att = p * pl.reciprocal(jnp.sum(p, axis=1, keepdims=True), approx=True)

    # Pooling: out[b, k*H1 + h] = sum_r W[b,r,k] * z[b,r,h].
    # Build the full K*H1-wide operands along lanes (lane broadcasts + minor
    # dim concat -> XLU), then ONE multiply and ONE sublane reduce per tile
    # instead of K broadcast/reduce pairs + K masked partial stores.
    w_wide = jnp.concatenate(
        [jnp.broadcast_to(w_att[:, :, k:k + 1], (B, R, H1)) for k in range(K)],
        axis=2)                                              # (B, R, K*H1)
    z_wide = jnp.concatenate([z] * K, axis=2)                # (B, R, K*H1)
    pooled = jnp.sum(w_wide * z_wide, axis=1)                # (B, K*H1)

    # Final torch.cat layout directly: bin bi's rows are the contiguous
    # sublane slab [bi*Nb, (bi+1)*Nb); place them at lane offset bi*K*H1 and
    # write the whole (Nb, n_bins*K*H1) block with a single lane-dense store.
    o_ref[...] = jnp.concatenate(
        [pooled[bi * Nb:(bi + 1) * Nb, :] for bi in range(n_bins)], axis=1)


# --------------------------------------------------------------------------
# Tile-size heuristic: largest site tile that divides n_sites, keeps the
# bin-stacked row count under budget (sized so ~8 live 128-lane-padded f32
# intermediates stay well inside v7x's 64 MiB VMEM), and stays sublane-aligned.
# --------------------------------------------------------------------------
def _choose_block_sites(n_sites, n_reads, n_bins, max_stacked_rows=4096):
    if n_bins * n_sites * n_reads <= max_stacked_rows:
        return n_sites                       # whole problem fits one tile
    start = n_sites - (n_sites % 8)
    for d in range(start, 0, -8):
        if n_sites % d == 0 and n_bins * d * n_reads <= max_stacked_rows:
            return d
    return n_sites                           # fall back to single-shot


# --------------------------------------------------------------------------
# Wrapper: weight fusion (+bf16 cast), gridded/pipelined pallas_call writing
# the final concatenated layout directly (no post-transpose).
# --------------------------------------------------------------------------
def probability_attention_forward(x, params, *, n_reads, n_bins, sigma,
                                  block_sites=None,
                                  vmem_limit_bytes=48 * 1024 * 1024):
    """x: (batch*reads, channels) float32 -> (batch, n_bins*K*H1) float32."""
    C = x.shape[-1]
    var = float(sigma) ** 2
    coef = 1.0 / math.sqrt(2.0 * math.pi * var)

    x2d = x.reshape(-1, C).astype(jnp.float32)               # (N*R, C)
    M = x2d.shape[0]
    assert M % n_reads == 0
    N = M // n_reads

    H0 = params['wv1'].shape[1]
    H1 = params['wv2'].shape[1]
    Ha = params['wa1'].shape[1]
    K = params['wa2'].shape[1]
    out_cols = n_bins * K * H1

    # Fuse the v/h branches, fold the KDE normalizer into layer 1, and cast
    # the MXU operands to bf16 (biases stay f32).
    w1 = (jnp.concatenate([params['wv1'], params['wh1']], axis=1) * coef
          ).astype(jnp.bfloat16)                              # (C, 2*H0)
    b1 = jnp.concatenate([params['bv1'], params['bh1']], axis=1)
    w2 = jnp.zeros((2 * H0, 2 * H1), jnp.float32)
    w2 = w2.at[:H0, :H1].set(params['wv2']).at[H0:, H1:].set(params['wh2'])
    w2 = w2.astype(jnp.bfloat16)
    b2 = jnp.concatenate([params['bv2'], params['bh2']], axis=1)
    wa1 = params['wa1'].astype(jnp.bfloat16)
    wa2 = params['wa2'].astype(jnp.bfloat16)
    ba1 = params['ba1']
    ba2 = params['ba2']

    # torch.linspace(0, 1, n_bins) as static Python floats.
    bin_values = tuple(float(v) for v in np.linspace(0.0, 1.0, n_bins))

    if block_sites is None:
        block_sites = _choose_block_sites(N, n_reads, n_bins)
    if N % block_sites != 0:
        # TODO(synk): pad ragged site batches instead of falling back single-shot.
        block_sites = N
    Nb = block_sites
    grid = (N // Nb,)

    def const_spec(a):
        return pl.BlockSpec(a.shape, lambda i: (0,) * a.ndim)

    kernel = functools.partial(
        _kde_gated_attention_fused_kernel,
        n_reads=n_reads, var=var, bin_values=bin_values)

    # Advisory cost hint for XLA's scheduler around the custom call.
    rows = n_bins * M
    cost = pl.CostEstimate(
        flops=2 * rows * (C * 2 * H0 + 2 * H0 * 2 * H1 + H1 * Ha + Ha * K)
              + 2 * rows * K * H1,
        transcendentals=rows * (C + 2 * H0 + K),
        bytes_accessed=x2d.size * 4 + N * out_cols * 4
                       + (w1.size + w2.size + wa1.size + wa2.size) * 2
                       + (b1.size + b2.size + ba1.size + ba2.size) * 4)

    out = pl.pallas_call(
        kernel,
        out_shape=jax.ShapeDtypeStruct((N, out_cols), jnp.float32),
        grid=grid,
        in_specs=[
            pl.BlockSpec((Nb * n_reads, C), lambda i: (i, 0)),   # x: pipelined
            const_spec(w1), const_spec(b1),                      # weights: DMA'd
            const_spec(w2), const_spec(b2),                      # once, resident
            const_spec(wa1), const_spec(ba1),
            const_spec(wa2), const_spec(ba2),
        ],
        out_specs=pl.BlockSpec((Nb, out_cols), lambda i: (i, 0)),
        compiler_params=pltpu.CompilerParams(
            dimension_semantics=("parallel",),      # megacore split on v7x
            vmem_limit_bytes=vmem_limit_bytes),     # >16MiB v5e default, <64MiB v7x physical
        cost_estimate=cost,
    )(x2d, w1, b1, w2, b2, wa1, ba1, wa2, ba2)

    return out    # already in torch.cat(kde_vectors, axis=1) layout


# --------------------------------------------------------------------------
# Pure-JAX reference (mirrors the PyTorch forward) for a correctness check.
# --------------------------------------------------------------------------
def reference_forward(x, params, *, n_reads, n_bins, sigma):
    C = x.shape[-1]
    var = float(sigma) ** 2
    xr = x.reshape(-1, n_reads, C).astype(jnp.float32)
    coef = 1.0 / math.sqrt(2.0 * math.pi * var)
    outs = []
    for v in np.linspace(0.0, 1.0, n_bins):
        kde = coef * jnp.exp(-(xr - v) ** 2 / (2.0 * var))
        hv = jax.nn.relu(kde @ params['wv1'] + params['bv1'])
        a_v = hv @ params['wv2'] + params['bv2']
        hh = jax.nn.sigmoid(kde @ params['wh1'] + params['bh1'])
        a_h = hh @ params['wh2'] + params['bh2']
        z = a_v * a_h
        ha = jax.nn.relu(z @ params['wa1'] + params['ba1'])
        s = ha @ params['wa2'] + params['ba2']          # (N, R, K)
        w = jax.nn.softmax(jnp.swapaxes(s, 1, 2), axis=2)
        m = jnp.einsum('nkr,nrh->nkh', w, z)
        outs.append(m.reshape(m.shape[0], -1))
    return jnp.concatenate(outs, axis=1)


# --------------------------------------------------------------------------
# Deterministic parameter init (PyTorch-Linear-style uniform bounds),
# stored as (in, out) weights and (1, out) biases.
# --------------------------------------------------------------------------
def init_params(key, input_channel, hidden_layers_1, hidden_layers_2):
    dims_v = [input_channel] + list(hidden_layers_1)          # relu MLP
    dims_h = [input_channel] + list(hidden_layers_1)          # sigmoid MLP
    dims_a = [hidden_layers_1[-1]] + list(hidden_layers_2)    # score MLP

    def linear(k, fan_in, fan_out):
        kw, kb = jax.random.split(k)
        bound = 1.0 / math.sqrt(fan_in)
        w = jax.random.uniform(kw, (fan_in, fan_out), jnp.float32, -bound, bound)
        b = jax.random.uniform(kb, (1, fan_out), jnp.float32, -bound, bound)
        return w, b

    keys = jax.random.split(key, 6)
    p = {}
    p['wv1'], p['bv1'] = linear(keys[0], dims_v[0], dims_v[1])
    p['wv2'], p['bv2'] = linear(keys[1], dims_v[1], dims_v[2])
    p['wh1'], p['bh1'] = linear(keys[2], dims_h[0], dims_h[1])
    p['wh2'], p['bh2'] = linear(keys[3], dims_h[1], dims_h[2])
    p['wa1'], p['ba1'] = linear(keys[4], dims_a[0], dims_a[1])
    p['wa2'], p['ba2'] = linear(keys[5], dims_a[1], dims_a[2])
    return p


if __name__ == "__main__":
    # Module config (small, consistent with the PyTorch constructor):
    input_channel = 16
    hidden_layers_1 = [32, 16]      # gated branches -> H0 = 32, H1 = 16
    hidden_layers_2 = [32, 8]       # attention heads -> Ha = 32, K = 8  (K*H1 = 128)
    n_bins = 3
    sigma = 0.1
    n_reads_per_site = 8
    n_sites = 16                    # with block_sites=8 -> 2 pipelined grid steps

    key = jax.random.PRNGKey(0)
    k_param, k_x = jax.random.split(key)
    params = init_params(k_param, input_channel, hidden_layers_1, hidden_layers_2)

    # Input like the PyTorch module receives: (n_sites * n_reads, input_channel)
    x = jax.random.uniform(k_x, (n_sites * n_reads_per_site, input_channel),
                           jnp.float32)

    out = probability_attention_forward(
        x, params, n_reads=n_reads_per_site, n_bins=n_bins, sigma=sigma,
        block_sites=8)
    out = jax.block_until_ready(out)

    ref = reference_forward(
        x, params, n_reads=n_reads_per_site, n_bins=n_bins, sigma=sigma)
    # Tolerance accounts for bf16 MXU operands + one approx EUP reciprocal.
    np.testing.assert_allclose(np.asarray(out), np.asarray(ref),
                               rtol=2e-2, atol=3e-2)

    # Expected shape: (n_sites, n_bins * K * H1)
    assert out.shape == (n_sites, n_bins * hidden_layers_2[-1] * hidden_layers_1[-1])

    print("KERNEL_OK")
</pallas_src>

<mosaic_0001>
module attributes {stable_mosaic.version = 11 : i64} {
  func.func @_kde_gated_attention_fused_kernel(%arg0: i32, %arg1: memref<64x16xf32, #tpu.memory_space<vmem>>, %arg2: memref<16x64xbf16, #tpu.memory_space<vmem>>, %arg3: memref<1x64xf32, #tpu.memory_space<vmem>>, %arg4: memref<64x32xbf16, #tpu.memory_space<vmem>>, %arg5: memref<1x32xf32, #tpu.memory_space<vmem>>, %arg6: memref<16x32xbf16, #tpu.memory_space<vmem>>, %arg7: memref<1x32xf32, #tpu.memory_space<vmem>>, %arg8: memref<32x8xbf16, #tpu.memory_space<vmem>>, %arg9: memref<1x8xf32, #tpu.memory_space<vmem>>, %arg10: memref<8x384xf32, #tpu.memory_space<vmem>>) attributes {dimension_semantics = [#tpu.dimension_semantics<parallel>], iteration_bounds = array<i64: 2>, scalar_prefetch = 0 : i64, scratch_operands = 0 : i64, tpu.core_type = #tpu.core_type<tc>, window_params = [{transform_indices = @transform_0, window_bounds = array<i64: 64, 16>}, {pipeline_mode = #tpu.pipeline_mode<synchronous>, transform_indices = @transform_1, window_bounds = array<i64: 16, 64>}, {pipeline_mode = #tpu.pipeline_mode<synchronous>, transform_indices = @transform_2, window_bounds = array<i64: 1, 64>}, {pipeline_mode = #tpu.pipeline_mode<synchronous>, transform_indices = @transform_3, window_bounds = array<i64: 64, 32>}, {pipeline_mode = #tpu.pipeline_mode<synchronous>, transform_indices = @transform_4, window_bounds = array<i64: 1, 32>}, {pipeline_mode = #tpu.pipeline_mode<synchronous>, transform_indices = @transform_5, window_bounds = array<i64: 16, 32>}, {pipeline_mode = #tpu.pipeline_mode<synchronous>, transform_indices = @transform_6, window_bounds = array<i64: 1, 32>}, {pipeline_mode = #tpu.pipeline_mode<synchronous>, transform_indices = @transform_7, window_bounds = array<i64: 32, 8>}, {pipeline_mode = #tpu.pipeline_mode<synchronous>, transform_indices = @transform_8, window_bounds = array<i64: 1, 8>}, {transform_indices = @transform_9, window_bounds = array<i64: 8, 384>}]} {
    %c0 = arith.constant 0 : index
    %c0_0 = arith.constant 0 : index
    %0 = vector.load %arg1[%c0, %c0_0] : memref<64x16xf32, #tpu.memory_space<vmem>>, vector<64x16xf32>
    %1 = arith.mulf %0, %0 : vector<64x16xf32>
    %cst = arith.constant -5.000000e+01 : f32
    %2 = vector.broadcast %cst : f32 to vector<64x16xf32>
    %3 = arith.mulf %2, %1 : vector<64x16xf32>
    %cst_1 = arith.constant 0.000000e+00 : f32
    %4 = vector.broadcast %cst_1 : f32 to vector<64x16xf32>
    %5 = arith.mulf %4, %0 : vector<64x16xf32>
    %6 = arith.addf %3, %5 : vector<64x16xf32>
    %cst_2 = arith.constant -0.000000e+00 : f32
    %7 = vector.broadcast %cst_2 : f32 to vector<64x16xf32>
    %8 = arith.addf %6, %7 : vector<64x16xf32>
    %9 = math.exp %8 : vector<64x16xf32>
    %cst_3 = arith.constant 5.000000e+01 : f32
    %10 = vector.broadcast %cst_3 : f32 to vector<64x16xf32>
    %11 = arith.mulf %10, %0 : vector<64x16xf32>
    %12 = arith.addf %3, %11 : vector<64x16xf32>
    %cst_4 = arith.constant -1.250000e+01 : f32
    %13 = vector.broadcast %cst_4 : f32 to vector<64x16xf32>
    %14 = arith.addf %12, %13 : vector<64x16xf32>
    %15 = math.exp %14 : vector<64x16xf32>
    %cst_5 = arith.constant 1.000000e+02 : f32
    %16 = vector.broadcast %cst_5 : f32 to vector<64x16xf32>
    %17 = arith.mulf %16, %0 : vector<64x16xf32>
    %18 = arith.addf %3, %17 : vector<64x16xf32>
    %cst_6 = arith.constant -5.000000e+01 : f32
    %19 = vector.broadcast %cst_6 : f32 to vector<64x16xf32>
    %20 = arith.addf %18, %19 : vector<64x16xf32>
    %21 = math.exp %20 : vector<64x16xf32>
    %22 = tpu.concatenate %9, %15, %21 in 0 : vector<64x16xf32>, vector<64x16xf32>, vector<64x16xf32> -> vector<192x16xf32>
    %23 = arith.truncf %22 : vector<192x16xf32> to vector<192x16xbf16>
    %c0_7 = arith.constant 0 : index
    %c0_8 = arith.constant 0 : index
    %24 = vector.load %arg2[%c0_7, %c0_8] : memref<16x64xbf16, #tpu.memory_space<vmem>>, vector<16x64xbf16>
    %cst_9 = arith.constant dense<0.000000e+00> : vector<192x64xf32>
    %25 = tpu.matmul %23, %24, %cst_9 {dimension_numbers = #tpu.dot_dimension_numbers<[1], [0], [0], [1], [0, 0, 1, 1], [], []>} : vector<192x16xbf16>, vector<16x64xbf16>, vector<192x64xf32> -> vector<192x64xf32>
    %c0_10 = arith.constant 0 : index
    %c0_11 = arith.constant 0 : index
    %26 = vector.load %arg3[%c0_10, %c0_11] : memref<1x64xf32, #tpu.memory_space<vmem>>, vector<1x64xf32>
    %27 = vector.broadcast %26 : vector<1x64xf32> to vector<192x64xf32>
    %28 = arith.addf %25, %27 : vector<192x64xf32>
    %29 = tpu.iota {dimensions = array<i32: 1>} : vector<1x64xi32>
    %cst_12 = arith.constant 5.000000e-01 : f32
    %30 = vector.broadcast %cst_12 : f32 to vector<192x64xf32>
    %31 = arith.mulf %30, %28 : vector<192x64xf32>
    %32 = math.tanh %31 : vector<192x64xf32>
    %cst_13 = arith.constant 1.000000e+00 : f32
    %33 = vector.broadcast %cst_13 : f32 to vector<192x64xf32>
    %34 = arith.addf %32, %33 : vector<192x64xf32>
    %cst_14 = arith.constant 5.000000e-01 : f32
    %35 = vector.broadcast %cst_14 : f32 to vector<192x64xf32>
    %36 = arith.mulf %35, %34 : vector<192x64xf32>
    %c32_i32 = arith.constant 32 : i32
    %37 = vector.broadcast %c32_i32 : i32 to vector<1x64xi32>
    %38 = arith.cmpi slt, %29, %37 : vector<1x64xi32>
    %cst_15 = arith.constant 0.000000e+00 : f32
    %39 = vector.broadcast %cst_15 : f32 to vector<192x64xf32>
    %40 = arith.maximumf %28, %39 : vector<192x64xf32>
    %41 = vector.shape_cast %38 : vector<1x64xi1> to vector<1x64xi1>
    %42 = vector.broadcast %41 : vector<1x64xi1> to vector<192x64xi1>
    %43 = arith.select %42, %40, %36 : vector<192x64xi1>, vector<192x64xf32>
    %44 = arith.truncf %43 : vector<192x64xf32> to vector<192x64xbf16>
    %c0_16 = arith.constant 0 : index
    %c0_17 = arith.constant 0 : index
    %45 = vector.load %arg4[%c0_16, %c0_17] : memref<64x32xbf16, #tpu.memory_space<vmem>>, vector<64x32xbf16>
    %cst_18 = arith.constant dense<0.000000e+00> : vector<192x32xf32>
    %46 = tpu.matmul %44, %45, %cst_18 {dimension_numbers = #tpu.dot_dimension_numbers<[1], [0], [0], [1], [0, 0, 1, 1], [], []>} : vector<192x64xbf16>, vector<64x32xbf16>, vector<192x32xf32> -> vector<192x32xf32>
    %c0_19 = arith.constant 0 : index
    %c0_20 = arith.constant 0 : index
    %47 = vector.load %arg5[%c0_19, %c0_20] : memref<1x32xf32, #tpu.memory_space<vmem>>, vector<1x32xf32>
    %48 = vector.broadcast %47 : vector<1x32xf32> to vector<192x32xf32>
    %49 = arith.addf %46, %48 : vector<192x32xf32>
    %50 = vector.extract_strided_slice %49 {offsets = [0, 0], sizes = [192, 16], strides = [1, 1]} : vector<192x32xf32> to vector<192x16xf32>
    %51 = vector.extract_strided_slice %49 {offsets = [0, 16], sizes = [192, 16], strides = [1, 1]} : vector<192x32xf32> to vector<192x16xf32>
    %52 = arith.mulf %50, %51 : vector<192x16xf32>
    %53 = arith.truncf %52 : vector<192x16xf32> to vector<192x16xbf16>
    %c0_21 = arith.constant 0 : index
    %c0_22 = arith.constant 0 : index
    %54 = vector.load %arg6[%c0_21, %c0_22] : memref<16x32xbf16, #tpu.memory_space<vmem>>, vector<16x32xbf16>
    %cst_23 = arith.constant dense<0.000000e+00> : vector<192x32xf32>
    %55 = tpu.matmul %53, %54, %cst_23 {dimension_numbers = #tpu.dot_dimension_numbers<[1], [0], [0], [1], [0, 0, 1, 1], [], []>} : vector<192x16xbf16>, vector<16x32xbf16>, vector<192x32xf32> -> vector<192x32xf32>
    %c0_24 = arith.constant 0 : index
    %c0_25 = arith.constant 0 : index
    %56 = vector.load %arg7[%c0_24, %c0_25] : memref<1x32xf32, #tpu.memory_space<vmem>>, vector<1x32xf32>
    %57 = vector.broadcast %56 : vector<1x32xf32> to vector<192x32xf32>
    %58 = arith.addf %55, %57 : vector<192x32xf32>
    %cst_26 = arith.constant 0.000000e+00 : f32
    %59 = vector.broadcast %cst_26 : f32 to vector<192x32xf32>
    %60 = arith.maximumf %58, %59 : vector<192x32xf32>
    %61 = arith.truncf %60 : vector<192x32xf32> to vector<192x32xbf16>
    %c0_27 = arith.constant 0 : index
    %c0_28 = arith.constant 0 : index
    %62 = vector.load %arg8[%c0_27, %c0_28] : memref<32x8xbf16, #tpu.memory_space<vmem>>, vector<32x8xbf16>
    %cst_29 = arith.constant dense<0.000000e+00> : vector<192x8xf32>
    %63 = tpu.matmul %61, %62, %cst_29 {dimension_numbers = #tpu.dot_dimension_numbers<[1], [0], [0], [1], [0, 0, 1, 1], [], []>} : vector<192x32xbf16>, vector<32x8xbf16>, vector<192x8xf32> -> vector<192x8xf32>
    %c0_30 = arith.constant 0 : index
    %c0_31 = arith.constant 0 : index
    %64 = vector.load %arg9[%c0_30, %c0_31] : memref<1x8xf32, #tpu.memory_space<vmem>>, vector<1x8xf32>
    %65 = vector.broadcast %64 : vector<1x8xf32> to vector<192x8xf32>
    %66 = arith.addf %63, %65 : vector<192x8xf32>
    %67 = vector.shape_cast %52 : vector<192x16xf32> to vector<24x8x16xf32>
    %68 = vector.shape_cast %66 : vector<192x8xf32> to vector<24x8x8xf32>
    %cst_32 = arith.constant dense<0xFF800000> : vector<24x8xf32>
    %69 = vector.multi_reduction <maximumf>, %68, %cst_32 [1] : vector<24x8x8xf32> to vector<24x8xf32>
    %70 = vector.shape_cast %69 : vector<24x8xf32> to vector<24x1x8xf32>
    %71 = vector.broadcast %70 : vector<24x1x8xf32> to vector<24x8x8xf32>
    %72 = arith.subf %68, %71 : vector<24x8x8xf32>
    %73 = math.exp %72 : vector<24x8x8xf32>
    %cst_33 = arith.constant dense<0.000000e+00> : vector<24x8xf32>
    %74 = vector.multi_reduction <add>, %73, %cst_33 [1] : vector<24x8x8xf32> to vector<24x8xf32>
    %75 = vector.shape_cast %74 : vector<24x8xf32> to vector<24x1x8xf32>
    %76 = tpu.reciprocal %75 {approx = true} : vector<24x1x8xf32> -> vector<24x1x8xf32>
    %77 = vector.broadcast %76 : vector<24x1x8xf32> to vector<24x8x8xf32>
    %78 = arith.mulf %73, %77 : vector<24x8x8xf32>
    %79 = vector.extract_strided_slice %78 {offsets = [0, 0, 0], sizes = [24, 8, 1], strides = [1, 1, 1]} : vector<24x8x8xf32> to vector<24x8x1xf32>
    %80 = vector.shape_cast %79 : vector<24x8x1xf32> to vector<24x8x1xf32>
    %81 = vector.broadcast %80 : vector<24x8x1xf32> to vector<24x8x16xf32>
    %82 = vector.extract_strided_slice %78 {offsets = [0, 0, 1], sizes = [24, 8, 1], strides = [1, 1, 1]} : vector<24x8x8xf32> to vector<24x8x1xf32>
    %83 = vector.shape_cast %82 : vector<24x8x1xf32> to vector<24x8x1xf32>
    %84 = vector.broadcast %83 : vector<24x8x1xf32> to vector<24x8x16xf32>
    %85 = vector.extract_strided_slice %78 {offsets = [0, 0, 2], sizes = [24, 8, 1], strides = [1, 1, 1]} : vector<24x8x8xf32> to vector<24x8x1xf32>
    %86 = vector.shape_cast %85 : vector<24x8x1xf32> to vector<24x8x1xf32>
    %87 = vector.broadcast %86 : vector<24x8x1xf32> to vector<24x8x16xf32>
    %88 = vector.extract_strided_slice %78 {offsets = [0, 0, 3], sizes = [24, 8, 1], strides = [1, 1, 1]} : vector<24x8x8xf32> to vector<24x8x1xf32>
    %89 = vector.shape_cast %88 : vector<24x8x1xf32> to vector<24x8x1xf32>
    %90 = vector.broadcast %89 : vector<24x8x1xf32> to vector<24x8x16xf32>
    %91 = vector.extract_strided_slice %78 {offsets = [0, 0, 4], sizes = [24, 8, 1], strides = [1, 1, 1]} : vector<24x8x8xf32> to vector<24x8x1xf32>
    %92 = vector.shape_cast %91 : vector<24x8x1xf32> to vector<24x8x1xf32>
    %93 = vector.broadcast %92 : vector<24x8x1xf32> to vector<24x8x16xf32>
    %94 = vector.extract_strided_slice %78 {offsets = [0, 0, 5], sizes = [24, 8, 1], strides = [1, 1, 1]} : vector<24x8x8xf32> to vector<24x8x1xf32>
    %95 = vector.shape_cast %94 : vector<24x8x1xf32> to vector<24x8x1xf32>
    %96 = vector.broadcast %95 : vector<24x8x1xf32> to vector<24x8x16xf32>
    %97 = vector.extract_strided_slice %78 {offsets = [0, 0, 6], sizes = [24, 8, 1], strides = [1, 1, 1]} : vector<24x8x8xf32> to vector<24x8x1xf32>
    %98 = vector.shape_cast %97 : vector<24x8x1xf32> to vector<24x8x1xf32>
    %99 = vector.broadcast %98 : vector<24x8x1xf32> to vector<24x8x16xf32>
    %100 = vector.extract_strided_slice %78 {offsets = [0, 0, 7], sizes = [24, 8, 1], strides = [1, 1, 1]} : vector<24x8x8xf32> to vector<24x8x1xf32>
    %101 = vector.shape_cast %100 : vector<24x8x1xf32> to vector<24x8x1xf32>
    %102 = vector.broadcast %101 : vector<24x8x1xf32> to vector<24x8x16xf32>
    %103 = tpu.concatenate %81, %84, %87, %90, %93, %96, %99, %102 in 2 : vector<24x8x16xf32>, vector<24x8x16xf32>, vector<24x8x16xf32>, vector<24x8x16xf32>, vector<24x8x16xf32>, vector<24x8x16xf32>, vector<24x8x16xf32>, vector<24x8x16xf32> -> vector<24x8x128xf32>
    %104 = tpu.concatenate %67, %67, %67, %67, %67, %67, %67, %67 in 2 : vector<24x8x16xf32>, vector<24x8x16xf32>, vector<24x8x16xf32>, vector<24x8x16xf32>, vector<24x8x16xf32>, vector<24x8x16xf32>, vector<24x8x16xf32>, vector<24x8x16xf32> -> vector<24x8x128xf32>
    %105 = arith.mulf %103, %104 : vector<24x8x128xf32>
    %cst_34 = arith.constant dense<0.000000e+00> : vector<24x128xf32>
    %106 = vector.multi_reduction <add>, %105, %cst_34 [1] : vector<24x8x128xf32> to vector<24x128xf32>
    %107 = vector.extract_strided_slice %106 {offsets = [0, 0], sizes = [8, 128], strides = [1, 1]} : vector<24x128xf32> to vector<8x128xf32>
    %108 = vector.extract_strided_slice %106 {offsets = [8, 0], sizes = [8, 128], strides = [1, 1]} : vector<24x128xf32> to vector<8x128xf32>
    %109 = vector.extract_strided_slice %106 {offsets = [16, 0], sizes = [8, 128], strides = [1, 1]} : vector<24x128xf32> to vector<8x128xf32>
    %110 = tpu.concatenate %107, %108, %109 in 1 : vector<8x128xf32>, vector<8x128xf32>, vector<8x128xf32> -> vector<8x384xf32>
    %c0_35 = arith.constant 0 : index
    %c0_36 = arith.constant 0 : index
    %111 = vector.load %arg10[%c0_35, %c0_36] : memref<8x384xf32, #tpu.memory_space<vmem>>, vector<8x384xf32>
    tpu.vector_store %arg10[%c0_35, %c0_36], %110 {strides = array<i32>} : memref<8x384xf32, #tpu.memory_space<vmem>>, vector<8x384xf32>,
    return
  }
  func.func @transform_0(%arg0: i32) -> (i32, i32) {
    %c0_i32 = arith.constant 0 : i32
    %c0_i32_0 = arith.constant 0 : i32
    return %arg0, %c0_i32 : i32, i32
  }
  func.func @transform_1(%arg0: i32) -> (i32, i32) {
    %c0_i32 = arith.constant 0 : i32
    %c0_i32_0 = arith.constant 0 : i32
    %c0_i32_1 = arith.constant 0 : i32
    return %c0_i32, %c0_i32_0 : i32, i32
  }
  func.func @transform_2(%arg0: i32) -> (i32, i32) {
    %c0_i32 = arith.constant 0 : i32
    %c0_i32_0 = arith.constant 0 : i32
    %c0_i32_1 = arith.constant 0 : i32
    return %c0_i32, %c0_i32_0 : i32, i32
  }
  func.func @transform_3(%arg0: i32) -> (i32, i32) {
    %c0_i32 = arith.constant 0 : i32
    %c0_i32_0 = arith.constant 0 : i32
    %c0_i32_1 = arith.constant 0 : i32
    return %c0_i32, %c0_i32_0 : i32, i32
  }
  func.func @transform_4(%arg0: i32) -> (i32, i32) {
    %c0_i32 = arith.constant 0 : i32
    %c0_i32_0 = arith.constant 0 : i32
    %c0_i32_1 = arith.constant 0 : i32
    return %c0_i32, %c0_i32_0 : i32, i32
  }
  func.func @transform_5(%arg0: i32) -> (i32, i32) {
    %c0_i32 = arith.constant 0 : i32
    %c0_i32_0 = arith.constant 0 : i32
    %c0_i32_1 = arith.constant 0 : i32
    return %c0_i32, %c0_i32_0 : i32, i32
  }
  func.func @transform_6(%arg0: i32) -> (i32, i32) {
    %c0_i32 = arith.constant 0 : i32
    %c0_i32_0 = arith.constant 0 : i32
    %c0_i32_1 = arith.constant 0 : i32
    return %c0_i32, %c0_i32_0 : i32, i32
  }
  func.func @transform_7(%arg0: i32) -> (i32, i32) {
    %c0_i32 = arith.constant 0 : i32
    %c0_i32_0 = arith.constant 0 : i32
    %c0_i32_1 = arith.constant 0 : i32
    return %c0_i32, %c0_i32_0 : i32, i32
  }
  func.func @transform_8(%arg0: i32) -> (i32, i32) {
    %c0_i32 = arith.constant 0 : i32
    %c0_i32_0 = arith.constant 0 : i32
    %c0_i32_1 = arith.constant 0 : i32
    return %c0_i32, %c0_i32_0 : i32, i32
  }
  func.func @transform_9(%arg0: i32) -> (i32, i32) {
    %c0_i32 = arith.constant 0 : i32
    %c0_i32_0 = arith.constant 0 : i32
    return %arg0, %c0_i32 : i32, i32
  }
}

</mosaic_0001>

<llo_original>
// kernel: tpu_custom_call.1
$region0: #{tpu_custom_call.1}
  #allocation0 [shape = 'u32[]', space=smem, size = 0x4, offset = 0x4, fixed_abs, tag = 'smem constant byte address 0x4 - core index']
  #allocation1 [shape = 'u32[144,128]{1,0:T(1,128)}', space=vmem, size = 0x12000, scoped, tag = 'internal scratch']
  %s0 = inlined_call_operand.vmem [shape: f32[128,16], index: 0, kind: input, shape index: {}]
  %s1 = inlined_call_operand.vmem [shape: bf16[16,64], index: 1, kind: input, shape index: {}]
  %s2 = inlined_call_operand.vmem [shape: f32[1,64], index: 2, kind: input, shape index: {}]
  %s3 = inlined_call_operand.vmem [shape: bf16[64,32], index: 3, kind: input, shape index: {}]
  %s4 = inlined_call_operand.vmem [shape: f32[1,32], index: 4, kind: input, shape index: {}]
  %s5 = inlined_call_operand.vmem [shape: bf16[16,32], index: 5, kind: input, shape index: {}]
  %s6 = inlined_call_operand.vmem [shape: f32[1,32], index: 6, kind: input, shape index: {}]
  %s7 = inlined_call_operand.vmem [shape: bf16[32,8], index: 7, kind: input, shape index: {}]
  %s8 = inlined_call_operand.vmem [shape: f32[1,8], index: 8, kind: input, shape index: {}]
  %s9 = inlined_call_operand.hbm [shape: f32[16,384], index: 9, kind: output, shape index: {}]
  %s10 = sld [smem:[#allocation0]]
  $region69: #{tpu_custom_call.1} parent=0
    _
  %s12 = ssub.s32 1, %s10
  %s13 = scalar_select 0, %s12, %s10
  $region1: #{tpu_custom_call.1} parent=0
    #allocation2 [shape = 'u8[24576]{0}', space=vmem, size = 0x6000, scoped, tag = 'output window, operand 0']
    #allocation3 [shape = 's32[2]{0}', space=sflag, size = 0x8, scoped, tag = 'scoped memory for tpu_custom_call.1']
    %14 = vsyncpa [#allocation3], 0
    %s15 = scalar_lea.sflag [#allocation3], 1
    %16 = vsyncpa %s15, 0
    loop: start=0, step=1, limit=4
    $region2: #{tpu_custom_call.1} parent=1 // loop_pre_header
      _
    $region3: #{tpu_custom_call.1} parent=1 // loop_header
      %s18 = sphi 0, %s22
      %p19 = scmp.ge.s32.totalorder %s18, 4
      %s28 = sphi 0, %s30
      %s31 = sphi 0, %s28
      %s32 = sphi 0, %s31
      %s48 = sphi 0, %s32
      %s52 = sphi 0, %s52
      %s54 = sphi 0, %s52
      %s55 = sphi 0, %s54
      %s69 = sphi 0, %s55
      %s73 = sphi 0, %s73
      %s75 = sphi 0, %s73
      %s76 = sphi 0, %s75
      %s90 = sphi 0, %s76
      %s94 = sphi 0, %s94
      %s96 = sphi 0, %s94
      %s97 = sphi 0, %s96
      %s111 = sphi 0, %s97
      %s115 = sphi 0, %s115
      %s117 = sphi 0, %s115
      %s118 = sphi 0, %s117
      %s132 = sphi 0, %s118
      %s136 = sphi 0, %s136
      %s138 = sphi 0, %s136
      %s139 = sphi 0, %s138
      %s153 = sphi 0, %s139
      %s157 = sphi 0, %s157
      %s159 = sphi 0, %s157
      %s160 = sphi 0, %s159
      %s174 = sphi 0, %s160
      %s178 = sphi 0, %s178
      %s180 = sphi 0, %s178
      %s181 = sphi 0, %s180
      %s195 = sphi 0, %s181
      %s199 = sphi 0, %s199
      %s201 = sphi 0, %s199
      %s202 = sphi 0, %s201
      %s216 = sphi 0, %s202
      %s222 = sphi 0, %s224
      %s225 = sphi 0, %s222
      %s226 = sphi 0, %s225
      %s242 = sphi 0, %s226
    $region4: #{tpu_custom_call.1} parent=1 // loop_header_branch
      %21 = sbr.rel (%p19) target = $region8
    $region5: #{tpu_custom_call.1} parent=1 // loop_body
      %s23 = ssub.s32 %s18, 1
      %s24 = ssub.s32 %s18, 2
      %s25 = sadd.s32 %s18, 1
      %s26 = ssub.s32 %s18, %s25
      %p27 = scmp.eq.s32.totalorder %s26, 0
      %s29 = sadd.s32 %s28, 1
      %s30 = scalar_select %p27, %s28, %s29
      %p33 = pneg %p27
      %p34 = scmp.eq.s32.totalorder %s18, 1
      %p35 = por %p33, %p34
      %p36 = scmp.ne.s32.totalorder %s28, %s31
      %p37 = scmp.eq.s32.totalorder %s18, 0
      %p38 = por %p36, %p37
      %p39 = scmp.ne.s32.totalorder %s28, %s31
      %p40 = scmp.eq.s32.totalorder %s23, 1
      %p41 = por %p39, %p40
      %p42 = scmp.ne.s32.totalorder %s31, %s32
      %p43 = scmp.eq.s32.totalorder %s23, 0
      %p44 = por %p42, %p43
      %p45 = scmp.ne.s32.totalorder %s31, %s32
      %p46 = scmp.eq.s32.totalorder %s24, 1
      %p47 = por %p45, %p46
      %p49 = scmp.ne.s32.totalorder %s32, %s48
      %p50 = scmp.eq.s32.totalorder %s24, 0
      %p51 = por %p49, %p50
      %s53 = sadd.s32 %s52, 1
      %p56 = scmp.eq.s32.totalorder %s18, 1
      %p57 = scmp.ne.s32.totalorder %s52, %s54
      %p58 = scmp.eq.s32.totalorder %s18, 0
      %p59 = por %p57, %p58
      %p60 = scmp.ne.s32.totalorder %s52, %s54
      %p61 = scmp.eq.s32.totalorder %s23, 1
      %p62 = por %p60, %p61
      %p63 = scmp.ne.s32.totalorder %s54, %s55
      %p64 = scmp.eq.s32.totalorder %s23, 0
      %p65 = por %p63, %p64
      %p66 = scmp.ne.s32.totalorder %s54, %s55
      %p67 = scmp.eq.s32.totalorder %s24, 1
      %p68 = por %p66, %p67
      %p70 = scmp.ne.s32.totalorder %s55, %s69
      %p71 = scmp.eq.s32.totalorder %s24, 0
      %p72 = por %p70, %p71
      %s74 = sadd.s32 %s73, 1
      %p77 = scmp.eq.s32.totalorder %s18, 1
      %p78 = scmp.ne.s32.totalorder %s73, %s75
      %p79 = scmp.eq.s32.totalorder %s18, 0
      %p80 = por %p78, %p79
      %p81 = scmp.ne.s32.totalorder %s73, %s75
      %p82 = scmp.eq.s32.totalorder %s23, 1
      %p83 = por %p81, %p82
      %p84 = scmp.ne.s32.totalorder %s75, %s76
      %p85 = scmp.eq.s32.totalorder %s23, 0
      %p86 = por %p84, %p85
      %p87 = scmp.ne.s32.totalorder %s75, %s76
      %p88 = scmp.eq.s32.totalorder %s24, 1
      %p89 = por %p87, %p88
      %p91 = scmp.ne.s32.totalorder %s76, %s90
      %p92 = scmp.eq.s32.totalorder %s24, 0
      %p93 = por %p91, %p92
      %s95 = sadd.s32 %s94, 1
      %p98 = scmp.eq.s32.totalorder %s18, 1
      %p99 = scmp.ne.s32.totalorder %s94, %s96
      %p100 = scmp.eq.s32.totalorder %s18, 0
      %p101 = por %p99, %p100
      %p102 = scmp.ne.s32.totalorder %s94, %s96
      %p103 = scmp.eq.s32.totalorder %s23, 1
      %p104 = por %p102, %p103
      %p105 = scmp.ne.s32.totalorder %s96, %s97
      %p106 = scmp.eq.s32.totalorder %s23, 0
      %p107 = por %p105, %p106
      %p108 = scmp.ne.s32.totalorder %s96, %s97
      %p109 = scmp.eq.s32.totalorder %s24, 1
      %p110 = por %p108, %p109
      %p112 = scmp.ne.s32.totalorder %s97, %s111
      %p113 = scmp.eq.s32.totalorder %s24, 0
      %p114 = por %p112, %p113
      %s116 = sadd.s32 %s115, 1
      %p119 = scmp.eq.s32.totalorder %s18, 1
      %p120 = scmp.ne.s32.totalorder %s115, %s117
      %p121 = scmp.eq.s32.totalorder %s18, 0
      %p122 = por %p120, %p121
      %p123 = scmp.ne.s32.totalorder %s115, %s117
      %p124 = scmp.eq.s32.totalorder %s23, 1
      %p125 = por %p123, %p124
      %p126 = scmp.ne.s32.totalorder %s117, %s118
      %p127 = scmp.eq.s32.totalorder %s23, 0
      %p128 = por %p126, %p127
      %p129 = scmp.ne.s32.totalorder %s117, %s118
      %p130 = scmp.eq.s32.totalorder %s24, 1
      %p131 = por %p129, %p130
      %p133 = scmp.ne.s32.totalorder %s118, %s132
      %p134 = scmp.eq.s32.totalorder %s24, 0
      %p135 = por %p133, %p134
      %s137 = sadd.s32 %s136, 1
      %p140 = scmp.eq.s32.totalorder %s18, 1
      %p141 = scmp.ne.s32.totalorder %s136, %s138
      %p142 = scmp.eq.s32.totalorder %s18, 0
      %p143 = por %p141, %p142
      %p144 = scmp.ne.s32.totalorder %s136, %s138
      %p145 = scmp.eq.s32.totalorder %s23, 1
      %p146 = por %p144, %p145
      %p147 = scmp.ne.s32.totalorder %s138, %s139
      %p148 = scmp.eq.s32.totalorder %s23, 0
      %p149 = por %p147, %p148
      %p150 = scmp.ne.s32.totalorder %s138, %s139
      %p151 = scmp.eq.s32.totalorder %s24, 1
      %p152 = por %p150, %p151
      %p154 = scmp.ne.s32.totalorder %s139, %s153
      %p155 = scmp.eq.s32.totalorder %s24, 0
      %p156 = por %p154, %p155
      %s158 = sadd.s32 %s157, 1
      %p161 = scmp.eq.s32.totalorder %s18, 1
      %p162 = scmp.ne.s32.totalorder %s157, %s159
      %p163 = scmp.eq.s32.totalorder %s18, 0
      %p164 = por %p162, %p163
      %p165 = scmp.ne.s32.totalorder %s157, %s159
      %p166 = scmp.eq.s32.totalorder %s23, 1
      %p167 = por %p165, %p166
      %p168 = scmp.ne.s32.totalorder %s159, %s160
      %p169 = scmp.eq.s32.totalorder %s23, 0
      %p170 = por %p168, %p169
      %p171 = scmp.ne.s32.totalorder %s159, %s160
      %p172 = scmp.eq.s32.totalorder %s24, 1
      %p173 = por %p171, %p172
      %p175 = scmp.ne.s32.totalorder %s160, %s174
      %p176 = scmp.eq.s32.totalorder %s24, 0
      %p177 = por %p175, %p176
      %s179 = sadd.s32 %s178, 1
      %p182 = scmp.eq.s32.totalorder %s18, 1
      %p183 = scmp.ne.s32.totalorder %s178, %s180
      %p184 = scmp.eq.s32.totalorder %s18, 0
      %p185 = por %p183, %p184
      %p186 = scmp.ne.s32.totalorder %s178, %s180
      %p187 = scmp.eq.s32.totalorder %s23, 1
      %p188 = por %p186, %p187
      %p189 = scmp.ne.s32.totalorder %s180, %s181
      %p190 = scmp.eq.s32.totalorder %s23, 0
      %p191 = por %p189, %p190
      %p192 = scmp.ne.s32.totalorder %s180, %s181
      %p193 = scmp.eq.s32.totalorder %s24, 1
      %p194 = por %p192, %p193
      %p196 = scmp.ne.s32.totalorder %s181, %s195
      %p197 = scmp.eq.s32.totalorder %s24, 0
      %p198 = por %p196, %p197
      %s200 = sadd.s32 %s199, 1
      %p203 = scmp.eq.s32.totalorder %s18, 1
      %p204 = scmp.ne.s32.totalorder %s199, %s201
      %p205 = scmp.eq.s32.totalorder %s18, 0
      %p206 = por %p204, %p205
      %p207 = scmp.ne.s32.totalorder %s199, %s201
      %p208 = scmp.eq.s32.totalorder %s23, 1
      %p209 = por %p207, %p208
      %p210 = scmp.ne.s32.totalorder %s201, %s202
      %p211 = scmp.eq.s32.totalorder %s23, 0
      %p212 = por %p210, %p211
      %p213 = scmp.ne.s32.totalorder %s201, %s202
      %p214 = scmp.eq.s32.totalorder %s24, 1
      %p215 = por %p213, %p214
      %p217 = scmp.ne.s32.totalorder %s202, %s216
      %p218 = scmp.eq.s32.totalorder %s24, 0
      %p219 = por %p217, %p218
      %s220 = ssub.s32 %s18, %s25
      %p221 = scmp.eq.s32.totalorder %s220, 0
      %s223 = sadd.s32 %s222, 1
      %s224 = scalar_select %p221, %s222, %s223
      %p227 = pneg %p221
      %p228 = scmp.eq.s32.totalorder %s18, 1
      %p229 = por %p227, %p228
      %p230 = scmp.ne.s32.totalorder %s222, %s225
      %p231 = scmp.eq.s32.totalorder %s18, 0
      %p232 = por %p230, %p231
      %p233 = scmp.ne.s32.totalorder %s222, %s225
      %p234 = scmp.eq.s32.totalorder %s23, 1
      %p235 = por %p233, %p234
      %p236 = scmp.ne.s32.totalorder %s225, %s226
      %p237 = scmp.eq.s32.totalorder %s23, 0
      %p238 = por %p236, %p237
      %p239 = scmp.ne.s32.totalorder %s225, %s226
      %p240 = scmp.eq.s32.totalorder %s24, 1
      %p241 = por %p239, %p240
      %p243 = scmp.ne.s32.totalorder %s226, %s242
      %p244 = scmp.eq.s32.totalorder %s24, 0
      %p245 = por %p243, %p244
      %p246 = scmp.le.s32.totalorder 1, %s18
      %p247 = scmp.lt.s32.totalorder %s18, 3
      %p248 = pnand %p246, %p247
      %p249 = pneg %p248
      // Predicated region
      $region9: #{tpu_custom_call.1} parent=5 // pred_check
        _
      $region10: #{tpu_custom_call.1} parent=5 // pred_check_branch
        %251 = sbr.rel (%p248) target = $region12
      $region11: #{tpu_custom_call.1} parent=5 // pred_region
        %s252 = ssub.s32 %s18, 1
        // Predicated region
        $region13: #{tpu_custom_call.1} parent=11 // pred_check
          %p253 = pneg %p65
        $region14: #{tpu_custom_call.1} parent=11 // pred_check_branch
          %255 = sbr.rel (%p253) target = $region16
        $region15: #{tpu_custom_call.1} parent=11 // pred_region
          _
        $region16: #{tpu_custom_call.1} parent=11 // pred_fallthru
          _
        // Predicated region
        $region17: #{tpu_custom_call.1} parent=11 // pred_check
          %p256 = pneg %p86
        $region18: #{tpu_custom_call.1} parent=11 // pred_check_branch
          %258 = sbr.rel (%p256) target = $region20
        $region19: #{tpu_custom_call.1} parent=11 // pred_region
          _
        $region20: #{tpu_custom_call.1} parent=11 // pred_fallthru
          _
        // Predicated region
        $region21: #{tpu_custom_call.1} parent=11 // pred_check
          %p259 = pneg %p107
        $region22: #{tpu_custom_call.1} parent=11 // pred_check_branch
          %261 = sbr.rel (%p259) target = $region24
        $region23: #{tpu_custom_call.1} parent=11 // pred_region
          _
        $region24: #{tpu_custom_call.1} parent=11 // pred_fallthru
          _
        // Predicated region
        $region25: #{tpu_custom_call.1} parent=11 // pred_check
          %p262 = pneg %p128
        $region26: #{tpu_custom_call.1} parent=11 // pred_check_branch
          %264 = sbr.rel (%p262) target = $region28
        $region27: #{tpu_custom_call.1} parent=11 // pred_region
          _
        $region28: #{tpu_custom_call.1} parent=11 // pred_fallthru
          _
        // Predicated region
        $region29: #{tpu_custom_call.1} parent=11 // pred_check
          %p265 = pneg %p149
        $region30: #{tpu_custom_call.1} parent=11 // pred_check_branch
          %267 = sbr.rel (%p265) target = $region32
        $region31: #{tpu_custom_call.1} parent=11 // pred_region
          _
        $region32: #{tpu_custom_call.1} parent=11 // pred_fallthru
          _
        // Predicated region
        $region33: #{tpu_custom_call.1} parent=11 // pred_check
          %p268 = pneg %p170
        $region34: #{tpu_custom_call.1} parent=11 // pred_check_branch
          %270 = sbr.rel (%p268) target = $region36
        $region35: #{tpu_custom_call.1} parent=11 // pred_region
          _
        $region36: #{tpu_custom_call.1} parent=11 // pred_fallthru
          _
        // Predicated region
        $region37: #{tpu_custom_call.1} parent=11 // pred_check
          %p271 = pneg %p191
        $region38: #{tpu_custom_call.1} parent=11 // pred_check_branch
          %273 = sbr.rel (%p271) target = $region40
        $region39: #{tpu_custom_call.1} parent=11 // pred_region
          _
        $region40: #{tpu_custom_call.1} parent=11 // pred_fallthru
          _
        // Predicated region
        $region41: #{tpu_custom_call.1} parent=11 // pred_check
          %p274 = pneg %p212
        $region42: #{tpu_custom_call.1} parent=11 // pred_check_branch
          %276 = sbr.rel (%p274) target = $region44
        $region43: #{tpu_custom_call.1} parent=11 // pred_region
          _
        $region44: #{tpu_custom_call.1} parent=11 // pred_fallthru
          _
      $region12: #{tpu_custom_call.1} parent=5 // pred_fallthru
        _
      %p277 = scmp.lt.s32.totalorder %s18, 2
      // Predicated region
      $region45: #{tpu_custom_call.1} parent=5 // pred_check
        %p278 = pneg %p277
      $region46: #{tpu_custom_call.1} parent=5 // pred_check_branch
        %280 = sbr.rel (%p278) target = $region48
      $region47: #{tpu_custom_call.1} parent=5 // pred_region
        // Predicated region
        $region49: #{tpu_custom_call.1} parent=47 // pred_check
          %p281 = pneg %p38
        $region50: #{tpu_custom_call.1} parent=47 // pred_check_branch
          %283 = sbr.rel (%p281) target = $region52
        $region51: #{tpu_custom_call.1} parent=47 // pred_region
          %s284 = smul.u32 8, %s18
          %p285 = scmp.lt.s32.totalorder %s284, 15
          %s286 = scalar_select %p285, %s284, 15
          %s287 = smul.addr %s286, 8
          %s288 = scalar_lea.vmem %s0, %s287
          %s289 = smul.u32 8, %s18
        $region52: #{tpu_custom_call.1} parent=47 // pred_fallthru
          _
      $region48: #{tpu_custom_call.1} parent=5 // pred_fallthru
        _
      %p290 = scmp.le.s32.totalorder 1, %s18
      %p291 = scmp.lt.s32.totalorder %s18, 3
      %p292 = pnand %p290, %p291
      %p293 = pneg %p292
      // Predicated region
      $region53: #{tpu_custom_call.1} parent=5 // pred_check
        _
      $region54: #{tpu_custom_call.1} parent=5 // pred_check_branch
        %295 = sbr.rel (%p292) target = $region56
      $region55: #{tpu_custom_call.1} parent=5 // pred_region
        %s296 = ssub.s32 %s18, 1
        %s297 = smul.u32 8, %s23
        %p298 = scmp.lt.s32.totalorder %s297, 15
        %s299 = scalar_select %p298, %s297, 15
        %s300 = smul.addr %s299, 8
        %s301 = scalar_lea.vmem %s0, %s300
        %p302 = pneg %p44
        %p303 = pneg %p41
        %p304 = pneg %p65
        %p305 = pneg %p62
        %p306 = pneg %p86
        %p307 = pneg %p83
        %p308 = pneg %p107
        %p309 = pneg %p104
        %p310 = pneg %p128
        %p311 = pneg %p125
        %p312 = pneg %p149
        %p313 = pneg %p146
        %p314 = pneg %p170
        %p315 = pneg %p167
        %p316 = pneg %p191
        %p317 = pneg %p188
        %p318 = pneg %p212
        %p319 = pneg %p209
        %p320 = pneg %p238
        %p321 = pneg %p235
        %s322 = sand.u32 %s225, 1
        %s323 = scalar_lea.sflag [#allocation3], %s322
        %s324 = sand.u32 %s225, 1
        %s325 = smul.addr %s324, 24
        %s326 = scalar_lea.vmem [#allocation2], %s325
        %s327 = smul.u32 8, %s23
        %p328 = scmp.lt.s32.totalorder %s327, 15
        %s329 = scalar_select %p328, %s327, 15
        %s330 = smul.addr %s329, 8
        %s331 = scalar_lea.vmem %s0, %s330
        %s332 = smul.u32 8, %s23
        %v334 = vld [vmem:[%s331] sm:$0xff]
        %v335 = vld [vmem:[%s331 + $0x8] sm:$0xff]
        %v336 = vld [vmem:[%s331 + $0x10] sm:$0xff]
        %v337 = vld [vmem:[%s331 + $0x18] sm:$0xff]
        %v338 = vld [vmem:[%s331 + $0x20] sm:$0xff]
        %v339 = vld [vmem:[%s331 + $0x28] sm:$0xff]
        %v340 = vld [vmem:[%s331 + $0x30] sm:$0xff]
        %v341 = vld [vmem:[%s331 + $0x38] sm:$0xff]
        %v342 = vmul.f32 %v334, %v334
        %v343 = vmul.f32 %v335, %v335
        %v344 = vmul.f32 %v336, %v336
        %v345 = vmul.f32 %v337, %v337
        %v346 = vmul.f32 %v338, %v338
        %v347 = vmul.f32 %v339, %v339
        %v348 = vmul.f32 %v340, %v340
        %v349 = vmul.f32 %v341, %v341
        %v350 = vmul.f32 %v342, -50.0
        %v351 = vmul.f32 %v343, -50.0
        %v352 = vmul.f32 %v344, -50.0
        %v353 = vmul.f32 %v345, -50.0
        %v354 = vmul.f32 %v346, -50.0
        %v355 = vmul.f32 %v347, -50.0
        %v356 = vmul.f32 %v348, -50.0
        %v357 = vmul.f32 %v349, -50.0
        %v358 = vmul.f32 %v334, 0.0
        %v359 = vmul.f32 %v335, 0.0
        %v360 = vmul.f32 %v336, 0.0
        %v361 = vmul.f32 %v337, 0.0
        %v362 = vmul.f32 %v338, 0.0
        %v363 = vmul.f32 %v339, 0.0
        %v364 = vmul.f32 %v340, 0.0
        %v365 = vmul.f32 %v341, 0.0
        %v366 = vadd.f32 %v350, %v358
        %v367 = vadd.f32 %v351, %v359
        %v368 = vadd.f32 %v352, %v360
        %v369 = vadd.f32 %v353, %v361
        %v370 = vadd.f32 %v354, %v362
        %v371 = vadd.f32 %v355, %v363
        %v372 = vadd.f32 %v356, %v364
        %v373 = vadd.f32 %v357, %v365
        %v374 = vmul.f32 %v366, 1.442695
        %v375 = vpow.pop %v374
        %v376 = vmul.f32 %v367, 1.442695
        %v377 = vpow.pop %v376
        %v378 = vmul.f32 %v368, 1.442695
        %v379 = vpow.pop %v378
        %v380 = vmul.f32 %v369, 1.442695
        %v381 = vpow.pop %v380
        %v382 = vmul.f32 %v370, 1.442695
        %v383 = vpow.pop %v382
        %v384 = vmul.f32 %v371, 1.442695
        %v385 = vpow.pop %v384
        %v386 = vmul.f32 %v372, 1.442695
        %v387 = vpow.pop %v386
        %v388 = vmul.f32 %v373, 1.442695
        %v389 = vpow.pop %v388
        %v390 = vmul.f32 %v334, 50.0
        %v391 = vmul.f32 %v335, 50.0
        %v392 = vmul.f32 %v336, 50.0
        %v393 = vmul.f32 %v337, 50.0
        %v394 = vmul.f32 %v338, 50.0
        %v395 = vmul.f32 %v339, 50.0
        %v396 = vmul.f32 %v340, 50.0
        %v397 = vmul.f32 %v341, 50.0
        %v398 = vadd.f32 %v350, %v390
        %v399 = vadd.f32 %v351, %v391
        %v400 = vadd.f32 %v352, %v392
        %v401 = vadd.f32 %v353, %v393
        %v402 = vadd.f32 %v354, %v394
        %v403 = vadd.f32 %v355, %v395
        %v404 = vadd.f32 %v356, %v396
        %v405 = vadd.f32 %v357, %v397
        %v406 = vadd.f32 %v398, -12.5
        %v407 = vadd.f32 %v399, -12.5
        %v408 = vadd.f32 %v400, -12.5
        %v409 = vadd.f32 %v401, -12.5
        %v410 = vadd.f32 %v402, -12.5
        %v411 = vadd.f32 %v403, -12.5
        %v412 = vadd.f32 %v404, -12.5
        %v413 = vadd.f32 %v405, -12.5
        %v414 = vmul.f32 %v406, 1.442695
        %v415 = vpow.pop %v414
        %v416 = vmul.f32 %v407, 1.442695
        %v417 = vpow.pop %v416
        %v418 = vmul.f32 %v408, 1.442695
        %v419 = vpow.pop %v418
        %v420 = vmul.f32 %v409, 1.442695
        %v421 = vpow.pop %v420
        %v422 = vmul.f32 %v410, 1.442695
        %v423 = vpow.pop %v422
        %v424 = vmul.f32 %v411, 1.442695
        %v425 = vpow.pop %v424
        %v426 = vmul.f32 %v412, 1.442695
        %v427 = vpow.pop %v426
        %v428 = vmul.f32 %v413, 1.442695
        %v429 = vpow.pop %v428
        %v430 = vmul.f32 %v334, 100.0
        %v431 = vmul.f32 %v335, 100.0
        %v432 = vmul.f32 %v336, 100.0
        %v433 = vmul.f32 %v337, 100.0
        %v434 = vmul.f32 %v338, 100.0
        %v435 = vmul.f32 %v339, 100.0
        %v436 = vmul.f32 %v340, 100.0
        %v437 = vmul.f32 %v341, 100.0
        %v438 = vadd.f32 %v350, %v430
        %v439 = vadd.f32 %v351, %v431
        %v440 = vadd.f32 %v352, %v432
        %v441 = vadd.f32 %v353, %v433
        %v442 = vadd.f32 %v354, %v434
        %v443 = vadd.f32 %v355, %v435
        %v444 = vadd.f32 %v356, %v436
        %v445 = vadd.f32 %v357, %v437
        %v446 = vadd.f32 %v438, -50.0
        %v447 = vadd.f32 %v439, -50.0
        %v448 = vadd.f32 %v440, -50.0
        %v449 = vadd.f32 %v441, -50.0
        %v450 = vadd.f32 %v442, -50.0
        %v451 = vadd.f32 %v443, -50.0
        %v452 = vadd.f32 %v444, -50.0
        %v453 = vadd.f32 %v445, -50.0
        %v454 = vmul.f32 %v446, 1.442695
        %v455 = vpow.pop %v454
        %v456 = vmul.f32 %v447, 1.442695
        %v457 = vpow.pop %v456
        %v458 = vmul.f32 %v448, 1.442695
        %v459 = vpow.pop %v458
        %v460 = vmul.f32 %v449, 1.442695
        %v461 = vpow.pop %v460
        %v462 = vmul.f32 %v450, 1.442695
        %v463 = vpow.pop %v462
        %v464 = vmul.f32 %v451, 1.442695
        %v465 = vpow.pop %v464
        %v466 = vmul.f32 %v452, 1.442695
        %v467 = vpow.pop %v466
        %v468 = vmul.f32 %v453, 1.442695
        %v469 = vpow.pop %v468
        %v470 = vpack.c.bf16 %v377, %v375
        %v471 = vpack.c.bf16 %v381, %v379
        %v472 = vpack.c.bf16 %v385, %v383
        %v473 = vpack.c.bf16 %v389, %v387
        %v474 = vpack.c.bf16 %v417, %v415
        %v475 = vpack.c.bf16 %v421, %v419
        %v476 = vpack.c.bf16 %v425, %v423
        %v477 = vpack.c.bf16 %v429, %v427
        %v478 = vpack.c.bf16 %v457, %v455
        %v479 = vpack.c.bf16 %v461, %v459
        %v480 = vpack.c.bf16 %v465, %v463
        %v481 = vpack.c.bf16 %v469, %v467
        %v482 = vld [vmem:[%s1] sm:$0xf]
        %v483 = vld [vmem:[%s1 + $0x4] sm:$0xf]
        %v484 = vld [vmem:[%s2] sm:$0x1]
        %v486 = vlaneseq
        %v487 = vshrl.u32 %v486, 7
        %v488 = vsub.s32 0, %v487
        %v489 = vrot.slane %v484, %v488
        %v493 = vunpack.c.l.b16 %v482
        %v494 = vunpack.c.l.b16 %v483
        %v495 = vpack.c.b16 %v494, %v493
        %vm497 = vcmask 130048
        %v499 = vsel %vm497, %v470, 0
        %v502 = vsel %vm497, %v471, 0
        %v505 = vsel %vm497, %v472, 0
        %v508 = vsel %vm497, %v473, 0
        %v511 = vsel %vm497, %v474, 0
        %v514 = vsel %vm497, %v475, 0
        %v517 = vsel %vm497, %v476, 0
        %v520 = vsel %vm497, %v477, 0
        %v523 = vsel %vm497, %v478, 0
        %v526 = vsel %vm497, %v479, 0
        %v529 = vsel %vm497, %v480, 0
        %v532 = vsel %vm497, %v481, 0
        %534 = vmatprep.subr.bf16.mxu0 0
        %535 = vmatpush1.bf16.msra.mxu0 %v495
        %536 = vmatprep.subr.bf16.mxu0 0
        %537 = vmatpush1.bf16.msra.mxu0 0
        %538 = vmatprep.subr.bf16.mxu0 0
        %539 = vmatpush1.bf16.msra.mxu0 0
        %540 = vmatprep.subr.bf16.mxu0 0
        %541 = vmatpush1.bf16.msra.mxu0 0
        %542 = vmatprep.subr.bf16.mxu0 0
        %543 = vmatpush1.bf16.msra.mxu0 0
        %544 = vmatprep.subr.bf16.mxu0 0
        %545 = vmatpush1.bf16.msra.mxu0 0
        %546 = vmatprep.subr.bf16.mxu0 0
        %547 = vmatpush1.bf16.msra.mxu0 0
        %548 = vmatprep.subr.bf16.mxu0 0
        %549 = vmatpush1.bf16.msra.mxu0 0
        %550 = vmatprep.subr.bf16.mxu0 0
        %551 = vmatpush1.bf16.msra.mxu0 0
        %552 = vmatprep.subr.bf16.mxu0 0
        %553 = vmatpush1.bf16.msra.mxu0 0
        %554 = vmatprep.subr.bf16.mxu0 0
        %555 = vmatpush1.bf16.msra.mxu0 0
        %556 = vmatprep.subr.bf16.mxu0 0
        %557 = vmatpush1.bf16.msra.mxu0 0
        %558 = vmatprep.subr.bf16.mxu0 0
        %559 = vmatpush1.bf16.msra.mxu0 0
        %560 = vmatprep.subr.bf16.mxu0 0
        %561 = vmatpush1.bf16.msra.mxu0 0
        %562 = vmatprep.subr.bf16.mxu0 0
        %563 = vmatpush1.bf16.msra.mxu0 0
        %564 = vmatprep.subr.bf16.mxu0 0
        %565 = vmatpush1.bf16.msra.mxu0 0
        %566 = vmatprep.mubr.bf16.mxu0 0
        %567 = vmatmul.mubr.bf16.gmra.mrb[0].mxu0 %v499
        %v568 = vpop.f32.mrb[0].mxu0
        %v569 = vadd.f32 %v489, %v568
        %v570 = vpop.f32.mrb[0].mxu0
        %v571 = vpop.f32.mrb[0].mxu0
        %v572 = vadd.f32 %v489, %v571
        %v573 = vpop.f32.mrb[0].mxu0
        %574 = vmatprep.mubr.bf16.mxu0 0
        %575 = vmatmul.mubr.bf16.gmra.mrb[0].mxu0 %v502
        %v576 = vpop.f32.mrb[0].mxu0
        %v577 = vadd.f32 %v489, %v576
        %v578 = vpop.f32.mrb[0].mxu0
        %v579 = vpop.f32.mrb[0].mxu0
        %v580 = vadd.f32 %v489, %v579
        %v581 = vpop.f32.mrb[0].mxu0
        %582 = vmatprep.mubr.bf16.mxu0 0
        %583 = vmatmul.mubr.bf16.gmra.mrb[0].mxu0 %v505
        %v584 = vpop.f32.mrb[0].mxu0
        %v585 = vadd.f32 %v489, %v584
        %v586 = vpop.f32.mrb[0].mxu0
        %v587 = vpop.f32.mrb[0].mxu0
        %v588 = vadd.f32 %v489, %v587
        %v589 = vpop.f32.mrb[0].mxu0
        %590 = vmatprep.mubr.bf16.mxu0 0
        %591 = vmatmul.mubr.bf16.gmra.mrb[0].mxu0 %v508
        %v592 = vpop.f32.mrb[0].mxu0
        %v593 = vadd.f32 %v489, %v592
        %v594 = vpop.f32.mrb[0].mxu0
        %v595 = vpop.f32.mrb[0].mxu0
        %v596 = vadd.f32 %v489, %v595
        %v597 = vpop.f32.mrb[0].mxu0
        %598 = vmatprep.mubr.bf16.mxu0 0
        %599 = vmatmul.mubr.bf16.gmra.mrb[0].mxu0 %v511
        %v600 = vpop.f32.mrb[0].mxu0
        %v601 = vadd.f32 %v489, %v600
        %v602 = vpop.f32.mrb[0].mxu0
        %v603 = vpop.f32.mrb[0].mxu0
        %v604 = vadd.f32 %v489, %v603
        %v605 = vpop.f32.mrb[0].mxu0
        %606 = vmatprep.mubr.bf16.mxu0 0
        %607 = vmatmul.mubr.bf16.gmra.mrb[0].mxu0 %v514
        %v608 = vpop.f32.mrb[0].mxu0
        %v609 = vadd.f32 %v489, %v608
        %v610 = vpop.f32.mrb[0].mxu0
        %v611 = vpop.f32.mrb[0].mxu0
        %v612 = vadd.f32 %v489, %v611
        %v613 = vpop.f32.mrb[0].mxu0
        %614 = vmatprep.mubr.bf16.mxu0 0
        %615 = vmatmul.mubr.bf16.gmra.mrb[0].mxu0 %v517
        %v616 = vpop.f32.mrb[0].mxu0
        %v617 = vadd.f32 %v489, %v616
        %v618 = vpop.f32.mrb[0].mxu0
        %v619 = vpop.f32.mrb[0].mxu0
        %v620 = vadd.f32 %v489, %v619
        %v621 = vpop.f32.mrb[0].mxu0
        %622 = vmatprep.mubr.bf16.mxu0 0
        %623 = vmatmul.mubr.bf16.gmra.mrb[0].mxu0 %v520
        %v624 = vpop.f32.mrb[0].mxu0
        %v625 = vadd.f32 %v489, %v624
        %v626 = vpop.f32.mrb[0].mxu0
        %v627 = vpop.f32.mrb[0].mxu0
        %v628 = vadd.f32 %v489, %v627
        %v629 = vpop.f32.mrb[0].mxu0
        %630 = vmatprep.mubr.bf16.mxu0 0
        %631 = vmatmul.mubr.bf16.gmra.mrb[0].mxu0 %v523
        %v632 = vpop.f32.mrb[0].mxu0
        %v633 = vadd.f32 %v489, %v632
        %v634 = vpop.f32.mrb[0].mxu0
        %v635 = vpop.f32.mrb[0].mxu0
        %v636 = vadd.f32 %v489, %v635
        %v637 = vpop.f32.mrb[0].mxu0
        %638 = vmatprep.mubr.bf16.mxu0 0
        %639 = vmatmul.mubr.bf16.gmra.mrb[0].mxu0 %v526
        %v640 = vpop.f32.mrb[0].mxu0
        %v641 = vadd.f32 %v489, %v640
        %v642 = vpop.f32.mrb[0].mxu0
        %v643 = vpop.f32.mrb[0].mxu0
        %v644 = vadd.f32 %v489, %v643
        %v645 = vpop.f32.mrb[0].mxu0
        %646 = vmatprep.mubr.bf16.mxu0 0
        %647 = vmatmul.mubr.bf16.gmra.mrb[0].mxu0 %v529
        %v648 = vpop.f32.mrb[0].mxu0
        %v649 = vadd.f32 %v489, %v648
        %v650 = vpop.f32.mrb[0].mxu0
        %v651 = vpop.f32.mrb[0].mxu0
        %v652 = vadd.f32 %v489, %v651
        %v653 = vpop.f32.mrb[0].mxu0
        %654 = vmatprep.mubr.bf16.mxu0 0
        %655 = vmatmul.mubr.bf16.gmra.mrb[0].mxu0 %v532
        %v656 = vpop.f32.mrb[0].mxu0
        %v657 = vadd.f32 %v489, %v656
        %v658 = vpop.f32.mrb[0].mxu0
        %v659 = vpop.f32.mrb[0].mxu0
        %v660 = vadd.f32 %v489, %v659
        %v661 = vpop.f32.mrb[0].mxu0
        %662 = vdwg.mxu0
        %v663 = vlaneseq
        %v664 = vand.u32 %v663, 127
        %v665 = vmul.f32 %v569, 0.5
        %v666 = vmul.f32 %v572, 0.5
        %v667 = vmul.f32 %v577, 0.5
        %v668 = vmul.f32 %v580, 0.5
        %v669 = vmul.f32 %v585, 0.5
        %v670 = vmul.f32 %v588, 0.5
        %v671 = vmul.f32 %v593, 0.5
        %v672 = vmul.f32 %v596, 0.5
        %v673 = vmul.f32 %v601, 0.5
        %v674 = vmul.f32 %v604, 0.5
        %v675 = vmul.f32 %v609, 0.5
        %v676 = vmul.f32 %v612, 0.5
        %v677 = vmul.f32 %v617, 0.5
        %v678 = vmul.f32 %v620, 0.5
        %v679 = vmul.f32 %v625, 0.5
        %v680 = vmul.f32 %v628, 0.5
        %v681 = vmul.f32 %v633, 0.5
        %v682 = vmul.f32 %v636, 0.5
        %v683 = vmul.f32 %v641, 0.5
        %v684 = vmul.f32 %v644, 0.5
        %v685 = vmul.f32 %v649, 0.5
        %v686 = vmul.f32 %v652, 0.5
        %v687 = vmul.f32 %v657, 0.5
        %v688 = vmul.f32 %v660, 0.5
        %v689 = vtanh.pop %v665
        %v690 = vtanh.pop %v666
        %v691 = vtanh.pop %v667
        %v692 = vtanh.pop %v668
        %v693 = vtanh.pop %v669
        %v694 = vtanh.pop %v670
        %v695 = vtanh.pop %v671
        %v696 = vtanh.pop %v672
        %v697 = vtanh.pop %v673
        %v698 = vtanh.pop %v674
        %v699 = vtanh.pop %v675
        %v700 = vtanh.pop %v676
        %v701 = vtanh.pop %v677
        %v702 = vtanh.pop %v678
        %v703 = vtanh.pop %v679
        %v704 = vtanh.pop %v680
        %v705 = vtanh.pop %v681
        %v706 = vtanh.pop %v682
        %v707 = vtanh.pop %v683
        %v708 = vtanh.pop %v684
        %v709 = vtanh.pop %v685
        %v710 = vtanh.pop %v686
        %v711 = vtanh.pop %v687
        %v712 = vtanh.pop %v688
        %v713 = vadd.f32 %v689, 1.0
        %v714 = vadd.f32 %v690, 1.0
        %v715 = vadd.f32 %v691, 1.0
        %v716 = vadd.f32 %v692, 1.0
        %v717 = vadd.f32 %v693, 1.0
        %v718 = vadd.f32 %v694, 1.0
        %v719 = vadd.f32 %v695, 1.0
        %v720 = vadd.f32 %v696, 1.0
        %v721 = vadd.f32 %v697, 1.0
        %v722 = vadd.f32 %v698, 1.0
        %v723 = vadd.f32 %v699, 1.0
        %v724 = vadd.f32 %v700, 1.0
        %v725 = vadd.f32 %v701, 1.0
        %v726 = vadd.f32 %v702, 1.0
        %v727 = vadd.f32 %v703, 1.0
        %v728 = vadd.f32 %v704, 1.0
        %v729 = vadd.f32 %v705, 1.0
        %v730 = vadd.f32 %v706, 1.0
        %v731 = vadd.f32 %v707, 1.0
        %v732 = vadd.f32 %v708, 1.0
        %v733 = vadd.f32 %v709, 1.0
        %v734 = vadd.f32 %v710, 1.0
        %v735 = vadd.f32 %v711, 1.0
        %v736 = vadd.f32 %v712, 1.0
        %v737 = vmul.f32 %v713, 0.5
        %v738 = vmul.f32 %v714, 0.5
        %v739 = vmul.f32 %v715, 0.5
        %v740 = vmul.f32 %v716, 0.5
        %v741 = vmul.f32 %v717, 0.5
        %v742 = vmul.f32 %v718, 0.5
        %v743 = vmul.f32 %v719, 0.5
        %v744 = vmul.f32 %v720, 0.5
        %v745 = vmul.f32 %v721, 0.5
        %v746 = vmul.f32 %v722, 0.5
        %v747 = vmul.f32 %v723, 0.5
        %v748 = vmul.f32 %v724, 0.5
        %v749 = vmul.f32 %v725, 0.5
        %v750 = vmul.f32 %v726, 0.5
        %v751 = vmul.f32 %v727, 0.5
        %v752 = vmul.f32 %v728, 0.5
        %v753 = vmul.f32 %v729, 0.5
        %v754 = vmul.f32 %v730, 0.5
        %v755 = vmul.f32 %v731, 0.5
        %v756 = vmul.f32 %v732, 0.5
        %v757 = vmul.f32 %v733, 0.5
        %v758 = vmul.f32 %v734, 0.5
        %v759 = vmul.f32 %v735, 0.5
        %v760 = vmul.f32 %v736, 0.5
        %vm761 = vcmp.lt.s32.totalorder %v664, 32
        %v762 = vmax.f32 %v569, 0.0
        %v763 = vmax.f32 %v572, 0.0
        %v764 = vmax.f32 %v577, 0.0
        %v765 = vmax.f32 %v580, 0.0
        %v766 = vmax.f32 %v585, 0.0
        %v767 = vmax.f32 %v588, 0.0
        %v768 = vmax.f32 %v593, 0.0
        %v769 = vmax.f32 %v596, 0.0
        %v770 = vmax.f32 %v601, 0.0
        %v771 = vmax.f32 %v604, 0.0
        %v772 = vmax.f32 %v609, 0.0
        %v773 = vmax.f32 %v612, 0.0
        %v774 = vmax.f32 %v617, 0.0
        %v775 = vmax.f32 %v620, 0.0
        %v776 = vmax.f32 %v625, 0.0
        %v777 = vmax.f32 %v628, 0.0
        %v778 = vmax.f32 %v633, 0.0
        %v779 = vmax.f32 %v636, 0.0
        %v780 = vmax.f32 %v641, 0.0
        %v781 = vmax.f32 %v644, 0.0
        %v782 = vmax.f32 %v649, 0.0
        %v783 = vmax.f32 %v652, 0.0
        %v784 = vmax.f32 %v657, 0.0
        %v785 = vmax.f32 %v660, 0.0
        %v786 = vsel %vm761, 1, 0
        %vm787 = vcmp.eq.s32.totalorder %v786, 1
        %v788 = vsel %vm787, %v762, %v737
        %v789 = vsel %vm787, %v763, %v738
        %v790 = vsel %vm787, %v764, %v739
        %v791 = vsel %vm787, %v765, %v740
        %v792 = vsel %vm787, %v766, %v741
        %v793 = vsel %vm787, %v767, %v742
        %v794 = vsel %vm787, %v768, %v743
        %v795 = vsel %vm787, %v769, %v744
        %v796 = vsel %vm787, %v770, %v745
        %v797 = vsel %vm787, %v771, %v746
        %v798 = vsel %vm787, %v772, %v747
        %v799 = vsel %vm787, %v773, %v748
        %v800 = vsel %vm787, %v774, %v749
        %v801 = vsel %vm787, %v775, %v750
        %v802 = vsel %vm787, %v776, %v751
        %v803 = vsel %vm787, %v777, %v752
        %v804 = vsel %vm787, %v778, %v753
        %v805 = vsel %vm787, %v779, %v754
        %v806 = vsel %vm787, %v780, %v755
        %v807 = vsel %vm787, %v781, %v756
        %v808 = vsel %vm787, %v782, %v757
        %v809 = vsel %vm787, %v783, %v758
        %v810 = vsel %vm787, %v784, %v759
        %v811 = vsel %vm787, %v785, %v760
        %v812 = vpack.c.bf16 %v789, %v788
        %v813 = vpack.c.bf16 %v791, %v790
        %v814 = vpack.c.bf16 %v793, %v792
        %v815 = vpack.c.bf16 %v795, %v794
        %v816 = vpack.c.bf16 %v797, %v796
        %v817 = vpack.c.bf16 %v799, %v798
        %v818 = vpack.c.bf16 %v801, %v800
        %v819 = vpack.c.bf16 %v803, %v802
        %v820 = vpack.c.bf16 %v805, %v804
        %v821 = vpack.c.bf16 %v807, %v806
        %v822 = vpack.c.bf16 %v809, %v808
        %v823 = vpack.c.bf16 %v811, %v810
        %v824 = vld [vmem:[%s3] sm:$0xf]
        %v825 = vld [vmem:[%s3 + $0x4] sm:$0xf]
        %v826 = vld [vmem:[%s3 + $0x8] sm:$0xf]
        %v827 = vld [vmem:[%s3 + $0xc] sm:$0xf]
        %v828 = vld [vmem:[%s3 + $0x10] sm:$0xf]
        %v829 = vld [vmem:[%s3 + $0x14] sm:$0xf]
        %v830 = vld [vmem:[%s3 + $0x18] sm:$0xf]
        %v831 = vld [vmem:[%s3 + $0x1c] sm:$0xf]
        %v832 = vld [vmem:[%s4] sm:$0x1]
        %v834 = vlaneseq
        %v835 = vshrl.u32 %v834, 7
        %v836 = vsub.s32 0, %v835
        %v837 = vrot.slane %v832, %v836
        %v847 = vunpack.c.l.b16 %v824
        %v848 = vunpack.c.l.b16 %v825
        %v849 = vunpack.c.l.b16 %v826
        %v850 = vunpack.c.l.b16 %v827
        %v851 = vunpack.c.l.b16 %v828
        %v852 = vunpack.c.l.b16 %v829
        %v853 = vunpack.c.l.b16 %v830
        %v854 = vunpack.c.l.b16 %v831
        %v855 = vpack.c.b16 %v848, %v847
        %v856 = vpack.c.b16 %v850, %v849
        %v857 = vpack.c.b16 %v852, %v851
        %v858 = vpack.c.b16 %v854, %v853
        %vm863 = vcmask 523264
        %v865 = vsel %vm863, %v812, 0
        %v868 = vsel %vm863, %v813, 0
        %v871 = vsel %vm863, %v814, 0
        %v874 = vsel %vm863, %v815, 0
        %v877 = vsel %vm863, %v816, 0
        %v880 = vsel %vm863, %v817, 0
        %v883 = vsel %vm863, %v818, 0
        %v886 = vsel %vm863, %v819, 0
        %v889 = vsel %vm863, %v820, 0
        %v892 = vsel %vm863, %v821, 0
        %v895 = vsel %vm863, %v822, 0
        %v898 = vsel %vm863, %v823, 0
        %900 = vmatprep.subr.bf16.mxu0 0
        %901 = vmatpush1.bf16.msra.mxu0 %v855
        %902 = vmatprep.subr.bf16.mxu0 0
        %903 = vmatpush1.bf16.msra.mxu0 %v856
        %904 = vmatprep.subr.bf16.mxu0 0
        %905 = vmatpush1.bf16.msra.mxu0 %v857
        %906 = vmatprep.subr.bf16.mxu0 0
        %907 = vmatpush1.bf16.msra.mxu0 %v858
        %908 = vmatprep.subr.bf16.mxu0 0
        %909 = vmatpush1.bf16.msra.mxu0 0
        %910 = vmatprep.subr.bf16.mxu0 0
        %911 = vmatpush1.bf16.msra.mxu0 0
        %912 = vmatprep.subr.bf16.mxu0 0
        %913 = vmatpush1.bf16.msra.mxu0 0
        %914 = vmatprep.subr.bf16.mxu0 0
        %915 = vmatpush1.bf16.msra.mxu0 0
        %916 = vmatprep.subr.bf16.mxu0 0
        %917 = vmatpush1.bf16.msra.mxu0 0
        %918 = vmatprep.subr.bf16.mxu0 0
        %919 = vmatpush1.bf16.msra.mxu0 0
        %920 = vmatprep.subr.bf16.mxu0 0
        %921 = vmatpush1.bf16.msra.mxu0 0
        %922 = vmatprep.subr.bf16.mxu0 0
        %923 = vmatpush1.bf16.msra.mxu0 0
        %924 = vmatprep.subr.bf16.mxu0 0
        %925 = vmatpush1.bf16.msra.mxu0 0
        %926 = vmatprep.subr.bf16.mxu0 0
        %927 = vmatpush1.bf16.msra.mxu0 0
        %928 = vmatprep.subr.bf16.mxu0 0
        %929 = vmatpush1.bf16.msra.mxu0 0
        %930 = vmatprep.subr.bf16.mxu0 0
        %931 = vmatpush1.bf16.msra.mxu0 0
        %932 = vmatprep.mubr.bf16.mxu0 0
        %933 = vmatmul.mubr.bf16.gmra.mrb[0].mxu0 %v865
        %v934 = vpop.f32.mrb[0].mxu0
        %v935 = vadd.f32 %v837, %v934
        %v936 = vpop.f32.mrb[0].mxu0
        %v937 = vpop.f32.mrb[0].mxu0
        %v938 = vadd.f32 %v837, %v937
        %v939 = vpop.f32.mrb[0].mxu0
        %940 = vmatprep.mubr.bf16.mxu0 0
        %941 = vmatmul.mubr.bf16.gmra.mrb[0].mxu0 %v868
        %v942 = vpop.f32.mrb[0].mxu0
        %v943 = vadd.f32 %v837, %v942
        %v944 = vpop.f32.mrb[0].mxu0
        %v945 = vpop.f32.mrb[0].mxu0
        %v946 = vadd.f32 %v837, %v945
        %v947 = vpop.f32.mrb[0].mxu0
        %948 = vmatprep.mubr.bf16.mxu0 0
        %949 = vmatmul.mubr.bf16.gmra.mrb[0].mxu0 %v871
        %v950 = vpop.f32.mrb[0].mxu0
        %v951 = vadd.f32 %v837, %v950
        %v952 = vpop.f32.mrb[0].mxu0
        %v953 = vpop.f32.mrb[0].mxu0
        %v954 = vadd.f32 %v837, %v953
        %v955 = vpop.f32.mrb[0].mxu0
        %956 = vmatprep.mubr.bf16.mxu0 0
        %957 = vmatmul.mubr.bf16.gmra.mrb[0].mxu0 %v874
        %v958 = vpop.f32.mrb[0].mxu0
        %v959 = vadd.f32 %v837, %v958
        %v960 = vpop.f32.mrb[0].mxu0
        %v961 = vpop.f32.mrb[0].mxu0
        %v962 = vadd.f32 %v837, %v961
        %v963 = vpop.f32.mrb[0].mxu0
        %964 = vmatprep.mubr.bf16.mxu0 0
        %965 = vmatmul.mubr.bf16.gmra.mrb[0].mxu0 %v877
        %v966 = vpop.f32.mrb[0].mxu0
        %v967 = vadd.f32 %v837, %v966
        %v968 = vpop.f32.mrb[0].mxu0
        %v969 = vpop.f32.mrb[0].mxu0
        %v970 = vadd.f32 %v837, %v969
        %v971 = vpop.f32.mrb[0].mxu0
        %972 = vmatprep.mubr.bf16.mxu0 0
        %973 = vmatmul.mubr.bf16.gmra.mrb[0].mxu0 %v880
        %v974 = vpop.f32.mrb[0].mxu0
        %v975 = vadd.f32 %v837, %v974
        %v976 = vpop.f32.mrb[0].mxu0
        %v977 = vpop.f32.mrb[0].mxu0
        %v978 = vadd.f32 %v837, %v977
        %v979 = vpop.f32.mrb[0].mxu0
        %980 = vmatprep.mubr.bf16.mxu0 0
        %981 = vmatmul.mubr.bf16.gmra.mrb[0].mxu0 %v883
        %v982 = vpop.f32.mrb[0].mxu0
        %v983 = vadd.f32 %v837, %v982
        %v984 = vpop.f32.mrb[0].mxu0
        %v985 = vpop.f32.mrb[0].mxu0
        %v986 = vadd.f32 %v837, %v985
        %v987 = vpop.f32.mrb[0].mxu0
        %988 = vmatprep.mubr.bf16.mxu0 0
        %989 = vmatmul.mubr.bf16.gmra.mrb[0].mxu0 %v886
        %v990 = vpop.f32.mrb[0].mxu0
        %v991 = vadd.f32 %v837, %v990
        %v992 = vpop.f32.mrb[0].mxu0
        %v993 = vpop.f32.mrb[0].mxu0
        %v994 = vadd.f32 %v837, %v993
        %v995 = vpop.f32.mrb[0].mxu0
        %996 = vmatprep.mubr.bf16.mxu0 0
        %997 = vmatmul.mubr.bf16.gmra.mrb[0].mxu0 %v889
        %v998 = vpop.f32.mrb[0].mxu0
        %v999 = vadd.f32 %v837, %v998
        %v1000 = vpop.f32.mrb[0].mxu0
        %v1001 = vpop.f32.mrb[0].mxu0
        %v1002 = vadd.f32 %v837, %v1001
        %v1003 = vpop.f32.mrb[0].mxu0
        %1004 = vmatprep.mubr.bf16.mxu0 0
        %1005 = vmatmul.mubr.bf16.gmra.mrb[0].mxu0 %v892
        %v1006 = vpop.f32.mrb[0].mxu0
        %v1007 = vadd.f32 %v837, %v1006
        %v1008 = vpop.f32.mrb[0].mxu0
        %v1009 = vpop.f32.mrb[0].mxu0
        %v1010 = vadd.f32 %v837, %v1009
        %v1011 = vpop.f32.mrb[0].mxu0
        %1012 = vmatprep.mubr.bf16.mxu0 0
        %1013 = vmatmul.mubr.bf16.gmra.mrb[0].mxu0 %v895
        %v1014 = vpop.f32.mrb[0].mxu0
        %v1015 = vadd.f32 %v837, %v1014
        %v1016 = vpop.f32.mrb[0].mxu0
        %v1017 = vpop.f32.mrb[0].mxu0
        %v1018 = vadd.f32 %v837, %v1017
        %v1019 = vpop.f32.mrb[0].mxu0
        %1020 = vmatprep.mubr.bf16.mxu0 0
        %1021 = vmatmul.mubr.bf16.gmra.mrb[0].mxu0 %v898
        %v1022 = vpop.f32.mrb[0].mxu0
        %v1023 = vadd.f32 %v837, %v1022
        %v1024 = vpop.f32.mrb[0].mxu0
        %v1025 = vpop.f32.mrb[0].mxu0
        %v1026 = vadd.f32 %v837, %v1025
        %v1027 = vpop.f32.mrb[0].mxu0
        %1028 = vdwg.mxu0
        %1053 = vrot.lane.b32.xlu0 %v935, 112
        %v1054 = vpop.permute.xlu0 %1053
        %1055 = vrot.lane.b32.xlu0 %v938, 112
        %v1056 = vpop.permute.xlu0 %1055
        %1057 = vrot.lane.b32.xlu0 %v943, 112
        %v1058 = vpop.permute.xlu0 %1057
        %1059 = vrot.lane.b32.xlu0 %v946, 112
        %v1060 = vpop.permute.xlu0 %1059
        %1061 = vrot.lane.b32.xlu0 %v951, 112
        %v1062 = vpop.permute.xlu0 %1061
        %1063 = vrot.lane.b32.xlu0 %v954, 112
        %v1064 = vpop.permute.xlu0 %1063
        %1065 = vrot.lane.b32.xlu0 %v959, 112
        %v1066 = vpop.permute.xlu0 %1065
        %1067 = vrot.lane.b32.xlu0 %v962, 112
        %v1068 = vpop.permute.xlu0 %1067
        %1069 = vrot.lane.b32.xlu0 %v967, 112
        %v1070 = vpop.permute.xlu0 %1069
        %1071 = vrot.lane.b32.xlu0 %v970, 112
        %v1072 = vpop.permute.xlu0 %1071
        %1073 = vrot.lane.b32.xlu0 %v975, 112
        %v1074 = vpop.permute.xlu0 %1073
        %1075 = vrot.lane.b32.xlu0 %v978, 112
        %v1076 = vpop.permute.xlu0 %1075
        %1077 = vrot.lane.b32.xlu0 %v983, 112
        %v1078 = vpop.permute.xlu0 %1077
        %1079 = vrot.lane.b32.xlu0 %v986, 112
        %v1080 = vpop.permute.xlu0 %1079
        %1081 = vrot.lane.b32.xlu0 %v991, 112
        %v1082 = vpop.permute.xlu0 %1081
        %1083 = vrot.lane.b32.xlu0 %v994, 112
        %v1084 = vpop.permute.xlu0 %1083
        %1085 = vrot.lane.b32.xlu0 %v999, 112
        %v1086 = vpop.permute.xlu0 %1085
        %1087 = vrot.lane.b32.xlu0 %v1002, 112
        %v1088 = vpop.permute.xlu0 %1087
        %1089 = vrot.lane.b32.xlu0 %v1007, 112
        %v1090 = vpop.permute.xlu0 %1089
        %1091 = vrot.lane.b32.xlu0 %v1010, 112
        %v1092 = vpop.permute.xlu0 %1091
        %1093 = vrot.lane.b32.xlu0 %v1015, 112
        %v1094 = vpop.permute.xlu0 %1093
        %1095 = vrot.lane.b32.xlu0 %v1018, 112
        %v1096 = vpop.permute.xlu0 %1095
        %1097 = vrot.lane.b32.xlu0 %v1023, 112
        %v1098 = vpop.permute.xlu0 %1097
        %1099 = vrot.lane.b32.xlu0 %v1026, 112
        %v1100 = vpop.permute.xlu0 %1099
        %v1125 = vmul.f32 %v935, %v1054
        %v1126 = vmul.f32 %v938, %v1056
        %v1127 = vmul.f32 %v943, %v1058
        %v1128 = vmul.f32 %v946, %v1060
        %v1129 = vmul.f32 %v951, %v1062
        %v1130 = vmul.f32 %v954, %v1064
        %v1131 = vmul.f32 %v959, %v1066
        %v1132 = vmul.f32 %v962, %v1068
        %v1133 = vmul.f32 %v967, %v1070
        %v1134 = vmul.f32 %v970, %v1072
        %v1135 = vmul.f32 %v975, %v1074
        %v1136 = vmul.f32 %v978, %v1076
        %v1137 = vmul.f32 %v983, %v1078
        %v1138 = vmul.f32 %v986, %v1080
        %v1139 = vmul.f32 %v991, %v1082
        %v1140 = vmul.f32 %v994, %v1084
        %v1141 = vmul.f32 %v999, %v1086
        %v1142 = vmul.f32 %v1002, %v1088
        %v1143 = vmul.f32 %v1007, %v1090
        %v1144 = vmul.f32 %v1010, %v1092
        %v1145 = vmul.f32 %v1015, %v1094
        %v1146 = vmul.f32 %v1018, %v1096
        %v1147 = vmul.f32 %v1023, %v1098
        %v1148 = vmul.f32 %v1026, %v1100
        %v1149 = vpack.c.bf16 %v1126, %v1125
        %v1150 = vpack.c.bf16 %v1128, %v1127
        %v1151 = vpack.c.bf16 %v1130, %v1129
        %v1152 = vpack.c.bf16 %v1132, %v1131
        %v1153 = vpack.c.bf16 %v1134, %v1133
        %v1154 = vpack.c.bf16 %v1136, %v1135
        %v1155 = vpack.c.bf16 %v1138, %v1137
        %v1156 = vpack.c.bf16 %v1140, %v1139
        %v1157 = vpack.c.bf16 %v1142, %v1141
        %v1158 = vpack.c.bf16 %v1144, %v1143
        %v1159 = vpack.c.bf16 %v1146, %v1145
        %v1160 = vpack.c.bf16 %v1148, %v1147
        %v1161 = vld [vmem:[%s5] sm:$0xf]
        %v1162 = vld [vmem:[%s5 + $0x4] sm:$0xf]
        %v1163 = vld [vmem:[%s6] sm:$0x1]
        %v1165 = vlaneseq
        %v1166 = vshrl.u32 %v1165, 7
        %v1167 = vsub.s32 0, %v1166
        %v1168 = vrot.slane %v1163, %v1167
        %v1172 = vunpack.c.l.b16 %v1161
        %v1173 = vunpack.c.l.b16 %v1162
        %v1174 = vpack.c.b16 %v1173, %v1172
        %v1177 = vsel %vm497, %v1149, 0
        %v1180 = vsel %vm497, %v1150, 0
        %v1183 = vsel %vm497, %v1151, 0
        %v1186 = vsel %vm497, %v1152, 0
        %v1189 = vsel %vm497, %v1153, 0
        %v1192 = vsel %vm497, %v1154, 0
        %v1195 = vsel %vm497, %v1155, 0
        %v1198 = vsel %vm497, %v1156, 0
        %v1201 = vsel %vm497, %v1157, 0
        %v1204 = vsel %vm497, %v1158, 0
        %v1207 = vsel %vm497, %v1159, 0
        %v1210 = vsel %vm497, %v1160, 0
        %1212 = vmatprep.subr.bf16.mxu0 0
        %1213 = vmatpush1.bf16.msra.mxu0 %v1174
        %1214 = vmatprep.subr.bf16.mxu0 0
        %1215 = vmatpush1.bf16.msra.mxu0 0
        %1216 = vmatprep.subr.bf16.mxu0 0
        %1217 = vmatpush1.bf16.msra.mxu0 0
        %1218 = vmatprep.subr.bf16.mxu0 0
        %1219 = vmatpush1.bf16.msra.mxu0 0
        %1220 = vmatprep.subr.bf16.mxu0 0
        %1221 = vmatpush1.bf16.msra.mxu0 0
        %1222 = vmatprep.subr.bf16.mxu0 0
        %1223 = vmatpush1.bf16.msra.mxu0 0
        %1224 = vmatprep.subr.bf16.mxu0 0
        %1225 = vmatpush1.bf16.msra.mxu0 0
        %1226 = vmatprep.subr.bf16.mxu0 0
        %1227 = vmatpush1.bf16.msra.mxu0 0
        %1228 = vmatprep.subr.bf16.mxu0 0
        %1229 = vmatpush1.bf16.msra.mxu0 0
        %1230 = vmatprep.subr.bf16.mxu0 0
        %1231 = vmatpush1.bf16.msra.mxu0 0
        %1232 = vmatprep.subr.bf16.mxu0 0
        %1233 = vmatpush1.bf16.msra.mxu0 0
        %1234 = vmatprep.subr.bf16.mxu0 0
        %1235 = vmatpush1.bf16.msra.mxu0 0
        %1236 = vmatprep.subr.bf16.mxu0 0
        %1237 = vmatpush1.bf16.msra.mxu0 0
        %1238 = vmatprep.subr.bf16.mxu0 0
        %1239 = vmatpush1.bf16.msra.mxu0 0
        %1240 = vmatprep.subr.bf16.mxu0 0
        %1241 = vmatpush1.bf16.msra.mxu0 0
        %1242 = vmatprep.subr.bf16.mxu0 0
        %1243 = vmatpush1.bf16.msra.mxu0 0
        %1244 = vmatprep.mubr.bf16.mxu0 0
        %1245 = vmatmul.mubr.bf16.gmra.mrb[0].mxu0 %v1177
        %v1246 = vpop.f32.mrb[0].mxu0
        %v1247 = vadd.f32 %v1168, %v1246
        %v1248 = vpop.f32.mrb[0].mxu0
        %v1249 = vpop.f32.mrb[0].mxu0
        %v1250 = vadd.f32 %v1168, %v1249
        %v1251 = vpop.f32.mrb[0].mxu0
        %1252 = vmatprep.mubr.bf16.mxu0 0
        %1253 = vmatmul.mubr.bf16.gmra.mrb[0].mxu0 %v1180
        %v1254 = vpop.f32.mrb[0].mxu0
        %v1255 = vadd.f32 %v1168, %v1254
        %v1256 = vpop.f32.mrb[0].mxu0
        %v1257 = vpop.f32.mrb[0].mxu0
        %v1258 = vadd.f32 %v1168, %v1257
        %v1259 = vpop.f32.mrb[0].mxu0
        %1260 = vmatprep.mubr.bf16.mxu0 0
        %1261 = vmatmul.mubr.bf16.gmra.mrb[0].mxu0 %v1183
        %v1262 = vpop.f32.mrb[0].mxu0
        %v1263 = vadd.f32 %v1168, %v1262
        %v1264 = vpop.f32.mrb[0].mxu0
        %v1265 = vpop.f32.mrb[0].mxu0
        %v1266 = vadd.f32 %v1168, %v1265
        %v1267 = vpop.f32.mrb[0].mxu0
        %1268 = vmatprep.mubr.bf16.mxu0 0
        %1269 = vmatmul.mubr.bf16.gmra.mrb[0].mxu0 %v1186
        %v1270 = vpop.f32.mrb[0].mxu0
        %v1271 = vadd.f32 %v1168, %v1270
        %v1272 = vpop.f32.mrb[0].mxu0
        %v1273 = vpop.f32.mrb[0].mxu0
        %v1274 = vadd.f32 %v1168, %v1273
        %v1275 = vpop.f32.mrb[0].mxu0
        %1276 = vmatprep.mubr.bf16.mxu0 0
        %1277 = vmatmul.mubr.bf16.gmra.mrb[0].mxu0 %v1189
        %v1278 = vpop.f32.mrb[0].mxu0
        %v1279 = vadd.f32 %v1168, %v1278
        %v1280 = vpop.f32.mrb[0].mxu0
        %v1281 = vpop.f32.mrb[0].mxu0
        %v1282 = vadd.f32 %v1168, %v1281
        %v1283 = vpop.f32.mrb[0].mxu0
        %1284 = vmatprep.mubr.bf16.mxu0 0
        %1285 = vmatmul.mubr.bf16.gmra.mrb[0].mxu0 %v1192
        %v1286 = vpop.f32.mrb[0].mxu0
        %v1287 = vadd.f32 %v1168, %v1286
        %v1288 = vpop.f32.mrb[0].mxu0
        %v1289 = vpop.f32.mrb[0].mxu0
        %v1290 = vadd.f32 %v1168, %v1289
        %v1291 = vpop.f32.mrb[0].mxu0
        %1292 = vmatprep.mubr.bf16.mxu0 0
        %1293 = vmatmul.mubr.bf16.gmra.mrb[0].mxu0 %v1195
        %v1294 = vpop.f32.mrb[0].mxu0
        %v1295 = vadd.f32 %v1168, %v1294
        %v1296 = vpop.f32.mrb[0].mxu0
        %v1297 = vpop.f32.mrb[0].mxu0
        %v1298 = vadd.f32 %v1168, %v1297
        %v1299 = vpop.f32.mrb[0].mxu0
        %1300 = vmatprep.mubr.bf16.mxu0 0
        %1301 = vmatmul.mubr.bf16.gmra.mrb[0].mxu0 %v1198
        %v1302 = vpop.f32.mrb[0].mxu0
        %v1303 = vadd.f32 %v1168, %v1302
        %v1304 = vpop.f32.mrb[0].mxu0
        %v1305 = vpop.f32.mrb[0].mxu0
        %v1306 = vadd.f32 %v1168, %v1305
        %v1307 = vpop.f32.mrb[0].mxu0
        %1308 = vmatprep.mubr.bf16.mxu0 0
        %1309 = vmatmul.mubr.bf16.gmra.mrb[0].mxu0 %v1201
        %v1310 = vpop.f32.mrb[0].mxu0
        %v1311 = vadd.f32 %v1168, %v1310
        %v1312 = vpop.f32.mrb[0].mxu0
        %v1313 = vpop.f32.mrb[0].mxu0
        %v1314 = vadd.f32 %v1168, %v1313
        %v1315 = vpop.f32.mrb[0].mxu0
        %1316 = vmatprep.mubr.bf16.mxu0 0
        %1317 = vmatmul.mubr.bf16.gmra.mrb[0].mxu0 %v1204
        %v1318 = vpop.f32.mrb[0].mxu0
        %v1319 = vadd.f32 %v1168, %v1318
        %v1320 = vpop.f32.mrb[0].mxu0
        %v1321 = vpop.f32.mrb[0].mxu0
        %v1322 = vadd.f32 %v1168, %v1321
        %v1323 = vpop.f32.mrb[0].mxu0
        %1324 = vmatprep.mubr.bf16.mxu0 0
        %1325 = vmatmul.mubr.bf16.gmra.mrb[0].mxu0 %v1207
        %v1326 = vpop.f32.mrb[0].mxu0
        %v1327 = vadd.f32 %v1168, %v1326
        %v1328 = vpop.f32.mrb[0].mxu0
        %v1329 = vpop.f32.mrb[0].mxu0
        %v1330 = vadd.f32 %v1168, %v1329
        %v1331 = vpop.f32.mrb[0].mxu0
        %1332 = vmatprep.mubr.bf16.mxu0 0
        %1333 = vmatmul.mubr.bf16.gmra.mrb[0].mxu0 %v1210
        %v1334 = vpop.f32.mrb[0].mxu0
        %v1335 = vadd.f32 %v1168, %v1334
        %v1336 = vpop.f32.mrb[0].mxu0
        %v1337 = vpop.f32.mrb[0].mxu0
        %v1338 = vadd.f32 %v1168, %v1337
        %v1339 = vpop.f32.mrb[0].mxu0
        %1340 = vdwg.mxu0
        %v1341 = vmax.f32 %v1247, 0.0
        %v1342 = vmax.f32 %v1250, 0.0
        %v1343 = vmax.f32 %v1255, 0.0
        %v1344 = vmax.f32 %v1258, 0.0
        %v1345 = vmax.f32 %v1263, 0.0
        %v1346 = vmax.f32 %v1266, 0.0
        %v1347 = vmax.f32 %v1271, 0.0
        %v1348 = vmax.f32 %v1274, 0.0
        %v1349 = vmax.f32 %v1279, 0.0
        %v1350 = vmax.f32 %v1282, 0.0
        %v1351 = vmax.f32 %v1287, 0.0
        %v1352 = vmax.f32 %v1290, 0.0
        %v1353 = vmax.f32 %v1295, 0.0
        %v1354 = vmax.f32 %v1298, 0.0
        %v1355 = vmax.f32 %v1303, 0.0
        %v1356 = vmax.f32 %v1306, 0.0
        %v1357 = vmax.f32 %v1311, 0.0
        %v1358 = vmax.f32 %v1314, 0.0
        %v1359 = vmax.f32 %v1319, 0.0
        %v1360 = vmax.f32 %v1322, 0.0
        %v1361 = vmax.f32 %v1327, 0.0
        %v1362 = vmax.f32 %v1330, 0.0
        %v1363 = vmax.f32 %v1335, 0.0
        %v1364 = vmax.f32 %v1338, 0.0
        %v1365 = vpack.c.bf16 %v1342, %v1341
        %v1366 = vpack.c.bf16 %v1344, %v1343
        %v1367 = vpack.c.bf16 %v1346, %v1345
        %v1368 = vpack.c.bf16 %v1348, %v1347
        %v1369 = vpack.c.bf16 %v1350, %v1349
        %v1370 = vpack.c.bf16 %v1352, %v1351
        %v1371 = vpack.c.bf16 %v1354, %v1353
        %v1372 = vpack.c.bf16 %v1356, %v1355
        %v1373 = vpack.c.bf16 %v1358, %v1357
        %v1374 = vpack.c.bf16 %v1360, %v1359
        %v1375 = vpack.c.bf16 %v1362, %v1361
        %v1376 = vpack.c.bf16 %v1364, %v1363
        %v1377 = vld [vmem:[%s7] sm:$0xf]
        %v1378 = vld [vmem:[%s7 + $0x4] sm:$0xf]
        %v1379 = vld [vmem:[%s7 + $0x8] sm:$0xf]
        %v1380 = vld [vmem:[%s7 + $0xc] sm:$0xf]
        %v1381 = vld [vmem:[%s8] sm:$0x1]
        %v1383 = vlaneseq
        %v1384 = vshrl.u32 %v1383, 7
        %v1385 = vsub.s32 0, %v1384
        %v1386 = vrot.slane %v1381, %v1385
        %v1392 = vunpack.c.l.b16 %v1377
        %v1393 = vunpack.c.l.b16 %v1378
        %v1394 = vunpack.c.l.b16 %v1379
        %v1395 = vunpack.c.l.b16 %v1380
        %v1396 = vpack.c.b16 %v1393, %v1392
        %v1397 = vpack.c.b16 %v1395, %v1394
        %vm1400 = vcmask 261120
        %v1402 = vsel %vm1400, %v1365, 0
        %v1405 = vsel %vm1400, %v1366, 0
        %v1408 = vsel %vm1400, %v1367, 0
        %v1411 = vsel %vm1400, %v1368, 0
        %v1414 = vsel %vm1400, %v1369, 0
        %v1417 = vsel %vm1400, %v1370, 0
        %v1420 = vsel %vm1400, %v1371, 0
        %v1423 = vsel %vm1400, %v1372, 0
        %v1426 = vsel %vm1400, %v1373, 0
        %v1429 = vsel %vm1400, %v1374, 0
        %v1432 = vsel %vm1400, %v1375, 0
        %v1435 = vsel %vm1400, %v1376, 0
        %1437 = vmatprep.subr.bf16.mxu0 0
        %1438 = vmatpush1.bf16.msra.mxu0 %v1396
        %1439 = vmatprep.subr.bf16.mxu0 0
        %1440 = vmatpush1.bf16.msra.mxu0 %v1397
        %1441 = vmatprep.subr.bf16.mxu0 0
        %1442 = vmatpush1.bf16.msra.mxu0 0
        %1443 = vmatprep.subr.bf16.mxu0 0
        %1444 = vmatpush1.bf16.msra.mxu0 0
        %1445 = vmatprep.subr.bf16.mxu0 0
        %1446 = vmatpush1.bf16.msra.mxu0 0
        %1447 = vmatprep.subr.bf16.mxu0 0
        %1448 = vmatpush1.bf16.msra.mxu0 0
        %1449 = vmatprep.subr.bf16.mxu0 0
        %1450 = vmatpush1.bf16.msra.mxu0 0
        %1451 = vmatprep.subr.bf16.mxu0 0
        %1452 = vmatpush1.bf16.msra.mxu0 0
        %1453 = vmatprep.subr.bf16.mxu0 0
        %1454 = vmatpush1.bf16.msra.mxu0 0
        %1455 = vmatprep.subr.bf16.mxu0 0
        %1456 = vmatpush1.bf16.msra.mxu0 0
        %1457 = vmatprep.subr.bf16.mxu0 0
        %1458 = vmatpush1.bf16.msra.mxu0 0
        %1459 = vmatprep.subr.bf16.mxu0 0
        %1460 = vmatpush1.bf16.msra.mxu0 0
        %1461 = vmatprep.subr.bf16.mxu0 0
        %1462 = vmatpush1.bf16.msra.mxu0 0
        %1463 = vmatprep.subr.bf16.mxu0 0
        %1464 = vmatpush1.bf16.msra.mxu0 0
        %1465 = vmatprep.subr.bf16.mxu0 0
        %1466 = vmatpush1.bf16.msra.mxu0 0
        %1467 = vmatprep.subr.bf16.mxu0 0
        %1468 = vmatpush1.bf16.msra.mxu0 0
        %1469 = vmatprep.mubr.bf16.mxu0 0
        %1470 = vmatmul.mubr.bf16.gmra.mrb[0].mxu0 %v1402
        %v1471 = vpop.f32.mrb[0].mxu0
        %v1472 = vadd.f32 %v1386, %v1471
        %v1473 = vpop.f32.mrb[0].mxu0
        %v1474 = vpop.f32.mrb[0].mxu0
        %v1475 = vadd.f32 %v1386, %v1474
        %v1476 = vpop.f32.mrb[0].mxu0
        %1477 = vmatprep.mubr.bf16.mxu0 0
        %1478 = vmatmul.mubr.bf16.gmra.mrb[0].mxu0 %v1405
        %v1479 = vpop.f32.mrb[0].mxu0
        %v1480 = vadd.f32 %v1386, %v1479
        %v1481 = vpop.f32.mrb[0].mxu0
        %v1482 = vpop.f32.mrb[0].mxu0
        %v1483 = vadd.f32 %v1386, %v1482
        %v1484 = vpop.f32.mrb[0].mxu0
        %1485 = vmatprep.mubr.bf16.mxu0 0
        %1486 = vmatmul.mubr.bf16.gmra.mrb[0].mxu0 %v1408
        %v1487 = vpop.f32.mrb[0].mxu0
        %v1488 = vadd.f32 %v1386, %v1487
        %v1489 = vpop.f32.mrb[0].mxu0
        %v1490 = vpop.f32.mrb[0].mxu0
        %v1491 = vadd.f32 %v1386, %v1490
        %v1492 = vpop.f32.mrb[0].mxu0
        %1493 = vmatprep.mubr.bf16.mxu0 0
        %1494 = vmatmul.mubr.bf16.gmra.mrb[0].mxu0 %v1411
        %v1495 = vpop.f32.mrb[0].mxu0
        %v1496 = vadd.f32 %v1386, %v1495
        %v1497 = vpop.f32.mrb[0].mxu0
        %v1498 = vpop.f32.mrb[0].mxu0
        %v1499 = vadd.f32 %v1386, %v1498
        %v1500 = vpop.f32.mrb[0].mxu0
        %1501 = vmatprep.mubr.bf16.mxu0 0
        %1502 = vmatmul.mubr.bf16.gmra.mrb[0].mxu0 %v1414
        %v1503 = vpop.f32.mrb[0].mxu0
        %v1504 = vadd.f32 %v1386, %v1503
        %v1505 = vpop.f32.mrb[0].mxu0
        %v1506 = vpop.f32.mrb[0].mxu0
        %v1507 = vadd.f32 %v1386, %v1506
        %v1508 = vpop.f32.mrb[0].mxu0
        %1509 = vmatprep.mubr.bf16.mxu0 0
        %1510 = vmatmul.mubr.bf16.gmra.mrb[0].mxu0 %v1417
        %v1511 = vpop.f32.mrb[0].mxu0
        %v1512 = vadd.f32 %v1386, %v1511
        %v1513 = vpop.f32.mrb[0].mxu0
        %v1514 = vpop.f32.mrb[0].mxu0
        %v1515 = vadd.f32 %v1386, %v1514
        %v1516 = vpop.f32.mrb[0].mxu0
        %1517 = vmatprep.mubr.bf16.mxu0 0
        %1518 = vmatmul.mubr.bf16.gmra.mrb[0].mxu0 %v1420
        %v1519 = vpop.f32.mrb[0].mxu0
        %v1520 = vadd.f32 %v1386, %v1519
        %v1521 = vpop.f32.mrb[0].mxu0
        %v1522 = vpop.f32.mrb[0].mxu0
        %v1523 = vadd.f32 %v1386, %v1522
        %v1524 = vpop.f32.mrb[0].mxu0
        %1525 = vmatprep.mubr.bf16.mxu0 0
        %1526 = vmatmul.mubr.bf16.gmra.mrb[0].mxu0 %v1423
        %v1527 = vpop.f32.mrb[0].mxu0
        %v1528 = vadd.f32 %v1386, %v1527
        %v1529 = vpop.f32.mrb[0].mxu0
        %v1530 = vpop.f32.mrb[0].mxu0
        %v1531 = vadd.f32 %v1386, %v1530
        %v1532 = vpop.f32.mrb[0].mxu0
        %1533 = vmatprep.mubr.bf16.mxu0 0
        %1534 = vmatmul.mubr.bf16.gmra.mrb[0].mxu0 %v1426
        %v1535 = vpop.f32.mrb[0].mxu0
        %v1536 = vadd.f32 %v1386, %v1535
        %v1537 = vpop.f32.mrb[0].mxu0
        %v1538 = vpop.f32.mrb[0].mxu0
        %v1539 = vadd.f32 %v1386, %v1538
        %v1540 = vpop.f32.mrb[0].mxu0
        %1541 = vmatprep.mubr.bf16.mxu0 0
        %1542 = vmatmul.mubr.bf16.gmra.mrb[0].mxu0 %v1429
        %v1543 = vpop.f32.mrb[0].mxu0
        %v1544 = vadd.f32 %v1386, %v1543
        %v1545 = vpop.f32.mrb[0].mxu0
        %v1546 = vpop.f32.mrb[0].mxu0
        %v1547 = vadd.f32 %v1386, %v1546
        %v1548 = vpop.f32.mrb[0].mxu0
        %1549 = vmatprep.mubr.bf16.mxu0 0
        %1550 = vmatmul.mubr.bf16.gmra.mrb[0].mxu0 %v1432
        %v1551 = vpop.f32.mrb[0].mxu0
        %v1552 = vadd.f32 %v1386, %v1551
        %v1553 = vpop.f32.mrb[0].mxu0
        %v1554 = vpop.f32.mrb[0].mxu0
        %v1555 = vadd.f32 %v1386, %v1554
        %v1556 = vpop.f32.mrb[0].mxu0
        %1557 = vmatprep.mubr.bf16.mxu0 0
        %1558 = vmatmul.mubr.bf16.gmra.mrb[0].mxu0 %v1435
        %v1559 = vpop.f32.mrb[0].mxu0
        %v1560 = vadd.f32 %v1386, %v1559
        %v1561 = vpop.f32.mrb[0].mxu0
        %v1562 = vpop.f32.mrb[0].mxu0
        %v1563 = vadd.f32 %v1386, %v1562
        %v1564 = vpop.f32.mrb[0].mxu0
        %1565 = vdwg.mxu0
        %vm1566 = vcmask 64512
        %v1567 = vsel %vm1566, %v1472, -inf
        %v1568 = vrot.slane %v1567, 4
        %v1569 = vmax.f32 %v1567, %v1568
        %v1570 = vrot.slane %v1569, 2
        %v1571 = vmax.f32 %v1569, %v1570
        %v1572 = vrot.slane %v1571, 1
        %v1573 = vmax.f32 %v1571, %v1572
        %v1574 = vsel %vm1566, %v1475, -inf
        %v1575 = vrot.slane %v1574, 4
        %v1576 = vmax.f32 %v1574, %v1575
        %v1577 = vrot.slane %v1576, 2
        %v1578 = vmax.f32 %v1576, %v1577
        %v1579 = vrot.slane %v1578, 1
        %v1580 = vmax.f32 %v1578, %v1579
        %v1581 = vsel %vm1566, %v1480, -inf
        %v1582 = vrot.slane %v1581, 4
        %v1583 = vmax.f32 %v1581, %v1582
        %v1584 = vrot.slane %v1583, 2
        %v1585 = vmax.f32 %v1583, %v1584
        %v1586 = vrot.slane %v1585, 1
        %v1587 = vmax.f32 %v1585, %v1586
        %v1588 = vsel %vm1566, %v1483, -inf
        %v1589 = vrot.slane %v1588, 4
        %v1590 = vmax.f32 %v1588, %v1589
        %v1591 = vrot.slane %v1590, 2
        %v1592 = vmax.f32 %v1590, %v1591
        %v1593 = vrot.slane %v1592, 1
        %v1594 = vmax.f32 %v1592, %v1593
        %v1595 = vsel %vm1566, %v1488, -inf
        %v1596 = vrot.slane %v1595, 4
        %v1597 = vmax.f32 %v1595, %v1596
        %v1598 = vrot.slane %v1597, 2
        %v1599 = vmax.f32 %v1597, %v1598
        %v1600 = vrot.slane %v1599, 1
        %v1601 = vmax.f32 %v1599, %v1600
        %v1602 = vsel %vm1566, %v1491, -inf
        %v1603 = vrot.slane %v1602, 4
        %v1604 = vmax.f32 %v1602, %v1603
        %v1605 = vrot.slane %v1604, 2
        %v1606 = vmax.f32 %v1604, %v1605
        %v1607 = vrot.slane %v1606, 1
        %v1608 = vmax.f32 %v1606, %v1607
        %v1609 = vsel %vm1566, %v1496, -inf
        %v1610 = vrot.slane %v1609, 4
        %v1611 = vmax.f32 %v1609, %v1610
        %v1612 = vrot.slane %v1611, 2
        %v1613 = vmax.f32 %v1611, %v1612
        %v1614 = vrot.slane %v1613, 1
        %v1615 = vmax.f32 %v1613, %v1614
        %v1616 = vsel %vm1566, %v1499, -inf
        %v1617 = vrot.slane %v1616, 4
        %v1618 = vmax.f32 %v1616, %v1617
        %v1619 = vrot.slane %v1618, 2
        %v1620 = vmax.f32 %v1618, %v1619
        %v1621 = vrot.slane %v1620, 1
        %v1622 = vmax.f32 %v1620, %v1621
        %v1623 = vsel %vm1566, %v1504, -inf
        %v1624 = vrot.slane %v1623, 4
        %v1625 = vmax.f32 %v1623, %v1624
        %v1626 = vrot.slane %v1625, 2
        %v1627 = vmax.f32 %v1625, %v1626
        %v1628 = vrot.slane %v1627, 1
        %v1629 = vmax.f32 %v1627, %v1628
        %v1630 = vsel %vm1566, %v1507, -inf
        %v1631 = vrot.slane %v1630, 4
        %v1632 = vmax.f32 %v1630, %v1631
        %v1633 = vrot.slane %v1632, 2
        %v1634 = vmax.f32 %v1632, %v1633
        %v1635 = vrot.slane %v1634, 1
        %v1636 = vmax.f32 %v1634, %v1635
        %v1637 = vsel %vm1566, %v1512, -inf
        %v1638 = vrot.slane %v1637, 4
        %v1639 = vmax.f32 %v1637, %v1638
        %v1640 = vrot.slane %v1639, 2
        %v1641 = vmax.f32 %v1639, %v1640
        %v1642 = vrot.slane %v1641, 1
        %v1643 = vmax.f32 %v1641, %v1642
        %v1644 = vsel %vm1566, %v1515, -inf
        %v1645 = vrot.slane %v1644, 4
        %v1646 = vmax.f32 %v1644, %v1645
        %v1647 = vrot.slane %v1646, 2
        %v1648 = vmax.f32 %v1646, %v1647
        %v1649 = vrot.slane %v1648, 1
        %v1650 = vmax.f32 %v1648, %v1649
        %v1651 = vsel %vm1566, %v1520, -inf
        %v1652 = vrot.slane %v1651, 4
        %v1653 = vmax.f32 %v1651, %v1652
        %v1654 = vrot.slane %v1653, 2
        %v1655 = vmax.f32 %v1653, %v1654
        %v1656 = vrot.slane %v1655, 1
        %v1657 = vmax.f32 %v1655, %v1656
        %v1658 = vsel %vm1566, %v1523, -inf
        %v1659 = vrot.slane %v1658, 4
        %v1660 = vmax.f32 %v1658, %v1659
        %v1661 = vrot.slane %v1660, 2
        %v1662 = vmax.f32 %v1660, %v1661
        %v1663 = vrot.slane %v1662, 1
        %v1664 = vmax.f32 %v1662, %v1663
        %v1665 = vsel %vm1566, %v1528, -inf
        %v1666 = vrot.slane %v1665, 4
        %v1667 = vmax.f32 %v1665, %v1666
        %v1668 = vrot.slane %v1667, 2
        %v1669 = vmax.f32 %v1667, %v1668
        %v1670 = vrot.slane %v1669, 1
        %v1671 = vmax.f32 %v1669, %v1670
        %v1672 = vsel %vm1566, %v1531, -inf
        %v1673 = vrot.slane %v1672, 4
        %v1674 = vmax.f32 %v1672, %v1673
        %v1675 = vrot.slane %v1674, 2
        %v1676 = vmax.f32 %v1674, %v1675
        %v1677 = vrot.slane %v1676, 1
        %v1678 = vmax.f32 %v1676, %v1677
        %v1679 = vsel %vm1566, %v1536, -inf
        %v1680 = vrot.slane %v1679, 4
        %v1681 = vmax.f32 %v1679, %v1680
        %v1682 = vrot.slane %v1681, 2
        %v1683 = vmax.f32 %v1681, %v1682
        %v1684 = vrot.slane %v1683, 1
        %v1685 = vmax.f32 %v1683, %v1684
        %v1686 = vsel %vm1566, %v1539, -inf
        %v1687 = vrot.slane %v1686, 4
        %v1688 = vmax.f32 %v1686, %v1687
        %v1689 = vrot.slane %v1688, 2
        %v1690 = vmax.f32 %v1688, %v1689
        %v1691 = vrot.slane %v1690, 1
        %v1692 = vmax.f32 %v1690, %v1691
        %v1693 = vsel %vm1566, %v1544, -inf
        %v1694 = vrot.slane %v1693, 4
        %v1695 = vmax.f32 %v1693, %v1694
        %v1696 = vrot.slane %v1695, 2
        %v1697 = vmax.f32 %v1695, %v1696
        %v1698 = vrot.slane %v1697, 1
        %v1699 = vmax.f32 %v1697, %v1698
        %v1700 = vsel %vm1566, %v1547, -inf
        %v1701 = vrot.slane %v1700, 4
        %v1702 = vmax.f32 %v1700, %v1701
        %v1703 = vrot.slane %v1702, 2
        %v1704 = vmax.f32 %v1702, %v1703
        %v1705 = vrot.slane %v1704, 1
        %v1706 = vmax.f32 %v1704, %v1705
        %v1707 = vsel %vm1566, %v1552, -inf
        %v1708 = vrot.slane %v1707, 4
        %v1709 = vmax.f32 %v1707, %v1708
        %v1710 = vrot.slane %v1709, 2
        %v1711 = vmax.f32 %v1709, %v1710
        %v1712 = vrot.slane %v1711, 1
        %v1713 = vmax.f32 %v1711, %v1712
        %v1714 = vsel %vm1566, %v1555, -inf
        %v1715 = vrot.slane %v1714, 4
        %v1716 = vmax.f32 %v1714, %v1715
        %v1717 = vrot.slane %v1716, 2
        %v1718 = vmax.f32 %v1716, %v1717
        %v1719 = vrot.slane %v1718, 1
        %v1720 = vmax.f32 %v1718, %v1719
        %v1721 = vsel %vm1566, %v1560, -inf
        %v1722 = vrot.slane %v1721, 4
        %v1723 = vmax.f32 %v1721, %v1722
        %v1724 = vrot.slane %v1723, 2
        %v1725 = vmax.f32 %v1723, %v1724
        %v1726 = vrot.slane %v1725, 1
        %v1727 = vmax.f32 %v1725, %v1726
        %v1728 = vsel %vm1566, %v1563, -inf
        %v1729 = vrot.slane %v1728, 4
        %v1730 = vmax.f32 %v1728, %v1729
        %v1731 = vrot.slane %v1730, 2
        %v1732 = vmax.f32 %v1730, %v1731
        %v1733 = vrot.slane %v1732, 1
        %v1734 = vmax.f32 %v1732, %v1733
        %v1735 = vsub.f32 %v1472, %v1573
        %v1736 = vsub.f32 %v1475, %v1580
        %v1737 = vsub.f32 %v1480, %v1587
        %v1738 = vsub.f32 %v1483, %v1594
        %v1739 = vsub.f32 %v1488, %v1601
        %v1740 = vsub.f32 %v1491, %v1608
        %v1741 = vsub.f32 %v1496, %v1615
        %v1742 = vsub.f32 %v1499, %v1622
        %v1743 = vsub.f32 %v1504, %v1629
        %v1744 = vsub.f32 %v1507, %v1636
        %v1745 = vsub.f32 %v1512, %v1643
        %v1746 = vsub.f32 %v1515, %v1650
        %v1747 = vsub.f32 %v1520, %v1657
        %v1748 = vsub.f32 %v1523, %v1664
        %v1749 = vsub.f32 %v1528, %v1671
        %v1750 = vsub.f32 %v1531, %v1678
        %v1751 = vsub.f32 %v1536, %v1685
        %v1752 = vsub.f32 %v1539, %v1692
        %v1753 = vsub.f32 %v1544, %v1699
        %v1754 = vsub.f32 %v1547, %v1706
        %v1755 = vsub.f32 %v1552, %v1713
        %v1756 = vsub.f32 %v1555, %v1720
        %v1757 = vsub.f32 %v1560, %v1727
        %v1758 = vsub.f32 %v1563, %v1734
        %v1759 = vmul.f32 %v1735, 1.442695
        %v1760 = vpow.pop %v1759
        %v1761 = vmul.f32 %v1736, 1.442695
        %v1762 = vpow.pop %v1761
        %v1763 = vmul.f32 %v1737, 1.442695
        %v1764 = vpow.pop %v1763
        %v1765 = vmul.f32 %v1738, 1.442695
        %v1766 = vpow.pop %v1765
        %v1767 = vmul.f32 %v1739, 1.442695
        %v1768 = vpow.pop %v1767
        %v1769 = vmul.f32 %v1740, 1.442695
        %v1770 = vpow.pop %v1769
        %v1771 = vmul.f32 %v1741, 1.442695
        %v1772 = vpow.pop %v1771
        %v1773 = vmul.f32 %v1742, 1.442695
        %v1774 = vpow.pop %v1773
        %v1775 = vmul.f32 %v1743, 1.442695
        %v1776 = vpow.pop %v1775
        %v1777 = vmul.f32 %v1744, 1.442695
        %v1778 = vpow.pop %v1777
        %v1779 = vmul.f32 %v1745, 1.442695
        %v1780 = vpow.pop %v1779
        %v1781 = vmul.f32 %v1746, 1.442695
        %v1782 = vpow.pop %v1781
        %v1783 = vmul.f32 %v1747, 1.442695
        %v1784 = vpow.pop %v1783
        %v1785 = vmul.f32 %v1748, 1.442695
        %v1786 = vpow.pop %v1785
        %v1787 = vmul.f32 %v1749, 1.442695
        %v1788 = vpow.pop %v1787
        %v1789 = vmul.f32 %v1750, 1.442695
        %v1790 = vpow.pop %v1789
        %v1791 = vmul.f32 %v1751, 1.442695
        %v1792 = vpow.pop %v1791
        %v1793 = vmul.f32 %v1752, 1.442695
        %v1794 = vpow.pop %v1793
        %v1795 = vmul.f32 %v1753, 1.442695
        %v1796 = vpow.pop %v1795
        %v1797 = vmul.f32 %v1754, 1.442695
        %v1798 = vpow.pop %v1797
        %v1799 = vmul.f32 %v1755, 1.442695
        %v1800 = vpow.pop %v1799
        %v1801 = vmul.f32 %v1756, 1.442695
        %v1802 = vpow.pop %v1801
        %v1803 = vmul.f32 %v1757, 1.442695
        %v1804 = vpow.pop %v1803
        %v1805 = vmul.f32 %v1758, 1.442695
        %v1806 = vpow.pop %v1805
        %v1807 = vsel %vm1566, %v1760, 0.0
        %v1808 = vrot.slane %v1807, 4
        %v1809 = vadd.f32 %v1807, %v1808
        %v1810 = vrot.slane %v1809, 2
        %v1811 = vadd.f32 %v1809, %v1810
        %v1812 = vrot.slane %v1811, 1
        %v1813 = vadd.f32 %v1811, %v1812
        %v1814 = vsel %vm1566, %v1762, 0.0
        %v1815 = vrot.slane %v1814, 4
        %v1816 = vadd.f32 %v1814, %v1815
        %v1817 = vrot.slane %v1816, 2
        %v1818 = vadd.f32 %v1816, %v1817
        %v1819 = vrot.slane %v1818, 1
        %v1820 = vadd.f32 %v1818, %v1819
        %v1821 = vsel %vm1566, %v1764, 0.0
        %v1822 = vrot.slane %v1821, 4
        %v1823 = vadd.f32 %v1821, %v1822
        %v1824 = vrot.slane %v1823, 2
        %v1825 = vadd.f32 %v1823, %v1824
        %v1826 = vrot.slane %v1825, 1
        %v1827 = vadd.f32 %v1825, %v1826
        %v1828 = vsel %vm1566, %v1766, 0.0
        %v1829 = vrot.slane %v1828, 4
        %v1830 = vadd.f32 %v1828, %v1829
        %v1831 = vrot.slane %v1830, 2
        %v1832 = vadd.f32 %v1830, %v1831
        %v1833 = vrot.slane %v1832, 1
        %v1834 = vadd.f32 %v1832, %v1833
        %v1835 = vsel %vm1566, %v1768, 0.0
        %v1836 = vrot.slane %v1835, 4
        %v1837 = vadd.f32 %v1835, %v1836
        %v1838 = vrot.slane %v1837, 2
        %v1839 = vadd.f32 %v1837, %v1838
        %v1840 = vrot.slane %v1839, 1
        %v1841 = vadd.f32 %v1839, %v1840
        %v1842 = vsel %vm1566, %v1770, 0.0
        %v1843 = vrot.slane %v1842, 4
        %v1844 = vadd.f32 %v1842, %v1843
        %v1845 = vrot.slane %v1844, 2
        %v1846 = vadd.f32 %v1844, %v1845
        %v1847 = vrot.slane %v1846, 1
        %v1848 = vadd.f32 %v1846, %v1847
        %v1849 = vsel %vm1566, %v1772, 0.0
        %v1850 = vrot.slane %v1849, 4
        %v1851 = vadd.f32 %v1849, %v1850
        %v1852 = vrot.slane %v1851, 2
        %v1853 = vadd.f32 %v1851, %v1852
        %v1854 = vrot.slane %v1853, 1
        %v1855 = vadd.f32 %v1853, %v1854
        %v1856 = vsel %vm1566, %v1774, 0.0
        %v1857 = vrot.slane %v1856, 4
        %v1858 = vadd.f32 %v1856, %v1857
        %v1859 = vrot.slane %v1858, 2
        %v1860 = vadd.f32 %v1858, %v1859
        %v1861 = vrot.slane %v1860, 1
        %v1862 = vadd.f32 %v1860, %v1861
        %v1863 = vsel %vm1566, %v1776, 0.0
        %v1864 = vrot.slane %v1863, 4
        %v1865 = vadd.f32 %v1863, %v1864
        %v1866 = vrot.slane %v1865, 2
        %v1867 = vadd.f32 %v1865, %v1866
        %v1868 = vrot.slane %v1867, 1
        %v1869 = vadd.f32 %v1867, %v1868
        %v1870 = vsel %vm1566, %v1778, 0.0
        %v1871 = vrot.slane %v1870, 4
        %v1872 = vadd.f32 %v1870, %v1871
        %v1873 = vrot.slane %v1872, 2
        %v1874 = vadd.f32 %v1872, %v1873
        %v1875 = vrot.slane %v1874, 1
        %v1876 = vadd.f32 %v1874, %v1875
        %v1877 = vsel %vm1566, %v1780, 0.0
        %v1878 = vrot.slane %v1877, 4
        %v1879 = vadd.f32 %v1877, %v1878
        %v1880 = vrot.slane %v1879, 2
        %v1881 = vadd.f32 %v1879, %v1880
        %v1882 = vrot.slane %v1881, 1
        %v1883 = vadd.f32 %v1881, %v1882
        %v1884 = vsel %vm1566, %v1782, 0.0
        %v1885 = vrot.slane %v1884, 4
        %v1886 = vadd.f32 %v1884, %v1885
        %v1887 = vrot.slane %v1886, 2
        %v1888 = vadd.f32 %v1886, %v1887
        %v1889 = vrot.slane %v1888, 1
        %v1890 = vadd.f32 %v1888, %v1889
        %v1891 = vsel %vm1566, %v1784, 0.0
        %v1892 = vrot.slane %v1891, 4
        %v1893 = vadd.f32 %v1891, %v1892
        %v1894 = vrot.slane %v1893, 2
        %v1895 = vadd.f32 %v1893, %v1894
        %v1896 = vrot.slane %v1895, 1
        %v1897 = vadd.f32 %v1895, %v1896
        %v1898 = vsel %vm1566, %v1786, 0.0
        %v1899 = vrot.slane %v1898, 4
        %v1900 = vadd.f32 %v1898, %v1899
        %v1901 = vrot.slane %v1900, 2
        %v1902 = vadd.f32 %v1900, %v1901
        %v1903 = vrot.slane %v1902, 1
        %v1904 = vadd.f32 %v1902, %v1903
        %v1905 = vsel %vm1566, %v1788, 0.0
        %v1906 = vrot.slane %v1905, 4
        %v1907 = vadd.f32 %v1905, %v1906
        %v1908 = vrot.slane %v1907, 2
        %v1909 = vadd.f32 %v1907, %v1908
        %v1910 = vrot.slane %v1909, 1
        %v1911 = vadd.f32 %v1909, %v1910
        %v1912 = vsel %vm1566, %v1790, 0.0
        %v1913 = vrot.slane %v1912, 4
        %v1914 = vadd.f32 %v1912, %v1913
        %v1915 = vrot.slane %v1914, 2
        %v1916 = vadd.f32 %v1914, %v1915
        %v1917 = vrot.slane %v1916, 1
        %v1918 = vadd.f32 %v1916, %v1917
        %v1919 = vsel %vm1566, %v1792, 0.0
        %v1920 = vrot.slane %v1919, 4
        %v1921 = vadd.f32 %v1919, %v1920
        %v1922 = vrot.slane %v1921, 2
        %v1923 = vadd.f32 %v1921, %v1922
        %v1924 = vrot.slane %v1923, 1
        %v1925 = vadd.f32 %v1923, %v1924
        %v1926 = vsel %vm1566, %v1794, 0.0
        %v1927 = vrot.slane %v1926, 4
        %v1928 = vadd.f32 %v1926, %v1927
        %v1929 = vrot.slane %v1928, 2
        %v1930 = vadd.f32 %v1928, %v1929
        %v1931 = vrot.slane %v1930, 1
        %v1932 = vadd.f32 %v1930, %v1931
        %v1933 = vsel %vm1566, %v1796, 0.0
        %v1934 = vrot.slane %v1933, 4
        %v1935 = vadd.f32 %v1933, %v1934
        %v1936 = vrot.slane %v1935, 2
        %v1937 = vadd.f32 %v1935, %v1936
        %v1938 = vrot.slane %v1937, 1
        %v1939 = vadd.f32 %v1937, %v1938
        %v1940 = vsel %vm1566, %v1798, 0.0
        %v1941 = vrot.slane %v1940, 4
        %v1942 = vadd.f32 %v1940, %v1941
        %v1943 = vrot.slane %v1942, 2
        %v1944 = vadd.f32 %v1942, %v1943
        %v1945 = vrot.slane %v1944, 1
        %v1946 = vadd.f32 %v1944, %v1945
        %v1947 = vsel %vm1566, %v1800, 0.0
        %v1948 = vrot.slane %v1947, 4
        %v1949 = vadd.f32 %v1947, %v1948
        %v1950 = vrot.slane %v1949, 2
        %v1951 = vadd.f32 %v1949, %v1950
        %v1952 = vrot.slane %v1951, 1
        %v1953 = vadd.f32 %v1951, %v1952
        %v1954 = vsel %vm1566, %v1802, 0.0
        %v1955 = vrot.slane %v1954, 4
        %v1956 = vadd.f32 %v1954, %v1955
        %v1957 = vrot.slane %v1956, 2
        %v1958 = vadd.f32 %v1956, %v1957
        %v1959 = vrot.slane %v1958, 1
        %v1960 = vadd.f32 %v1958, %v1959
        %v1961 = vsel %vm1566, %v1804, 0.0
        %v1962 = vrot.slane %v1961, 4
        %v1963 = vadd.f32 %v1961, %v1962
        %v1964 = vrot.slane %v1963, 2
        %v1965 = vadd.f32 %v1963, %v1964
        %v1966 = vrot.slane %v1965, 1
        %v1967 = vadd.f32 %v1965, %v1966
        %v1968 = vsel %vm1566, %v1806, 0.0
        %v1969 = vrot.slane %v1968, 4
        %v1970 = vadd.f32 %v1968, %v1969
        %v1971 = vrot.slane %v1970, 2
        %v1972 = vadd.f32 %v1970, %v1971
        %v1973 = vrot.slane %v1972, 1
        %v1974 = vadd.f32 %v1972, %v1973
        %v1975 = vrcp.pop %v1813
        %v1976 = vrcp.pop %v1820
        %v1977 = vrcp.pop %v1827
        %v1978 = vrcp.pop %v1834
        %v1979 = vrcp.pop %v1841
        %v1980 = vrcp.pop %v1848
        %v1981 = vrcp.pop %v1855
        %v1982 = vrcp.pop %v1862
        %v1983 = vrcp.pop %v1869
        %v1984 = vrcp.pop %v1876
        %v1985 = vrcp.pop %v1883
        %v1986 = vrcp.pop %v1890
        %v1987 = vrcp.pop %v1897
        %v1988 = vrcp.pop %v1904
        %v1989 = vrcp.pop %v1911
        %v1990 = vrcp.pop %v1918
        %v1991 = vrcp.pop %v1925
        %v1992 = vrcp.pop %v1932
        %v1993 = vrcp.pop %v1939
        %v1994 = vrcp.pop %v1946
        %v1995 = vrcp.pop %v1953
        %v1996 = vrcp.pop %v1960
        %v1997 = vrcp.pop %v1967
        %v1998 = vrcp.pop %v1974
        %v1999 = vmul.f32 %v1760, %v1975
        %v2000 = vmul.f32 %v1762, %v1976
        %v2001 = vmul.f32 %v1764, %v1977
        %v2002 = vmul.f32 %v1766, %v1978
        %v2003 = vmul.f32 %v1768, %v1979
        %v2004 = vmul.f32 %v1770, %v1980
        %v2005 = vmul.f32 %v1772, %v1981
        %v2006 = vmul.f32 %v1774, %v1982
        %v2007 = vmul.f32 %v1776, %v1983
        %v2008 = vmul.f32 %v1778, %v1984
        %v2009 = vmul.f32 %v1780, %v1985
        %v2010 = vmul.f32 %v1782, %v1986
        %v2011 = vmul.f32 %v1784, %v1987
        %v2012 = vmul.f32 %v1786, %v1988
        %v2013 = vmul.f32 %v1788, %v1989
        %v2014 = vmul.f32 %v1790, %v1990
        %v2015 = vmul.f32 %v1792, %v1991
        %v2016 = vmul.f32 %v1794, %v1992
        %v2017 = vmul.f32 %v1796, %v1993
        %v2018 = vmul.f32 %v1798, %v1994
        %v2019 = vmul.f32 %v1800, %v1995
        %v2020 = vmul.f32 %v1802, %v1996
        %v2021 = vmul.f32 %v1804, %v1997
        %v2022 = vmul.f32 %v1806, %v1998
        %2024 = vset.pattern.permute.xlu0 0
        %2025 = vperm.xlu0 %2024, %v1999
        %v2026 = vpop.permute.xlu0 %2025
        %2029 = vset.pattern.permute.xlu0 0
        %2030 = vperm.xlu0 %2029, %v2000
        %v2031 = vpop.permute.xlu0 %2030
        %2034 = vset.pattern.permute.xlu0 0
        %2035 = vperm.xlu0 %2034, %v2001
        %v2036 = vpop.permute.xlu0 %2035
        %2039 = vset.pattern.permute.xlu0 0
        %2040 = vperm.xlu0 %2039, %v2002
        %v2041 = vpop.permute.xlu0 %2040
        %2044 = vset.pattern.permute.xlu0 0
        %2045 = vperm.xlu0 %2044, %v2003
        %v2046 = vpop.permute.xlu0 %2045
        %2049 = vset.pattern.permute.xlu0 0
        %2050 = vperm.xlu0 %2049, %v2004
        %v2051 = vpop.permute.xlu0 %2050
        %2054 = vset.pattern.permute.xlu0 0
        %2055 = vperm.xlu0 %2054, %v2005
        %v2056 = vpop.permute.xlu0 %2055
        %2059 = vset.pattern.permute.xlu0 0
        %2060 = vperm.xlu0 %2059, %v2006
        %v2061 = vpop.permute.xlu0 %2060
        %2064 = vset.pattern.permute.xlu0 0
        %2065 = vperm.xlu0 %2064, %v2007
        %v2066 = vpop.permute.xlu0 %2065
        %2069 = vset.pattern.permute.xlu0 0
        %2070 = vperm.xlu0 %2069, %v2008
        %v2071 = vpop.permute.xlu0 %2070
        %2074 = vset.pattern.permute.xlu0 0
        %2075 = vperm.xlu0 %2074, %v2009
        %v2076 = vpop.permute.xlu0 %2075
        %2079 = vset.pattern.permute.xlu0 0
        %2080 = vperm.xlu0 %2079, %v2010
        %v2081 = vpop.permute.xlu0 %2080
        %2084 = vset.pattern.permute.xlu0 0
        %2085 = vperm.xlu0 %2084, %v2011
        %v2086 = vpop.permute.xlu0 %2085
        %2089 = vset.pattern.permute.xlu0 0
        %2090 = vperm.xlu0 %2089, %v2012
        %v2091 = vpop.permute.xlu0 %2090
        %2094 = vset.pattern.permute.xlu0 0
        %2095 = vperm.xlu0 %2094, %v2013
        %v2096 = vpop.permute.xlu0 %2095
        %2099 = vset.pattern.permute.xlu0 0
        %2100 = vperm.xlu0 %2099, %v2014
        %v2101 = vpop.permute.xlu0 %2100
        %2104 = vset.pattern.permute.xlu0 0
        %2105 = vperm.xlu0 %2104, %v2015
        %v2106 = vpop.permute.xlu0 %2105
        %2109 = vset.pattern.permute.xlu0 0
        %2110 = vperm.xlu0 %2109, %v2016
        %v2111 = vpop.permute.xlu0 %2110
        %2114 = vset.pattern.permute.xlu0 0
        %2115 = vperm.xlu0 %2114, %v2017
        %v2116 = vpop.permute.xlu0 %2115
        %2119 = vset.pattern.permute.xlu0 0
        %2120 = vperm.xlu0 %2119, %v2018
        %v2121 = vpop.permute.xlu0 %2120
        %2124 = vset.pattern.permute.xlu0 0
        %2125 = vperm.xlu0 %2124, %v2019
        %v2126 = vpop.permute.xlu0 %2125
        %2129 = vset.pattern.permute.xlu0 0
        %2130 = vperm.xlu0 %2129, %v2020
        %v2131 = vpop.permute.xlu0 %2130
        %2134 = vset.pattern.permute.xlu0 0
        %2135 = vperm.xlu0 %2134, %v2021
        %v2136 = vpop.permute.xlu0 %2135
        %2139 = vset.pattern.permute.xlu0 0
        %2140 = vperm.xlu0 %2139, %v2022
        %v2141 = vpop.permute.xlu0 %2140
        %2143 = vset.pattern.permute.xlu0 1
        %2144 = vperm.xlu0 %2143, %v1999
        %v2145 = vpop.permute.xlu0 %2144
        %2147 = vset.pattern.permute.xlu0 1
        %2148 = vperm.xlu0 %2147, %v2000
        %v2149 = vpop.permute.xlu0 %2148
        %2151 = vset.pattern.permute.xlu0 1
        %2152 = vperm.xlu0 %2151, %v2001
        %v2153 = vpop.permute.xlu0 %2152
        %2155 = vset.pattern.permute.xlu0 1
        %2156 = vperm.xlu0 %2155, %v2002
        %v2157 = vpop.permute.xlu0 %2156
        %2159 = vset.pattern.permute.xlu0 1
        %2160 = vperm.xlu0 %2159, %v2003
        %v2161 = vpop.permute.xlu0 %2160
        %2163 = vset.pattern.permute.xlu0 1
        %2164 = vperm.xlu0 %2163, %v2004
        %v2165 = vpop.permute.xlu0 %2164
        %2167 = vset.pattern.permute.xlu0 1
        %2168 = vperm.xlu0 %2167, %v2005
        %v2169 = vpop.permute.xlu0 %2168
        %2171 = vset.pattern.permute.xlu0 1
        %2172 = vperm.xlu0 %2171, %v2006
        %v2173 = vpop.permute.xlu0 %2172
        %2175 = vset.pattern.permute.xlu0 1
        %2176 = vperm.xlu0 %2175, %v2007
        %v2177 = vpop.permute.xlu0 %2176
        %2179 = vset.pattern.permute.xlu0 1
        %2180 = vperm.xlu0 %2179, %v2008
        %v2181 = vpop.permute.xlu0 %2180
        %2183 = vset.pattern.permute.xlu0 1
        %2184 = vperm.xlu0 %2183, %v2009
        %v2185 = vpop.permute.xlu0 %2184
        %2187 = vset.pattern.permute.xlu0 1
        %2188 = vperm.xlu0 %2187, %v2010
        %v2189 = vpop.permute.xlu0 %2188
        %2191 = vset.pattern.permute.xlu0 1
        %2192 = vperm.xlu0 %2191, %v2011
        %v2193 = vpop.permute.xlu0 %2192
        %2195 = vset.pattern.permute.xlu0 1
        %2196 = vperm.xlu0 %2195, %v2012
        %v2197 = vpop.permute.xlu0 %2196
        %2199 = vset.pattern.permute.xlu0 1
        %2200 = vperm.xlu0 %2199, %v2013
        %v2201 = vpop.permute.xlu0 %2200
        %2203 = vset.pattern.permute.xlu0 1
        %2204 = vperm.xlu0 %2203, %v2014
        %v2205 = vpop.permute.xlu0 %2204
        %2207 = vset.pattern.permute.xlu0 1
        %2208 = vperm.xlu0 %2207, %v2015
        %v2209 = vpop.permute.xlu0 %2208
        %2211 = vset.pattern.permute.xlu0 1
        %2212 = vperm.xlu0 %2211, %v2016
        %v2213 = vpop.permute.xlu0 %2212
        %2215 = vset.pattern.permute.xlu0 1
        %2216 = vperm.xlu0 %2215, %v2017
        %v2217 = vpop.permute.xlu0 %2216
        %2219 = vset.pattern.permute.xlu0 1
        %2220 = vperm.xlu0 %2219, %v2018
        %v2221 = vpop.permute.xlu0 %2220
        %2223 = vset.pattern.permute.xlu0 1
        %2224 = vperm.xlu0 %2223, %v2019
        %v2225 = vpop.permute.xlu0 %2224
        %2227 = vset.pattern.permute.xlu0 1
        %2228 = vperm.xlu0 %2227, %v2020
        %v2229 = vpop.permute.xlu0 %2228
        %2231 = vset.pattern.permute.xlu0 1
        %2232 = vperm.xlu0 %2231, %v2021
        %v2233 = vpop.permute.xlu0 %2232
        %2235 = vset.pattern.permute.xlu0 1
        %2236 = vperm.xlu0 %2235, %v2022
        %v2237 = vpop.permute.xlu0 %2236
        %2239 = vset.pattern.permute.xlu0 2
        %2240 = vperm.xlu0 %2239, %v1999
        %v2241 = vpop.permute.xlu0 %2240
        %2243 = vset.pattern.permute.xlu0 2
        %2244 = vperm.xlu0 %2243, %v2000
        %v2245 = vpop.permute.xlu0 %2244
        %2247 = vset.pattern.permute.xlu0 2
        %2248 = vperm.xlu0 %2247, %v2001
        %v2249 = vpop.permute.xlu0 %2248
        %2251 = vset.pattern.permute.xlu0 2
        %2252 = vperm.xlu0 %2251, %v2002
        %v2253 = vpop.permute.xlu0 %2252
        %2255 = vset.pattern.permute.xlu0 2
        %2256 = vperm.xlu0 %2255, %v2003
        %v2257 = vpop.permute.xlu0 %2256
        %2259 = vset.pattern.permute.xlu0 2
        %2260 = vperm.xlu0 %2259, %v2004
        %v2261 = vpop.permute.xlu0 %2260
        %2263 = vset.pattern.permute.xlu0 2
        %2264 = vperm.xlu0 %2263, %v2005
        %v2265 = vpop.permute.xlu0 %2264
        %2267 = vset.pattern.permute.xlu0 2
        %2268 = vperm.xlu0 %2267, %v2006
        %v2269 = vpop.permute.xlu0 %2268
        %2271 = vset.pattern.permute.xlu0 2
        %2272 = vperm.xlu0 %2271, %v2007
        %v2273 = vpop.permute.xlu0 %2272
        %2275 = vset.pattern.permute.xlu0 2
        %2276 = vperm.xlu0 %2275, %v2008
        %v2277 = vpop.permute.xlu0 %2276
        %2279 = vset.pattern.permute.xlu0 2
        %2280 = vperm.xlu0 %2279, %v2009
        %v2281 = vpop.permute.xlu0 %2280
        %2283 = vset.pattern.permute.xlu0 2
        %2284 = vperm.xlu0 %2283, %v2010
        %v2285 = vpop.permute.xlu0 %2284
        %2287 = vset.pattern.permute.xlu0 2
        %2288 = vperm.xlu0 %2287, %v2011
        %v2289 = vpop.permute.xlu0 %2288
        %2291 = vset.pattern.permute.xlu0 2
        %2292 = vperm.xlu0 %2291, %v2012
        %v2293 = vpop.permute.xlu0 %2292
        %2295 = vset.pattern.permute.xlu0 2
        %2296 = vperm.xlu0 %2295, %v2013
        %v2297 = vpop.permute.xlu0 %2296
        %2299 = vset.pattern.permute.xlu0 2
        %2300 = vperm.xlu0 %2299, %v2014
        %v2301 = vpop.permute.xlu0 %2300
        %2303 = vset.pattern.permute.xlu0 2
        %2304 = vperm.xlu0 %2303, %v2015
        %v2305 = vpop.permute.xlu0 %2304
        %2307 = vset.pattern.permute.xlu0 2
        %2308 = vperm.xlu0 %2307, %v2016
        %v2309 = vpop.permute.xlu0 %2308
        %2311 = vset.pattern.permute.xlu0 2
        %2312 = vperm.xlu0 %2311, %v2017
        %v2313 = vpop.permute.xlu0 %2312
        %2315 = vset.pattern.permute.xlu0 2
        %2316 = vperm.xlu0 %2315, %v2018
        %v2317 = vpop.permute.xlu0 %2316
        %2319 = vset.pattern.permute.xlu0 2
        %2320 = vperm.xlu0 %2319, %v2019
        %v2321 = vpop.permute.xlu0 %2320
        %2323 = vset.pattern.permute.xlu0 2
        %2324 = vperm.xlu0 %2323, %v2020
        %v2325 = vpop.permute.xlu0 %2324
        %2327 = vset.pattern.permute.xlu0 2
        %2328 = vperm.xlu0 %2327, %v2021
        %v2329 = vpop.permute.xlu0 %2328
        %2331 = vset.pattern.permute.xlu0 2
        %2332 = vperm.xlu0 %2331, %v2022
        %v2333 = vpop.permute.xlu0 %2332
        %2335 = vset.pattern.permute.xlu0 3
        %2336 = vperm.xlu0 %2335, %v1999
        %v2337 = vpop.permute.xlu0 %2336
        %2339 = vset.pattern.permute.xlu0 3
        %2340 = vperm.xlu0 %2339, %v2000
        %v2341 = vpop.permute.xlu0 %2340
        %2343 = vset.pattern.permute.xlu0 3
        %2344 = vperm.xlu0 %2343, %v2001
        %v2345 = vpop.permute.xlu0 %2344
        %2347 = vset.pattern.permute.xlu0 3
        %2348 = vperm.xlu0 %2347, %v2002
        %v2349 = vpop.permute.xlu0 %2348
        %2351 = vset.pattern.permute.xlu0 3
        %2352 = vperm.xlu0 %2351, %v2003
        %v2353 = vpop.permute.xlu0 %2352
        %2355 = vset.pattern.permute.xlu0 3
        %2356 = vperm.xlu0 %2355, %v2004
        %v2357 = vpop.permute.xlu0 %2356
        %2359 = vset.pattern.permute.xlu0 3
        %2360 = vperm.xlu0 %2359, %v2005
        %v2361 = vpop.permute.xlu0 %2360
        %2363 = vset.pattern.permute.xlu0 3
        %2364 = vperm.xlu0 %2363, %v2006
        %v2365 = vpop.permute.xlu0 %2364
        %2367 = vset.pattern.permute.xlu0 3
        %2368 = vperm.xlu0 %2367, %v2007
        %v2369 = vpop.permute.xlu0 %2368
        %2371 = vset.pattern.permute.xlu0 3
        %2372 = vperm.xlu0 %2371, %v2008
        %v2373 = vpop.permute.xlu0 %2372
        %2375 = vset.pattern.permute.xlu0 3
        %2376 = vperm.xlu0 %2375, %v2009
        %v2377 = vpop.permute.xlu0 %2376
        %2379 = vset.pattern.permute.xlu0 3
        %2380 = vperm.xlu0 %2379, %v2010
        %v2381 = vpop.permute.xlu0 %2380
        %2383 = vset.pattern.permute.xlu0 3
        %2384 = vperm.xlu0 %2383, %v2011
        %v2385 = vpop.permute.xlu0 %2384
        %2387 = vset.pattern.permute.xlu0 3
        %2388 = vperm.xlu0 %2387, %v2012
        %v2389 = vpop.permute.xlu0 %2388
        %2391 = vset.pattern.permute.xlu0 3
        %2392 = vperm.xlu0 %2391, %v2013
        %v2393 = vpop.permute.xlu0 %2392
        %2395 = vset.pattern.permute.xlu0 3
        %2396 = vperm.xlu0 %2395, %v2014
        %v2397 = vpop.permute.xlu0 %2396
        %2399 = vset.pattern.permute.xlu0 3
        %2400 = vperm.xlu0 %2399, %v2015
        %v2401 = vpop.permute.xlu0 %2400
        %2403 = vset.pattern.permute.xlu0 3
        %2404 = vperm.xlu0 %2403, %v2016
        %v2405 = vpop.permute.xlu0 %2404
        %2407 = vset.pattern.permute.xlu0 3
        %2408 = vperm.xlu0 %2407, %v2017
        %v2409 = vpop.permute.xlu0 %2408
        %2411 = vset.pattern.permute.xlu0 3
        %2412 = vperm.xlu0 %2411, %v2018
        %v2413 = vpop.permute.xlu0 %2412
        %2415 = vset.pattern.permute.xlu0 3
        %2416 = vperm.xlu0 %2415, %v2019
        %v2417 = vpop.permute.xlu0 %2416
        %2419 = vset.pattern.permute.xlu0 3
        %2420 = vperm.xlu0 %2419, %v2020
        %v2421 = vpop.permute.xlu0 %2420
        %2423 = vset.pattern.permute.xlu0 3
        %2424 = vperm.xlu0 %2423, %v2021
        %v2425 = vpop.permute.xlu0 %2424
        %2427 = vset.pattern.permute.xlu0 3
        %2428 = vperm.xlu0 %2427, %v2022
        %v2429 = vpop.permute.xlu0 %2428
        %2431 = vset.pattern.permute.xlu0 4
        %2432 = vperm.xlu0 %2431, %v1999
        %v2433 = vpop.permute.xlu0 %2432
        %2435 = vset.pattern.permute.xlu0 4
        %2436 = vperm.xlu0 %2435, %v2000
        %v2437 = vpop.permute.xlu0 %2436
        %2439 = vset.pattern.permute.xlu0 4
        %2440 = vperm.xlu0 %2439, %v2001
        %v2441 = vpop.permute.xlu0 %2440
        %2443 = vset.pattern.permute.xlu0 4
        %2444 = vperm.xlu0 %2443, %v2002
        %v2445 = vpop.permute.xlu0 %2444
        %2447 = vset.pattern.permute.xlu0 4
        %2448 = vperm.xlu0 %2447, %v2003
        %v2449 = vpop.permute.xlu0 %2448
        %2451 = vset.pattern.permute.xlu0 4
        %2452 = vperm.xlu0 %2451, %v2004
        %v2453 = vpop.permute.xlu0 %2452
        %2455 = vset.pattern.permute.xlu0 4
        %2456 = vperm.xlu0 %2455, %v2005
        %v2457 = vpop.permute.xlu0 %2456
        %2459 = vset.pattern.permute.xlu0 4
        %2460 = vperm.xlu0 %2459, %v2006
        %v2461 = vpop.permute.xlu0 %2460
        %2463 = vset.pattern.permute.xlu0 4
        %2464 = vperm.xlu0 %2463, %v2007
        %v2465 = vpop.permute.xlu0 %2464
        %2467 = vset.pattern.permute.xlu0 4
        %2468 = vperm.xlu0 %2467, %v2008
        %v2469 = vpop.permute.xlu0 %2468
        %2471 = vset.pattern.permute.xlu0 4
        %2472 = vperm.xlu0 %2471, %v2009
        %v2473 = vpop.permute.xlu0 %2472
        %2475 = vset.pattern.permute.xlu0 4
        %2476 = vperm.xlu0 %2475, %v2010
        %v2477 = vpop.permute.xlu0 %2476
        %2479 = vset.pattern.permute.xlu0 4
        %2480 = vperm.xlu0 %2479, %v2011
        %v2481 = vpop.permute.xlu0 %2480
        %2483 = vset.pattern.permute.xlu0 4
        %2484 = vperm.xlu0 %2483, %v2012
        %v2485 = vpop.permute.xlu0 %2484
        %2487 = vset.pattern.permute.xlu0 4
        %2488 = vperm.xlu0 %2487, %v2013
        %v2489 = vpop.permute.xlu0 %2488
        %2491 = vset.pattern.permute.xlu0 4
        %2492 = vperm.xlu0 %2491, %v2014
        %v2493 = vpop.permute.xlu0 %2492
        %2495 = vset.pattern.permute.xlu0 4
        %2496 = vperm.xlu0 %2495, %v2015
        %v2497 = vpop.permute.xlu0 %2496
        %2499 = vset.pattern.permute.xlu0 4
        %2500 = vperm.xlu0 %2499, %v2016
        %v2501 = vpop.permute.xlu0 %2500
        %2503 = vset.pattern.permute.xlu0 4
        %2504 = vperm.xlu0 %2503, %v2017
        %v2505 = vpop.permute.xlu0 %2504
        %2507 = vset.pattern.permute.xlu0 4
        %2508 = vperm.xlu0 %2507, %v2018
        %v2509 = vpop.permute.xlu0 %2508
        %2511 = vset.pattern.permute.xlu0 4
        %2512 = vperm.xlu0 %2511, %v2019
        %v2513 = vpop.permute.xlu0 %2512
        %2515 = vset.pattern.permute.xlu0 4
        %2516 = vperm.xlu0 %2515, %v2020
        %v2517 = vpop.permute.xlu0 %2516
        %2519 = vset.pattern.permute.xlu0 4
        %2520 = vperm.xlu0 %2519, %v2021
        %v2521 = vpop.permute.xlu0 %2520
        %2523 = vset.pattern.permute.xlu0 4
        %2524 = vperm.xlu0 %2523, %v2022
        %v2525 = vpop.permute.xlu0 %2524
        %2527 = vset.pattern.permute.xlu0 5
        %2528 = vperm.xlu0 %2527, %v1999
        %v2529 = vpop.permute.xlu0 %2528
        %2531 = vset.pattern.permute.xlu0 5
        %2532 = vperm.xlu0 %2531, %v2000
        %v2533 = vpop.permute.xlu0 %2532
        %2535 = vset.pattern.permute.xlu0 5
        %2536 = vperm.xlu0 %2535, %v2001
        %v2537 = vpop.permute.xlu0 %2536
        %2539 = vset.pattern.permute.xlu0 5
        %2540 = vperm.xlu0 %2539, %v2002
        %v2541 = vpop.permute.xlu0 %2540
        %2543 = vset.pattern.permute.xlu0 5
        %2544 = vperm.xlu0 %2543, %v2003
        %v2545 = vpop.permute.xlu0 %2544
        %2547 = vset.pattern.permute.xlu0 5
        %2548 = vperm.xlu0 %2547, %v2004
        %v2549 = vpop.permute.xlu0 %2548
        %2551 = vset.pattern.permute.xlu0 5
        %2552 = vperm.xlu0 %2551, %v2005
        %v2553 = vpop.permute.xlu0 %2552
        %2555 = vset.pattern.permute.xlu0 5
        %2556 = vperm.xlu0 %2555, %v2006
        %v2557 = vpop.permute.xlu0 %2556
        %2559 = vset.pattern.permute.xlu0 5
        %2560 = vperm.xlu0 %2559, %v2007
        %v2561 = vpop.permute.xlu0 %2560
        %2563 = vset.pattern.permute.xlu0 5
        %2564 = vperm.xlu0 %2563, %v2008
        %v2565 = vpop.permute.xlu0 %2564
        %2567 = vset.pattern.permute.xlu0 5
        %2568 = vperm.xlu0 %2567, %v2009
        %v2569 = vpop.permute.xlu0 %2568
        %2571 = vset.pattern.permute.xlu0 5
        %2572 = vperm.xlu0 %2571, %v2010
        %v2573 = vpop.permute.xlu0 %2572
        %2575 = vset.pattern.permute.xlu0 5
        %2576 = vperm.xlu0 %2575, %v2011
        %v2577 = vpop.permute.xlu0 %2576
        %2579 = vset.pattern.permute.xlu0 5
        %2580 = vperm.xlu0 %2579, %v2012
        %v2581 = vpop.permute.xlu0 %2580
        %2583 = vset.pattern.permute.xlu0 5
        %2584 = vperm.xlu0 %2583, %v2013
        %v2585 = vpop.permute.xlu0 %2584
        %2587 = vset.pattern.permute.xlu0 5
        %2588 = vperm.xlu0 %2587, %v2014
        %v2589 = vpop.permute.xlu0 %2588
        %2591 = vset.pattern.permute.xlu0 5
        %2592 = vperm.xlu0 %2591, %v2015
        %v2593 = vpop.permute.xlu0 %2592
        %2595 = vset.pattern.permute.xlu0 5
        %2596 = vperm.xlu0 %2595, %v2016
        %v2597 = vpop.permute.xlu0 %2596
        %2599 = vset.pattern.permute.xlu0 5
        %2600 = vperm.xlu0 %2599, %v2017
        %v2601 = vpop.permute.xlu0 %2600
        %2603 = vset.pattern.permute.xlu0 5
        %2604 = vperm.xlu0 %2603, %v2018
        %v2605 = vpop.permute.xlu0 %2604
        %2607 = vset.pattern.permute.xlu0 5
        %2608 = vperm.xlu0 %2607, %v2019
        %v2609 = vpop.permute.xlu0 %2608
        %2611 = vset.pattern.permute.xlu0 5
        %2612 = vperm.xlu0 %2611, %v2020
        %v2613 = vpop.permute.xlu0 %2612
        %2615 = vset.pattern.permute.xlu0 5
        %2616 = vperm.xlu0 %2615, %v2021
        %v2617 = vpop.permute.xlu0 %2616
        %2619 = vset.pattern.permute.xlu0 5
        %2620 = vperm.xlu0 %2619, %v2022
        %v2621 = vpop.permute.xlu0 %2620
        %2623 = vset.pattern.permute.xlu0 6
        %2624 = vperm.xlu0 %2623, %v1999
        %v2625 = vpop.permute.xlu0 %2624
        %2627 = vset.pattern.permute.xlu0 6
        %2628 = vperm.xlu0 %2627, %v2000
        %v2629 = vpop.permute.xlu0 %2628
        %2631 = vset.pattern.permute.xlu0 6
        %2632 = vperm.xlu0 %2631, %v2001
        %v2633 = vpop.permute.xlu0 %2632
        %2635 = vset.pattern.permute.xlu0 6
        %2636 = vperm.xlu0 %2635, %v2002
        %v2637 = vpop.permute.xlu0 %2636
        %2639 = vset.pattern.permute.xlu0 6
        %2640 = vperm.xlu0 %2639, %v2003
        %v2641 = vpop.permute.xlu0 %2640
        %2643 = vset.pattern.permute.xlu0 6
        %2644 = vperm.xlu0 %2643, %v2004
        %v2645 = vpop.permute.xlu0 %2644
        %2647 = vset.pattern.permute.xlu0 6
        %2648 = vperm.xlu0 %2647, %v2005
        %v2649 = vpop.permute.xlu0 %2648
        %2651 = vset.pattern.permute.xlu0 6
        %2652 = vperm.xlu0 %2651, %v2006
        %v2653 = vpop.permute.xlu0 %2652
        %2655 = vset.pattern.permute.xlu0 6
        %2656 = vperm.xlu0 %2655, %v2007
        %v2657 = vpop.permute.xlu0 %2656
        %2659 = vset.pattern.permute.xlu0 6
        %2660 = vperm.xlu0 %2659, %v2008
        %v2661 = vpop.permute.xlu0 %2660
        %2663 = vset.pattern.permute.xlu0 6
        %2664 = vperm.xlu0 %2663, %v2009
        %v2665 = vpop.permute.xlu0 %2664
        %2667 = vset.pattern.permute.xlu0 6
        %2668 = vperm.xlu0 %2667, %v2010
        %v2669 = vpop.permute.xlu0 %2668
        %2671 = vset.pattern.permute.xlu0 6
        %2672 = vperm.xlu0 %2671, %v2011
        %v2673 = vpop.permute.xlu0 %2672
        %2675 = vset.pattern.permute.xlu0 6
        %2676 = vperm.xlu0 %2675, %v2012
        %v2677 = vpop.permute.xlu0 %2676
        %2679 = vset.pattern.permute.xlu0 6
        %2680 = vperm.xlu0 %2679, %v2013
        %v2681 = vpop.permute.xlu0 %2680
        %2683 = vset.pattern.permute.xlu0 6
        %2684 = vperm.xlu0 %2683, %v2014
        %v2685 = vpop.permute.xlu0 %2684
        %2687 = vset.pattern.permute.xlu0 6
        %2688 = vperm.xlu0 %2687, %v2015
        %v2689 = vpop.permute.xlu0 %2688
        %2691 = vset.pattern.permute.xlu0 6
        %2692 = vperm.xlu0 %2691, %v2016
        %v2693 = vpop.permute.xlu0 %2692
        %2695 = vset.pattern.permute.xlu0 6
        %2696 = vperm.xlu0 %2695, %v2017
        %v2697 = vpop.permute.xlu0 %2696
        %2699 = vset.pattern.permute.xlu0 6
        %2700 = vperm.xlu0 %2699, %v2018
        %v2701 = vpop.permute.xlu0 %2700
        %2703 = vset.pattern.permute.xlu0 6
        %2704 = vperm.xlu0 %2703, %v2019
        %v2705 = vpop.permute.xlu0 %2704
        %2707 = vset.pattern.permute.xlu0 6
        %2708 = vperm.xlu0 %2707, %v2020
        %v2709 = vpop.permute.xlu0 %2708
        %2711 = vset.pattern.permute.xlu0 6
        %2712 = vperm.xlu0 %2711, %v2021
        %v2713 = vpop.permute.xlu0 %2712
        %2715 = vset.pattern.permute.xlu0 6
        %2716 = vperm.xlu0 %2715, %v2022
        %v2717 = vpop.permute.xlu0 %2716
        %2719 = vset.pattern.permute.xlu0 7
        %2720 = vperm.xlu0 %2719, %v1999
        %v2721 = vpop.permute.xlu0 %2720
        %2723 = vset.pattern.permute.xlu0 7
        %2724 = vperm.xlu0 %2723, %v2000
        %v2725 = vpop.permute.xlu0 %2724
        %2727 = vset.pattern.permute.xlu0 7
        %2728 = vperm.xlu0 %2727, %v2001
        %v2729 = vpop.permute.xlu0 %2728
        %2731 = vset.pattern.permute.xlu0 7
        %2732 = vperm.xlu0 %2731, %v2002
        %v2733 = vpop.permute.xlu0 %2732
        %2735 = vset.pattern.permute.xlu0 7
        %2736 = vperm.xlu0 %2735, %v2003
        %v2737 = vpop.permute.xlu0 %2736
        %2739 = vset.pattern.permute.xlu0 7
        %2740 = vperm.xlu0 %2739, %v2004
        %v2741 = vpop.permute.xlu0 %2740
        %2743 = vset.pattern.permute.xlu0 7
        %2744 = vperm.xlu0 %2743, %v2005
        %v2745 = vpop.permute.xlu0 %2744
        %2747 = vset.pattern.permute.xlu0 7
        %2748 = vperm.xlu0 %2747, %v2006
        %v2749 = vpop.permute.xlu0 %2748
        %2751 = vset.pattern.permute.xlu0 7
        %2752 = vperm.xlu0 %2751, %v2007
        %v2753 = vpop.permute.xlu0 %2752
        %2755 = vset.pattern.permute.xlu0 7
        %2756 = vperm.xlu0 %2755, %v2008
        %v2757 = vpop.permute.xlu0 %2756
        %2759 = vset.pattern.permute.xlu0 7
        %2760 = vperm.xlu0 %2759, %v2009
        %v2761 = vpop.permute.xlu0 %2760
        %2763 = vset.pattern.permute.xlu0 7
        %2764 = vperm.xlu0 %2763, %v2010
        %v2765 = vpop.permute.xlu0 %2764
        %2767 = vset.pattern.permute.xlu0 7
        %2768 = vperm.xlu0 %2767, %v2011
        %v2769 = vpop.permute.xlu0 %2768
        %2771 = vset.pattern.permute.xlu0 7
        %2772 = vperm.xlu0 %2771, %v2012
        %v2773 = vpop.permute.xlu0 %2772
        %2775 = vset.pattern.permute.xlu0 7
        %2776 = vperm.xlu0 %2775, %v2013
        %v2777 = vpop.permute.xlu0 %2776
        %2779 = vset.pattern.permute.xlu0 7
        %2780 = vperm.xlu0 %2779, %v2014
        %v2781 = vpop.permute.xlu0 %2780
        %2783 = vset.pattern.permute.xlu0 7
        %2784 = vperm.xlu0 %2783, %v2015
        %v2785 = vpop.permute.xlu0 %2784
        %2787 = vset.pattern.permute.xlu0 7
        %2788 = vperm.xlu0 %2787, %v2016
        %v2789 = vpop.permute.xlu0 %2788
        %2791 = vset.pattern.permute.xlu0 7
        %2792 = vperm.xlu0 %2791, %v2017
        %v2793 = vpop.permute.xlu0 %2792
        %2795 = vset.pattern.permute.xlu0 7
        %2796 = vperm.xlu0 %2795, %v2018
        %v2797 = vpop.permute.xlu0 %2796
        %2799 = vset.pattern.permute.xlu0 7
        %2800 = vperm.xlu0 %2799, %v2019
        %v2801 = vpop.permute.xlu0 %2800
        %2803 = vset.pattern.permute.xlu0 7
        %2804 = vperm.xlu0 %2803, %v2020
        %v2805 = vpop.permute.xlu0 %2804
        %2807 = vset.pattern.permute.xlu0 7
        %2808 = vperm.xlu0 %2807, %v2021
        %v2809 = vpop.permute.xlu0 %2808
        %2811 = vset.pattern.permute.xlu0 7
        %2812 = vperm.xlu0 %2811, %v2022
        %v2813 = vpop.permute.xlu0 %2812
        %v2815 = vsel %vm497, %v2026, %v2145
        %v2816 = vsel %vm497, %v2031, %v2149
        %v2817 = vsel %vm497, %v2036, %v2153
        %v2818 = vsel %vm497, %v2041, %v2157
        %v2819 = vsel %vm497, %v2046, %v2161
        %v2820 = vsel %vm497, %v2051, %v2165
        %v2821 = vsel %vm497, %v2056, %v2169
        %v2822 = vsel %vm497, %v2061, %v2173
        %v2823 = vsel %vm497, %v2066, %v2177
        %v2824 = vsel %vm497, %v2071, %v2181
        %v2825 = vsel %vm497, %v2076, %v2185
        %v2826 = vsel %vm497, %v2081, %v2189
        %v2827 = vsel %vm497, %v2086, %v2193
        %v2828 = vsel %vm497, %v2091, %v2197
        %v2829 = vsel %vm497, %v2096, %v2201
        %v2830 = vsel %vm497, %v2101, %v2205
        %v2831 = vsel %vm497, %v2106, %v2209
        %v2832 = vsel %vm497, %v2111, %v2213
        %v2833 = vsel %vm497, %v2116, %v2217
        %v2834 = vsel %vm497, %v2121, %v2221
        %v2835 = vsel %vm497, %v2126, %v2225
        %v2836 = vsel %vm497, %v2131, %v2229
        %v2837 = vsel %vm497, %v2136, %v2233
        %v2838 = vsel %vm497, %v2141, %v2237
        %v2839 = vsel %vm1400, %v2815, %v2241
        %v2840 = vsel %vm1400, %v2816, %v2245
        %v2841 = vsel %vm1400, %v2817, %v2249
        %v2842 = vsel %vm1400, %v2818, %v2253
        %v2843 = vsel %vm1400, %v2819, %v2257
        %v2844 = vsel %vm1400, %v2820, %v2261
        %v2845 = vsel %vm1400, %v2821, %v2265
        %v2846 = vsel %vm1400, %v2822, %v2269
        %v2847 = vsel %vm1400, %v2823, %v2273
        %v2848 = vsel %vm1400, %v2824, %v2277
        %v2849 = vsel %vm1400, %v2825, %v2281
        %v2850 = vsel %vm1400, %v2826, %v2285
        %v2851 = vsel %vm1400, %v2827, %v2289
        %v2852 = vsel %vm1400, %v2828, %v2293
        %v2853 = vsel %vm1400, %v2829, %v2297
        %v2854 = vsel %vm1400, %v2830, %v2301
        %v2855 = vsel %vm1400, %v2831, %v2305
        %v2856 = vsel %vm1400, %v2832, %v2309
        %v2857 = vsel %vm1400, %v2833, %v2313
        %v2858 = vsel %vm1400, %v2834, %v2317
        %v2859 = vsel %vm1400, %v2835, %v2321
        %v2860 = vsel %vm1400, %v2836, %v2325
        %v2861 = vsel %vm1400, %v2837, %v2329
        %v2862 = vsel %vm1400, %v2838, %v2333
        %vm2863 = vcmask 392192
        %v2864 = vsel %vm2863, %v2839, %v2337
        %v2865 = vsel %vm2863, %v2840, %v2341
        %v2866 = vsel %vm2863, %v2841, %v2345
        %v2867 = vsel %vm2863, %v2842, %v2349
        %v2868 = vsel %vm2863, %v2843, %v2353
        %v2869 = vsel %vm2863, %v2844, %v2357
        %v2870 = vsel %vm2863, %v2845, %v2361
        %v2871 = vsel %vm2863, %v2846, %v2365
        %v2872 = vsel %vm2863, %v2847, %v2369
        %v2873 = vsel %vm2863, %v2848, %v2373
        %v2874 = vsel %vm2863, %v2849, %v2377
        %v2875 = vsel %vm2863, %v2850, %v2381
        %v2876 = vsel %vm2863, %v2851, %v2385
        %v2877 = vsel %vm2863, %v2852, %v2389
        %v2878 = vsel %vm2863, %v2853, %v2393
        %v2879 = vsel %vm2863, %v2854, %v2397
        %v2880 = vsel %vm2863, %v2855, %v2401
        %v2881 = vsel %vm2863, %v2856, %v2405
        %v2882 = vsel %vm2863, %v2857, %v2409
        %v2883 = vsel %vm2863, %v2858, %v2413
        %v2884 = vsel %vm2863, %v2859, %v2417
        %v2885 = vsel %vm2863, %v2860, %v2421
        %v2886 = vsel %vm2863, %v2861, %v2425
        %v2887 = vsel %vm2863, %v2862, %v2429
        %v2888 = vsel %vm863, %v2864, %v2433
        %v2889 = vsel %vm863, %v2865, %v2437
        %v2890 = vsel %vm863, %v2866, %v2441
        %v2891 = vsel %vm863, %v2867, %v2445
        %v2892 = vsel %vm863, %v2868, %v2449
        %v2893 = vsel %vm863, %v2869, %v2453
        %v2894 = vsel %vm863, %v2870, %v2457
        %v2895 = vsel %vm863, %v2871, %v2461
        %v2896 = vsel %vm863, %v2872, %v2465
        %v2897 = vsel %vm863, %v2873, %v2469
        %v2898 = vsel %vm863, %v2874, %v2473
        %v2899 = vsel %vm863, %v2875, %v2477
        %v2900 = vsel %vm863, %v2876, %v2481
        %v2901 = vsel %vm863, %v2877, %v2485
        %v2902 = vsel %vm863, %v2878, %v2489
        %v2903 = vsel %vm863, %v2879, %v2493
        %v2904 = vsel %vm863, %v2880, %v2497
        %v2905 = vsel %vm863, %v2881, %v2501
        %v2906 = vsel %vm863, %v2882, %v2505
        %v2907 = vsel %vm863, %v2883, %v2509
        %v2908 = vsel %vm863, %v2884, %v2513
        %v2909 = vsel %vm863, %v2885, %v2517
        %v2910 = vsel %vm863, %v2886, %v2521
        %v2911 = vsel %vm863, %v2887, %v2525
        %vm2912 = vcmask 654336
        %v2913 = vsel %vm2912, %v2888, %v2529
        %v2914 = vsel %vm2912, %v2889, %v2533
        %v2915 = vsel %vm2912, %v2890, %v2537
        %v2916 = vsel %vm2912, %v2891, %v2541
        %v2917 = vsel %vm2912, %v2892, %v2545
        %v2918 = vsel %vm2912, %v2893, %v2549
        %v2919 = vsel %vm2912, %v2894, %v2553
        %v2920 = vsel %vm2912, %v2895, %v2557
        %v2921 = vsel %vm2912, %v2896, %v2561
        %v2922 = vsel %vm2912, %v2897, %v2565
        %v2923 = vsel %vm2912, %v2898, %v2569
        %v2924 = vsel %vm2912, %v2899, %v2573
        %v2925 = vsel %vm2912, %v2900, %v2577
        %v2926 = vsel %vm2912, %v2901, %v2581
        %v2927 = vsel %vm2912, %v2902, %v2585
        %v2928 = vsel %vm2912, %v2903, %v2589
        %v2929 = vsel %vm2912, %v2904, %v2593
        %v2930 = vsel %vm2912, %v2905, %v2597
        %v2931 = vsel %vm2912, %v2906, %v2601
        %v2932 = vsel %vm2912, %v2907, %v2605
        %v2933 = vsel %vm2912, %v2908, %v2609
        %v2934 = vsel %vm2912, %v2909, %v2613
        %v2935 = vsel %vm2912, %v2910, %v2617
        %v2936 = vsel %vm2912, %v2911, %v2621
        %vm2937 = vcmask 785408
        %v2938 = vsel %vm2937, %v2913, %v2625
        %v2939 = vsel %vm2937, %v2914, %v2629
        %v2940 = vsel %vm2937, %v2915, %v2633
        %v2941 = vsel %vm2937, %v2916, %v2637
        %v2942 = vsel %vm2937, %v2917, %v2641
        %v2943 = vsel %vm2937, %v2918, %v2645
        %v2944 = vsel %vm2937, %v2919, %v2649
        %v2945 = vsel %vm2937, %v2920, %v2653
        %v2946 = vsel %vm2937, %v2921, %v2657
        %v2947 = vsel %vm2937, %v2922, %v2661
        %v2948 = vsel %vm2937, %v2923, %v2665
        %v2949 = vsel %vm2937, %v2924, %v2669
        %v2950 = vsel %vm2937, %v2925, %v2673
        %v2951 = vsel %vm2937, %v2926, %v2677
        %v2952 = vsel %vm2937, %v2927, %v2681
        %v2953 = vsel %vm2937, %v2928, %v2685
        %v2954 = vsel %vm2937, %v2929, %v2689
        %v2955 = vsel %vm2937, %v2930, %v2693
        %v2956 = vsel %vm2937, %v2931, %v2697
        %v2957 = vsel %vm2937, %v2932, %v2701
        %v2958 = vsel %vm2937, %v2933, %v2705
        %v2959 = vsel %vm2937, %v2934, %v2709
        %v2960 = vsel %vm2937, %v2935, %v2713
        %v2961 = vsel %vm2937, %v2936, %v2717
        %vm2962 = vcmask 916480
        %v2963 = vsel %vm2962, %v2938, %v2721
        %v2964 = vsel %vm2962, %v2939, %v2725
        %v2965 = vsel %vm2962, %v2940, %v2729
        %v2966 = vsel %vm2962, %v2941, %v2733
        %v2967 = vsel %vm2962, %v2942, %v2737
        %v2968 = vsel %vm2962, %v2943, %v2741
        %v2969 = vsel %vm2962, %v2944, %v2745
        %v2970 = vsel %vm2962, %v2945, %v2749
        %v2971 = vsel %vm2962, %v2946, %v2753
        %v2972 = vsel %vm2962, %v2947, %v2757
        %v2973 = vsel %vm2962, %v2948, %v2761
        %v2974 = vsel %vm2962, %v2949, %v2765
        %v2975 = vsel %vm2962, %v2950, %v2769
        %v2976 = vsel %vm2962, %v2951, %v2773
        %v2977 = vsel %vm2962, %v2952, %v2777
        %v2978 = vsel %vm2962, %v2953, %v2781
        %v2979 = vsel %vm2962, %v2954, %v2785
        %v2980 = vsel %vm2962, %v2955, %v2789
        %v2981 = vsel %vm2962, %v2956, %v2793
        %v2982 = vsel %vm2962, %v2957, %v2797
        %v2983 = vsel %vm2962, %v2958, %v2801
        %v2984 = vsel %vm2962, %v2959, %v2805
        %v2985 = vsel %vm2962, %v2960, %v2809
        %v2986 = vsel %vm2962, %v2961, %v2813
        %3011 = vrot.lane.b32.xlu0 %v1125, 16
        %v3012 = vpop.permute.xlu0 %3011
        %3013 = vrot.lane.b32.xlu0 %v1126, 16
        %v3014 = vpop.permute.xlu0 %3013
        %3015 = vrot.lane.b32.xlu0 %v1127, 16
        %v3016 = vpop.permute.xlu0 %3015
        %3017 = vrot.lane.b32.xlu0 %v1128, 16
        %v3018 = vpop.permute.xlu0 %3017
        %3019 = vrot.lane.b32.xlu0 %v1129, 16
        %v3020 = vpop.permute.xlu0 %3019
        %3021 = vrot.lane.b32.xlu0 %v1130, 16
        %v3022 = vpop.permute.xlu0 %3021
        %3023 = vrot.lane.b32.xlu0 %v1131, 16
        %v3024 = vpop.permute.xlu0 %3023
        %3025 = vrot.lane.b32.xlu0 %v1132, 16
        %v3026 = vpop.permute.xlu0 %3025
        %3027 = vrot.lane.b32.xlu0 %v1133, 16
        %v3028 = vpop.permute.xlu0 %3027
        %3029 = vrot.lane.b32.xlu0 %v1134, 16
        %v3030 = vpop.permute.xlu0 %3029
        %3031 = vrot.lane.b32.xlu0 %v1135, 16
        %v3032 = vpop.permute.xlu0 %3031
        %3033 = vrot.lane.b32.xlu0 %v1136, 16
        %v3034 = vpop.permute.xlu0 %3033
        %3035 = vrot.lane.b32.xlu0 %v1137, 16
        %v3036 = vpop.permute.xlu0 %3035
        %3037 = vrot.lane.b32.xlu0 %v1138, 16
        %v3038 = vpop.permute.xlu0 %3037
        %3039 = vrot.lane.b32.xlu0 %v1139, 16
        %v3040 = vpop.permute.xlu0 %3039
        %3041 = vrot.lane.b32.xlu0 %v1140, 16
        %v3042 = vpop.permute.xlu0 %3041
        %3043 = vrot.lane.b32.xlu0 %v1141, 16
        %v3044 = vpop.permute.xlu0 %3043
        %3045 = vrot.lane.b32.xlu0 %v1142, 16
        %v3046 = vpop.permute.xlu0 %3045
        %3047 = vrot.lane.b32.xlu0 %v1143, 16
        %v3048 = vpop.permute.xlu0 %3047
        %3049 = vrot.lane.b32.xlu0 %v1144, 16
        %v3050 = vpop.permute.xlu0 %3049
        %3051 = vrot.lane.b32.xlu0 %v1145, 16
        %v3052 = vpop.permute.xlu0 %3051
        %3053 = vrot.lane.b32.xlu0 %v1146, 16
        %v3054 = vpop.permute.xlu0 %3053
        %3055 = vrot.lane.b32.xlu0 %v1147, 16
        %v3056 = vpop.permute.xlu0 %3055
        %3057 = vrot.lane.b32.xlu0 %v1148, 16
        %v3058 = vpop.permute.xlu0 %3057
        %3083 = vrot.lane.b32.xlu0 %v1125, 32
        %v3084 = vpop.permute.xlu0 %3083
        %3085 = vrot.lane.b32.xlu0 %v1126, 32
        %v3086 = vpop.permute.xlu0 %3085
        %3087 = vrot.lane.b32.xlu0 %v1127, 32
        %v3088 = vpop.permute.xlu0 %3087
        %3089 = vrot.lane.b32.xlu0 %v1128, 32
        %v3090 = vpop.permute.xlu0 %3089
        %3091 = vrot.lane.b32.xlu0 %v1129, 32
        %v3092 = vpop.permute.xlu0 %3091
        %3093 = vrot.lane.b32.xlu0 %v1130, 32
        %v3094 = vpop.permute.xlu0 %3093
        %3095 = vrot.lane.b32.xlu0 %v1131, 32
        %v3096 = vpop.permute.xlu0 %3095
        %3097 = vrot.lane.b32.xlu0 %v1132, 32
        %v3098 = vpop.permute.xlu0 %3097
        %3099 = vrot.lane.b32.xlu0 %v1133, 32
        %v3100 = vpop.permute.xlu0 %3099
        %3101 = vrot.lane.b32.xlu0 %v1134, 32
        %v3102 = vpop.permute.xlu0 %3101
        %3103 = vrot.lane.b32.xlu0 %v1135, 32
        %v3104 = vpop.permute.xlu0 %3103
        %3105 = vrot.lane.b32.xlu0 %v1136, 32
        %v3106 = vpop.permute.xlu0 %3105
        %3107 = vrot.lane.b32.xlu0 %v1137, 32
        %v3108 = vpop.permute.xlu0 %3107
        %3109 = vrot.lane.b32.xlu0 %v1138, 32
        %v3110 = vpop.permute.xlu0 %3109
        %3111 = vrot.lane.b32.xlu0 %v1139, 32
        %v3112 = vpop.permute.xlu0 %3111
        %3113 = vrot.lane.b32.xlu0 %v1140, 32
        %v3114 = vpop.permute.xlu0 %3113
        %3115 = vrot.lane.b32.xlu0 %v1141, 32
        %v3116 = vpop.permute.xlu0 %3115
        %3117 = vrot.lane.b32.xlu0 %v1142, 32
        %v3118 = vpop.permute.xlu0 %3117
        %3119 = vrot.lane.b32.xlu0 %v1143, 32
        %v3120 = vpop.permute.xlu0 %3119
        %3121 = vrot.lane.b32.xlu0 %v1144, 32
        %v3122 = vpop.permute.xlu0 %3121
        %3123 = vrot.lane.b32.xlu0 %v1145, 32
        %v3124 = vpop.permute.xlu0 %3123
        %3125 = vrot.lane.b32.xlu0 %v1146, 32
        %v3126 = vpop.permute.xlu0 %3125
        %3127 = vrot.lane.b32.xlu0 %v1147, 32
        %v3128 = vpop.permute.xlu0 %3127
        %3129 = vrot.lane.b32.xlu0 %v1148, 32
        %v3130 = vpop.permute.xlu0 %3129
        %3155 = vrot.lane.b32.xlu0 %v1125, 48
        %v3156 = vpop.permute.xlu0 %3155
        %3157 = vrot.lane.b32.xlu0 %v1126, 48
        %v3158 = vpop.permute.xlu0 %3157
        %3159 = vrot.lane.b32.xlu0 %v1127, 48
        %v3160 = vpop.permute.xlu0 %3159
        %3161 = vrot.lane.b32.xlu0 %v1128, 48
        %v3162 = vpop.permute.xlu0 %3161
        %3163 = vrot.lane.b32.xlu0 %v1129, 48
        %v3164 = vpop.permute.xlu0 %3163
        %3165 = vrot.lane.b32.xlu0 %v1130, 48
        %v3166 = vpop.permute.xlu0 %3165
        %3167 = vrot.lane.b32.xlu0 %v1131, 48
        %v3168 = vpop.permute.xlu0 %3167
        %3169 = vrot.lane.b32.xlu0 %v1132, 48
        %v3170 = vpop.permute.xlu0 %3169
        %3171 = vrot.lane.b32.xlu0 %v1133, 48
        %v3172 = vpop.permute.xlu0 %3171
        %3173 = vrot.lane.b32.xlu0 %v1134, 48
        %v3174 = vpop.permute.xlu0 %3173
        %3175 = vrot.lane.b32.xlu0 %v1135, 48
        %v3176 = vpop.permute.xlu0 %3175
        %3177 = vrot.lane.b32.xlu0 %v1136, 48
        %v3178 = vpop.permute.xlu0 %3177
        %3179 = vrot.lane.b32.xlu0 %v1137, 48
        %v3180 = vpop.permute.xlu0 %3179
        %3181 = vrot.lane.b32.xlu0 %v1138, 48
        %v3182 = vpop.permute.xlu0 %3181
        %3183 = vrot.lane.b32.xlu0 %v1139, 48
        %v3184 = vpop.permute.xlu0 %3183
        %3185 = vrot.lane.b32.xlu0 %v1140, 48
        %v3186 = vpop.permute.xlu0 %3185
        %3187 = vrot.lane.b32.xlu0 %v1141, 48
        %v3188 = vpop.permute.xlu0 %3187
        %3189 = vrot.lane.b32.xlu0 %v1142, 48
        %v3190 = vpop.permute.xlu0 %3189
        %3191 = vrot.lane.b32.xlu0 %v1143, 48
        %v3192 = vpop.permute.xlu0 %3191
        %3193 = vrot.lane.b32.xlu0 %v1144, 48
        %v3194 = vpop.permute.xlu0 %3193
        %3195 = vrot.lane.b32.xlu0 %v1145, 48
        %v3196 = vpop.permute.xlu0 %3195
        %3197 = vrot.lane.b32.xlu0 %v1146, 48
        %v3198 = vpop.permute.xlu0 %3197
        %3199 = vrot.lane.b32.xlu0 %v1147, 48
        %v3200 = vpop.permute.xlu0 %3199
        %3201 = vrot.lane.b32.xlu0 %v1148, 48
        %v3202 = vpop.permute.xlu0 %3201
        %3227 = vrot.lane.b32.xlu0 %v1125, 64
        %v3228 = vpop.permute.xlu0 %3227
        %3229 = vrot.lane.b32.xlu0 %v1126, 64
        %v3230 = vpop.permute.xlu0 %3229
        %3231 = vrot.lane.b32.xlu0 %v1127, 64
        %v3232 = vpop.permute.xlu0 %3231
        %3233 = vrot.lane.b32.xlu0 %v1128, 64
        %v3234 = vpop.permute.xlu0 %3233
        %3235 = vrot.lane.b32.xlu0 %v1129, 64
        %v3236 = vpop.permute.xlu0 %3235
        %3237 = vrot.lane.b32.xlu0 %v1130, 64
        %v3238 = vpop.permute.xlu0 %3237
        %3239 = vrot.lane.b32.xlu0 %v1131, 64
        %v3240 = vpop.permute.xlu0 %3239
        %3241 = vrot.lane.b32.xlu0 %v1132, 64
        %v3242 = vpop.permute.xlu0 %3241
        %3243 = vrot.lane.b32.xlu0 %v1133, 64
        %v3244 = vpop.permute.xlu0 %3243
        %3245 = vrot.lane.b32.xlu0 %v1134, 64
        %v3246 = vpop.permute.xlu0 %3245
        %3247 = vrot.lane.b32.xlu0 %v1135, 64
        %v3248 = vpop.permute.xlu0 %3247
        %3249 = vrot.lane.b32.xlu0 %v1136, 64
        %v3250 = vpop.permute.xlu0 %3249
        %3251 = vrot.lane.b32.xlu0 %v1137, 64
        %v3252 = vpop.permute.xlu0 %3251
        %3253 = vrot.lane.b32.xlu0 %v1138, 64
        %v3254 = vpop.permute.xlu0 %3253
        %3255 = vrot.lane.b32.xlu0 %v1139, 64
        %v3256 = vpop.permute.xlu0 %3255
        %3257 = vrot.lane.b32.xlu0 %v1140, 64
        %v3258 = vpop.permute.xlu0 %3257
        %3259 = vrot.lane.b32.xlu0 %v1141, 64
        %v3260 = vpop.permute.xlu0 %3259
        %3261 = vrot.lane.b32.xlu0 %v1142, 64
        %v3262 = vpop.permute.xlu0 %3261
        %3263 = vrot.lane.b32.xlu0 %v1143, 64
        %v3264 = vpop.permute.xlu0 %3263
        %3265 = vrot.lane.b32.xlu0 %v1144, 64
        %v3266 = vpop.permute.xlu0 %3265
        %3267 = vrot.lane.b32.xlu0 %v1145, 64
        %v3268 = vpop.permute.xlu0 %3267
        %3269 = vrot.lane.b32.xlu0 %v1146, 64
        %v3270 = vpop.permute.xlu0 %3269
        %3271 = vrot.lane.b32.xlu0 %v1147, 64
        %v3272 = vpop.permute.xlu0 %3271
        %3273 = vrot.lane.b32.xlu0 %v1148, 64
        %v3274 = vpop.permute.xlu0 %3273
        %3299 = vrot.lane.b32.xlu0 %v1125, 80
        %v3300 = vpop.permute.xlu0 %3299
        %3301 = vrot.lane.b32.xlu0 %v1126, 80
        %v3302 = vpop.permute.xlu0 %3301
        %3303 = vrot.lane.b32.xlu0 %v1127, 80
        %v3304 = vpop.permute.xlu0 %3303
        %3305 = vrot.lane.b32.xlu0 %v1128, 80
        %v3306 = vpop.permute.xlu0 %3305
        %3307 = vrot.lane.b32.xlu0 %v1129, 80
        %v3308 = vpop.permute.xlu0 %3307
        %3309 = vrot.lane.b32.xlu0 %v1130, 80
        %v3310 = vpop.permute.xlu0 %3309
        %3311 = vrot.lane.b32.xlu0 %v1131, 80
        %v3312 = vpop.permute.xlu0 %3311
        %3313 = vrot.lane.b32.xlu0 %v1132, 80
        %v3314 = vpop.permute.xlu0 %3313
        %3315 = vrot.lane.b32.xlu0 %v1133, 80
        %v3316 = vpop.permute.xlu0 %3315
        %3317 = vrot.lane.b32.xlu0 %v1134, 80
        %v3318 = vpop.permute.xlu0 %3317
        %3319 = vrot.lane.b32.xlu0 %v1135, 80
        %v3320 = vpop.permute.xlu0 %3319
        %3321 = vrot.lane.b32.xlu0 %v1136, 80
        %v3322 = vpop.permute.xlu0 %3321
        %3323 = vrot.lane.b32.xlu0 %v1137, 80
        %v3324 = vpop.permute.xlu0 %3323
        %3325 = vrot.lane.b32.xlu0 %v1138, 80
        %v3326 = vpop.permute.xlu0 %3325
        %3327 = vrot.lane.b32.xlu0 %v1139, 80
        %v3328 = vpop.permute.xlu0 %3327
        %3329 = vrot.lane.b32.xlu0 %v1140, 80
        %v3330 = vpop.permute.xlu0 %3329
        %3331 = vrot.lane.b32.xlu0 %v1141, 80
        %v3332 = vpop.permute.xlu0 %3331
        %3333 = vrot.lane.b32.xlu0 %v1142, 80
        %v3334 = vpop.permute.xlu0 %3333
        %3335 = vrot.lane.b32.xlu0 %v1143, 80
        %v3336 = vpop.permute.xlu0 %3335
        %3337 = vrot.lane.b32.xlu0 %v1144, 80
        %v3338 = vpop.permute.xlu0 %3337
        %3339 = vrot.lane.b32.xlu0 %v1145, 80
        %v3340 = vpop.permute.xlu0 %3339
        %3341 = vrot.lane.b32.xlu0 %v1146, 80
        %v3342 = vpop.permute.xlu0 %3341
        %3343 = vrot.lane.b32.xlu0 %v1147, 80
        %v3344 = vpop.permute.xlu0 %3343
        %3345 = vrot.lane.b32.xlu0 %v1148, 80
        %v3346 = vpop.permute.xlu0 %3345
        %3371 = vrot.lane.b32.xlu0 %v1125, 96
        %v3372 = vpop.permute.xlu0 %3371
        %3373 = vrot.lane.b32.xlu0 %v1126, 96
        %v3374 = vpop.permute.xlu0 %3373
        %3375 = vrot.lane.b32.xlu0 %v1127, 96
        %v3376 = vpop.permute.xlu0 %3375
        %3377 = vrot.lane.b32.xlu0 %v1128, 96
        %v3378 = vpop.permute.xlu0 %3377
        %3379 = vrot.lane.b32.xlu0 %v1129, 96
        %v3380 = vpop.permute.xlu0 %3379
        %3381 = vrot.lane.b32.xlu0 %v1130, 96
        %v3382 = vpop.permute.xlu0 %3381
        %3383 = vrot.lane.b32.xlu0 %v1131, 96
        %v3384 = vpop.permute.xlu0 %3383
        %3385 = vrot.lane.b32.xlu0 %v1132, 96
        %v3386 = vpop.permute.xlu0 %3385
        %3387 = vrot.lane.b32.xlu0 %v1133, 96
        %v3388 = vpop.permute.xlu0 %3387
        %3389 = vrot.lane.b32.xlu0 %v1134, 96
        %v3390 = vpop.permute.xlu0 %3389
        %3391 = vrot.lane.b32.xlu0 %v1135, 96
        %v3392 = vpop.permute.xlu0 %3391
        %3393 = vrot.lane.b32.xlu0 %v1136, 96
        %v3394 = vpop.permute.xlu0 %3393
        %3395 = vrot.lane.b32.xlu0 %v1137, 96
        %v3396 = vpop.permute.xlu0 %3395
        %3397 = vrot.lane.b32.xlu0 %v1138, 96
        %v3398 = vpop.permute.xlu0 %3397
        %3399 = vrot.lane.b32.xlu0 %v1139, 96
        %v3400 = vpop.permute.xlu0 %3399
        %3401 = vrot.lane.b32.xlu0 %v1140, 96
        %v3402 = vpop.permute.xlu0 %3401
        %3403 = vrot.lane.b32.xlu0 %v1141, 96
        %v3404 = vpop.permute.xlu0 %3403
        %3405 = vrot.lane.b32.xlu0 %v1142, 96
        %v3406 = vpop.permute.xlu0 %3405
        %3407 = vrot.lane.b32.xlu0 %v1143, 96
        %v3408 = vpop.permute.xlu0 %3407
        %3409 = vrot.lane.b32.xlu0 %v1144, 96
        %v3410 = vpop.permute.xlu0 %3409
        %3411 = vrot.lane.b32.xlu0 %v1145, 96
        %v3412 = vpop.permute.xlu0 %3411
        %3413 = vrot.lane.b32.xlu0 %v1146, 96
        %v3414 = vpop.permute.xlu0 %3413
        %3415 = vrot.lane.b32.xlu0 %v1147, 96
        %v3416 = vpop.permute.xlu0 %3415
        %3417 = vrot.lane.b32.xlu0 %v1148, 96
        %v3418 = vpop.permute.xlu0 %3417
        %3443 = vrot.lane.b32.xlu0 %v1125, 112
        %v3444 = vpop.permute.xlu0 %3443
        %3445 = vrot.lane.b32.xlu0 %v1126, 112
        %v3446 = vpop.permute.xlu0 %3445
        %3447 = vrot.lane.b32.xlu0 %v1127, 112
        %v3448 = vpop.permute.xlu0 %3447
        %3449 = vrot.lane.b32.xlu0 %v1128, 112
        %v3450 = vpop.permute.xlu0 %3449
        %3451 = vrot.lane.b32.xlu0 %v1129, 112
        %v3452 = vpop.permute.xlu0 %3451
        %3453 = vrot.lane.b32.xlu0 %v1130, 112
        %v3454 = vpop.permute.xlu0 %3453
        %3455 = vrot.lane.b32.xlu0 %v1131, 112
        %v3456 = vpop.permute.xlu0 %3455
        %3457 = vrot.lane.b32.xlu0 %v1132, 112
        %v3458 = vpop.permute.xlu0 %3457
        %3459 = vrot.lane.b32.xlu0 %v1133, 112
        %v3460 = vpop.permute.xlu0 %3459
        %3461 = vrot.lane.b32.xlu0 %v1134, 112
        %v3462 = vpop.permute.xlu0 %3461
        %3463 = vrot.lane.b32.xlu0 %v1135, 112
        %v3464 = vpop.permute.xlu0 %3463
        %3465 = vrot.lane.b32.xlu0 %v1136, 112
        %v3466 = vpop.permute.xlu0 %3465
        %3467 = vrot.lane.b32.xlu0 %v1137, 112
        %v3468 = vpop.permute.xlu0 %3467
        %3469 = vrot.lane.b32.xlu0 %v1138, 112
        %v3470 = vpop.permute.xlu0 %3469
        %3471 = vrot.lane.b32.xlu0 %v1139, 112
        %v3472 = vpop.permute.xlu0 %3471
        %3473 = vrot.lane.b32.xlu0 %v1140, 112
        %v3474 = vpop.permute.xlu0 %3473
        %3475 = vrot.lane.b32.xlu0 %v1141, 112
        %v3476 = vpop.permute.xlu0 %3475
        %3477 = vrot.lane.b32.xlu0 %v1142, 112
        %v3478 = vpop.permute.xlu0 %3477
        %3479 = vrot.lane.b32.xlu0 %v1143, 112
        %v3480 = vpop.permute.xlu0 %3479
        %3481 = vrot.lane.b32.xlu0 %v1144, 112
        %v3482 = vpop.permute.xlu0 %3481
        %3483 = vrot.lane.b32.xlu0 %v1145, 112
        %v3484 = vpop.permute.xlu0 %3483
        %3485 = vrot.lane.b32.xlu0 %v1146, 112
        %v3486 = vpop.permute.xlu0 %3485
        %3487 = vrot.lane.b32.xlu0 %v1147, 112
        %v3488 = vpop.permute.xlu0 %3487
        %3489 = vrot.lane.b32.xlu0 %v1148, 112
        %v3490 = vpop.permute.xlu0 %3489
        %v3515 = vsel %vm497, %v1125, %v3012
        %v3516 = vsel %vm497, %v1126, %v3014
        %v3517 = vsel %vm497, %v1127, %v3016
        %v3518 = vsel %vm497, %v1128, %v3018
        %v3519 = vsel %vm497, %v1129, %v3020
        %v3520 = vsel %vm497, %v1130, %v3022
        %v3521 = vsel %vm497, %v1131, %v3024
        %v3522 = vsel %vm497, %v1132, %v3026
        %v3523 = vsel %vm497, %v1133, %v3028
        %v3524 = vsel %vm497, %v1134, %v3030
        %v3525 = vsel %vm497, %v1135, %v3032
        %v3526 = vsel %vm497, %v1136, %v3034
        %v3527 = vsel %vm497, %v1137, %v3036
        %v3528 = vsel %vm497, %v1138, %v3038
        %v3529 = vsel %vm497, %v1139, %v3040
        %v3530 = vsel %vm497, %v1140, %v3042
        %v3531 = vsel %vm497, %v1141, %v3044
        %v3532 = vsel %vm497, %v1142, %v3046
        %v3533 = vsel %vm497, %v1143, %v3048
        %v3534 = vsel %vm497, %v1144, %v3050
        %v3535 = vsel %vm497, %v1145, %v3052
        %v3536 = vsel %vm497, %v1146, %v3054
        %v3537 = vsel %vm497, %v1147, %v3056
        %v3538 = vsel %vm497, %v1148, %v3058
        %v3539 = vsel %vm1400, %v3515, %v3084
        %v3540 = vsel %vm1400, %v3516, %v3086
        %v3541 = vsel %vm1400, %v3517, %v3088
        %v3542 = vsel %vm1400, %v3518, %v3090
        %v3543 = vsel %vm1400, %v3519, %v3092
        %v3544 = vsel %vm1400, %v3520, %v3094
        %v3545 = vsel %vm1400, %v3521, %v3096
        %v3546 = vsel %vm1400, %v3522, %v3098
        %v3547 = vsel %vm1400, %v3523, %v3100
        %v3548 = vsel %vm1400, %v3524, %v3102
        %v3549 = vsel %vm1400, %v3525, %v3104
        %v3550 = vsel %vm1400, %v3526, %v3106
        %v3551 = vsel %vm1400, %v3527, %v3108
        %v3552 = vsel %vm1400, %v3528, %v3110
        %v3553 = vsel %vm1400, %v3529, %v3112
        %v3554 = vsel %vm1400, %v3530, %v3114
        %v3555 = vsel %vm1400, %v3531, %v3116
        %v3556 = vsel %vm1400, %v3532, %v3118
        %v3557 = vsel %vm1400, %v3533, %v3120
        %v3558 = vsel %vm1400, %v3534, %v3122
        %v3559 = vsel %vm1400, %v3535, %v3124
        %v3560 = vsel %vm1400, %v3536, %v3126
        %v3561 = vsel %vm1400, %v3537, %v3128
        %v3562 = vsel %vm1400, %v3538, %v3130
        %v3563 = vsel %vm2863, %v3539, %v3156
        %v3564 = vsel %vm2863, %v3540, %v3158
        %v3565 = vsel %vm2863, %v3541, %v3160
        %v3566 = vsel %vm2863, %v3542, %v3162
        %v3567 = vsel %vm2863, %v3543, %v3164
        %v3568 = vsel %vm2863, %v3544, %v3166
        %v3569 = vsel %vm2863, %v3545, %v3168
        %v3570 = vsel %vm2863, %v3546, %v3170
        %v3571 = vsel %vm2863, %v3547, %v3172
        %v3572 = vsel %vm2863, %v3548, %v3174
        %v3573 = vsel %vm2863, %v3549, %v3176
        %v3574 = vsel %vm2863, %v3550, %v3178
        %v3575 = vsel %vm2863, %v3551, %v3180
        %v3576 = vsel %vm2863, %v3552, %v3182
        %v3577 = vsel %vm2863, %v3553, %v3184
        %v3578 = vsel %vm2863, %v3554, %v3186
        %v3579 = vsel %vm2863, %v3555, %v3188
        %v3580 = vsel %vm2863, %v3556, %v3190
        %v3581 = vsel %vm2863, %v3557, %v3192
        %v3582 = vsel %vm2863, %v3558, %v3194
        %v3583 = vsel %vm2863, %v3559, %v3196
        %v3584 = vsel %vm2863, %v3560, %v3198
        %v3585 = vsel %vm2863, %v3561, %v3200
        %v3586 = vsel %vm2863, %v3562, %v3202
        %v3587 = vsel %vm863, %v3563, %v3228
        %v3588 = vsel %vm863, %v3564, %v3230
        %v3589 = vsel %vm863, %v3565, %v3232
        %v3590 = vsel %vm863, %v3566, %v3234
        %v3591 = vsel %vm863, %v3567, %v3236
        %v3592 = vsel %vm863, %v3568, %v3238
        %v3593 = vsel %vm863, %v3569, %v3240
        %v3594 = vsel %vm863, %v3570, %v3242
        %v3595 = vsel %vm863, %v3571, %v3244
        %v3596 = vsel %vm863, %v3572, %v3246
        %v3597 = vsel %vm863, %v3573, %v3248
        %v3598 = vsel %vm863, %v3574, %v3250
        %v3599 = vsel %vm863, %v3575, %v3252
        %v3600 = vsel %vm863, %v3576, %v3254
        %v3601 = vsel %vm863, %v3577, %v3256
        %v3602 = vsel %vm863, %v3578, %v3258
        %v3603 = vsel %vm863, %v3579, %v3260
        %v3604 = vsel %vm863, %v3580, %v3262
        %v3605 = vsel %vm863, %v3581, %v3264
        %v3606 = vsel %vm863, %v3582, %v3266
        %v3607 = vsel %vm863, %v3583, %v3268
        %v3608 = vsel %vm863, %v3584, %v3270
        %v3609 = vsel %vm863, %v3585, %v3272
        %v3610 = vsel %vm863, %v3586, %v3274
        %v3611 = vsel %vm2912, %v3587, %v3300
        %v3612 = vsel %vm2912, %v3588, %v3302
        %v3613 = vsel %vm2912, %v3589, %v3304
        %v3614 = vsel %vm2912, %v3590, %v3306
        %v3615 = vsel %vm2912, %v3591, %v3308
        %v3616 = vsel %vm2912, %v3592, %v3310
        %v3617 = vsel %vm2912, %v3593, %v3312
        %v3618 = vsel %vm2912, %v3594, %v3314
        %v3619 = vsel %vm2912, %v3595, %v3316
        %v3620 = vsel %vm2912, %v3596, %v3318
        %v3621 = vsel %vm2912, %v3597, %v3320
        %v3622 = vsel %vm2912, %v3598, %v3322
        %v3623 = vsel %vm2912, %v3599, %v3324
        %v3624 = vsel %vm2912, %v3600, %v3326
        %v3625 = vsel %vm2912, %v3601, %v3328
        %v3626 = vsel %vm2912, %v3602, %v3330
        %v3627 = vsel %vm2912, %v3603, %v3332
        %v3628 = vsel %vm2912, %v3604, %v3334
        %v3629 = vsel %vm2912, %v3605, %v3336
        %v3630 = vsel %vm2912, %v3606, %v3338
        %v3631 = vsel %vm2912, %v3607, %v3340
        %v3632 = vsel %vm2912, %v3608, %v3342
        %v3633 = vsel %vm2912, %v3609, %v3344
        %v3634 = vsel %vm2912, %v3610, %v3346
        %v3635 = vsel %vm2937, %v3611, %v3372
        %v3636 = vsel %vm2937, %v3612, %v3374
        %v3637 = vsel %vm2937, %v3613, %v3376
        %v3638 = vsel %vm2937, %v3614, %v3378
        %v3639 = vsel %vm2937, %v3615, %v3380
        %v3640 = vsel %vm2937, %v3616, %v3382
        %v3641 = vsel %vm2937, %v3617, %v3384
        %v3642 = vsel %vm2937, %v3618, %v3386
        %v3643 = vsel %vm2937, %v3619, %v3388
        %v3644 = vsel %vm2937, %v3620, %v3390
        %v3645 = vsel %vm2937, %v3621, %v3392
        %v3646 = vsel %vm2937, %v3622, %v3394
        %v3647 = vsel %vm2937, %v3623, %v3396
        %v3648 = vsel %vm2937, %v3624, %v3398
        %v3649 = vsel %vm2937, %v3625, %v3400
        %v3650 = vsel %vm2937, %v3626, %v3402
        %v3651 = vsel %vm2937, %v3627, %v3404
        %v3652 = vsel %vm2937, %v3628, %v3406
        %v3653 = vsel %vm2937, %v3629, %v3408
        %v3654 = vsel %vm2937, %v3630, %v3410
        %v3655 = vsel %vm2937, %v3631, %v3412
        %v3656 = vsel %vm2937, %v3632, %v3414
        %v3657 = vsel %vm2937, %v3633, %v3416
        %v3658 = vsel %vm2937, %v3634, %v3418
        %v3659 = vsel %vm2962, %v3635, %v3444
        %v3660 = vsel %vm2962, %v3636, %v3446
        %v3661 = vsel %vm2962, %v3637, %v3448
        %v3662 = vsel %vm2962, %v3638, %v3450
        %v3663 = vsel %vm2962, %v3639, %v3452
        %v3664 = vsel %vm2962, %v3640, %v3454
        %v3665 = vsel %vm2962, %v3641, %v3456
        %v3666 = vsel %vm2962, %v3642, %v3458
        %v3667 = vsel %vm2962, %v3643, %v3460
        %v3668 = vsel %vm2962, %v3644, %v3462
        %v3669 = vsel %vm2962, %v3645, %v3464
        %v3670 = vsel %vm2962, %v3646, %v3466
        %v3671 = vsel %vm2962, %v3647, %v3468
        %v3672 = vsel %vm2962, %v3648, %v3470
        %v3673 = vsel %vm2962, %v3649, %v3472
        %v3674 = vsel %vm2962, %v3650, %v3474
        %v3675 = vsel %vm2962, %v3651, %v3476
        %v3676 = vsel %vm2962, %v3652, %v3478
        %v3677 = vsel %vm2962, %v3653, %v3480
        %v3678 = vsel %vm2962, %v3654, %v3482
        %v3679 = vsel %vm2962, %v3655, %v3484
        %v3680 = vsel %vm2962, %v3656, %v3486
        %v3681 = vsel %vm2962, %v3657, %v3488
        %v3682 = vsel %vm2962, %v3658, %v3490
        %v3683 = vmul.f32 %v2963, %v3659
        %v3684 = vmul.f32 %v2964, %v3660
        %v3685 = vmul.f32 %v2965, %v3661
        %v3686 = vmul.f32 %v2966, %v3662
        %v3687 = vmul.f32 %v2967, %v3663
        %v3688 = vmul.f32 %v2968, %v3664
        %v3689 = vmul.f32 %v2969, %v3665
        %v3690 = vmul.f32 %v2970, %v3666
        %v3691 = vmul.f32 %v2971, %v3667
        %v3692 = vmul.f32 %v2972, %v3668
        %v3693 = vmul.f32 %v2973, %v3669
        %v3694 = vmul.f32 %v2974, %v3670
        %v3695 = vmul.f32 %v2975, %v3671
        %v3696 = vmul.f32 %v2976, %v3672
        %v3697 = vmul.f32 %v2977, %v3673
        %v3698 = vmul.f32 %v2978, %v3674
        %v3699 = vmul.f32 %v2979, %v3675
        %v3700 = vmul.f32 %v2980, %v3676
        %v3701 = vmul.f32 %v2981, %v3677
        %v3702 = vmul.f32 %v2982, %v3678
        %v3703 = vmul.f32 %v2983, %v3679
        %v3704 = vmul.f32 %v2984, %v3680
        %v3705 = vmul.f32 %v2985, %v3681
        %v3706 = vmul.f32 %v2986, %v3682
        %v3707 = vrot.slane %v3683, 4
        %v3708 = vadd.f32 %v3683, %v3707
        %v3709 = vrot.slane %v3708, 2
        %v3710 = vadd.f32 %v3708, %v3709
        %v3711 = vrot.slane %v3710, 1
        %v3712 = vadd.f32 %v3710, %v3711
        %v3713 = vrot.slane %v3684, 4
        %v3714 = vadd.f32 %v3684, %v3713
        %v3715 = vrot.slane %v3714, 2
        %v3716 = vadd.f32 %v3714, %v3715
        %v3717 = vrot.slane %v3716, 1
        %v3718 = vadd.f32 %v3716, %v3717
        %v3719 = vrot.slane %v3685, 4
        %v3720 = vadd.f32 %v3685, %v3719
        %v3721 = vrot.slane %v3720, 2
        %v3722 = vadd.f32 %v3720, %v3721
        %v3723 = vrot.slane %v3722, 1
        %v3724 = vadd.f32 %v3722, %v3723
        %v3725 = vrot.slane %v3686, 4
        %v3726 = vadd.f32 %v3686, %v3725
        %v3727 = vrot.slane %v3726, 2
        %v3728 = vadd.f32 %v3726, %v3727
        %v3729 = vrot.slane %v3728, 1
        %v3730 = vadd.f32 %v3728, %v3729
        %v3731 = vrot.slane %v3687, 4
        %v3732 = vadd.f32 %v3687, %v3731
        %v3733 = vrot.slane %v3732, 2
        %v3734 = vadd.f32 %v3732, %v3733
        %v3735 = vrot.slane %v3734, 1
        %v3736 = vadd.f32 %v3734, %v3735
        %v3737 = vrot.slane %v3688, 4
        %v3738 = vadd.f32 %v3688, %v3737
        %v3739 = vrot.slane %v3738, 2
        %v3740 = vadd.f32 %v3738, %v3739
        %v3741 = vrot.slane %v3740, 1
        %v3742 = vadd.f32 %v3740, %v3741
        %v3743 = vrot.slane %v3689, 4
        %v3744 = vadd.f32 %v3689, %v3743
        %v3745 = vrot.slane %v3744, 2
        %v3746 = vadd.f32 %v3744, %v3745
        %v3747 = vrot.slane %v3746, 1
        %v3748 = vadd.f32 %v3746, %v3747
        %v3749 = vrot.slane %v3690, 4
        %v3750 = vadd.f32 %v3690, %v3749
        %v3751 = vrot.slane %v3750, 2
        %v3752 = vadd.f32 %v3750, %v3751
        %v3753 = vrot.slane %v3752, 1
        %v3754 = vadd.f32 %v3752, %v3753
        %v3755 = vrot.slane %v3691, 4
        %v3756 = vadd.f32 %v3691, %v3755
        %v3757 = vrot.slane %v3756, 2
        %v3758 = vadd.f32 %v3756, %v3757
        %v3759 = vrot.slane %v3758, 1
        %v3760 = vadd.f32 %v3758, %v3759
        %v3761 = vrot.slane %v3692, 4
        %v3762 = vadd.f32 %v3692, %v3761
        %v3763 = vrot.slane %v3762, 2
        %v3764 = vadd.f32 %v3762, %v3763
        %v3765 = vrot.slane %v3764, 1
        %v3766 = vadd.f32 %v3764, %v3765
        %v3767 = vrot.slane %v3693, 4
        %v3768 = vadd.f32 %v3693, %v3767
        %v3769 = vrot.slane %v3768, 2
        %v3770 = vadd.f32 %v3768, %v3769
        %v3771 = vrot.slane %v3770, 1
        %v3772 = vadd.f32 %v3770, %v3771
        %v3773 = vrot.slane %v3694, 4
        %v3774 = vadd.f32 %v3694, %v3773
        %v3775 = vrot.slane %v3774, 2
        %v3776 = vadd.f32 %v3774, %v3775
        %v3777 = vrot.slane %v3776, 1
        %v3778 = vadd.f32 %v3776, %v3777
        %v3779 = vrot.slane %v3695, 4
        %v3780 = vadd.f32 %v3695, %v3779
        %v3781 = vrot.slane %v3780, 2
        %v3782 = vadd.f32 %v3780, %v3781
        %v3783 = vrot.slane %v3782, 1
        %v3784 = vadd.f32 %v3782, %v3783
        %v3785 = vrot.slane %v3696, 4
        %v3786 = vadd.f32 %v3696, %v3785
        %v3787 = vrot.slane %v3786, 2
        %v3788 = vadd.f32 %v3786, %v3787
        %v3789 = vrot.slane %v3788, 1
        %v3790 = vadd.f32 %v3788, %v3789
        %v3791 = vrot.slane %v3697, 4
        %v3792 = vadd.f32 %v3697, %v3791
        %v3793 = vrot.slane %v3792, 2
        %v3794 = vadd.f32 %v3792, %v3793
        %v3795 = vrot.slane %v3794, 1
        %v3796 = vadd.f32 %v3794, %v3795
        %v3797 = vrot.slane %v3698, 4
        %v3798 = vadd.f32 %v3698, %v3797
        %v3799 = vrot.slane %v3798, 2
        %v3800 = vadd.f32 %v3798, %v3799
        %v3801 = vrot.slane %v3800, 1
        %v3802 = vadd.f32 %v3800, %v3801
        %v3803 = vrot.slane %v3699, 4
        %v3804 = vadd.f32 %v3699, %v3803
        %v3805 = vrot.slane %v3804, 2
        %v3806 = vadd.f32 %v3804, %v3805
        %v3807 = vrot.slane %v3806, 1
        %v3808 = vadd.f32 %v3806, %v3807
        %v3809 = vrot.slane %v3700, 4
        %v3810 = vadd.f32 %v3700, %v3809
        %v3811 = vrot.slane %v3810, 2
        %v3812 = vadd.f32 %v3810, %v3811
        %v3813 = vrot.slane %v3812, 1
        %v3814 = vadd.f32 %v3812, %v3813
        %v3815 = vrot.slane %v3701, 4
        %v3816 = vadd.f32 %v3701, %v3815
        %v3817 = vrot.slane %v3816, 2
        %v3818 = vadd.f32 %v3816, %v3817
        %v3819 = vrot.slane %v3818, 1
        %v3820 = vadd.f32 %v3818, %v3819
        %v3821 = vrot.slane %v3702, 4
        %v3822 = vadd.f32 %v3702, %v3821
        %v3823 = vrot.slane %v3822, 2
        %v3824 = vadd.f32 %v3822, %v3823
        %v3825 = vrot.slane %v3824, 1
        %v3826 = vadd.f32 %v3824, %v3825
        %v3827 = vrot.slane %v3703, 4
        %v3828 = vadd.f32 %v3703, %v3827
        %v3829 = vrot.slane %v3828, 2
        %v3830 = vadd.f32 %v3828, %v3829
        %v3831 = vrot.slane %v3830, 1
        %v3832 = vadd.f32 %v3830, %v3831
        %v3833 = vrot.slane %v3704, 4
        %v3834 = vadd.f32 %v3704, %v3833
        %v3835 = vrot.slane %v3834, 2
        %v3836 = vadd.f32 %v3834, %v3835
        %v3837 = vrot.slane %v3836, 1
        %v3838 = vadd.f32 %v3836, %v3837
        %v3839 = vrot.slane %v3705, 4
        %v3840 = vadd.f32 %v3705, %v3839
        %v3841 = vrot.slane %v3840, 2
        %v3842 = vadd.f32 %v3840, %v3841
        %v3843 = vrot.slane %v3842, 1
        %v3844 = vadd.f32 %v3842, %v3843
        %v3845 = vrot.slane %v3706, 4
        %v3846 = vadd.f32 %v3706, %v3845
        %v3847 = vrot.slane %v3846, 2
        %v3848 = vadd.f32 %v3846, %v3847
        %v3849 = vrot.slane %v3848, 1
        %v3850 = vadd.f32 %v3848, %v3849
        %vm3859 = vcmask 1041409
        %v3860 = vsel %vm3859, %v3718, %v3712
        %vm3861 = vcmask 1042434
        %v3862 = vsel %vm3861, %v3724, %v3860
        %vm3863 = vcmask 1043459
        %v3864 = vsel %vm3863, %v3730, %v3862
        %vm3865 = vcmask 1044484
        %v3866 = vsel %vm3865, %v3736, %v3864
        %vm3867 = vcmask 1045509
        %v3868 = vsel %vm3867, %v3742, %v3866
        %vm3869 = vcmask 1046534
        %v3870 = vsel %vm3869, %v3748, %v3868
        %vm3871 = vcmask 1047559
        %v3872 = vsel %vm3871, %v3754, %v3870
        %v3882 = vsel %vm3859, %v3766, %v3760
        %v3883 = vsel %vm3861, %v3772, %v3882
        %v3884 = vsel %vm3863, %v3778, %v3883
        %v3885 = vsel %vm3865, %v3784, %v3884
        %v3886 = vsel %vm3867, %v3790, %v3885
        %v3887 = vsel %vm3869, %v3796, %v3886
        %v3888 = vsel %vm3871, %v3802, %v3887
        %v3898 = vsel %vm3859, %v3814, %v3808
        %v3899 = vsel %vm3861, %v3820, %v3898
        %v3900 = vsel %vm3863, %v3826, %v3899
        %v3901 = vsel %vm3865, %v3832, %v3900
        %v3902 = vsel %vm3867, %v3838, %v3901
        %v3903 = vsel %vm3869, %v3844, %v3902
        %v3904 = vsel %vm3871, %v3850, %v3903
        %3906 = vst [vmem:[%s326] sm:$0xff] %v3872
        %3907 = vst [vmem:[%s326 + $0x8] sm:$0xff] %v3888
        %3908 = vst [vmem:[%s326 + $0x10] sm:$0xff] %v3904
        %s3909 = sand.u32 %s225, 1
        %s3910 = scalar_lea.sflag [#allocation3], %s3909
        %s3911 = sand.u32 %s225, 1
        %s3912 = smul.addr %s3911, 24
        %s3913 = scalar_lea.vmem [#allocation2], %s3912
        // Predicated region
        $region57: #{tpu_custom_call.1} parent=55 // pred_check
          %p3914 = pneg %p235
        $region58: #{tpu_custom_call.1} parent=55 // pred_check_branch
          %3916 = sbr.rel (%p3914) target = $region60
        $region59: #{tpu_custom_call.1} parent=55 // pred_region
          %s3918 = ssub.s32 384, 384
          %3919 = vsyncadd %s3910, %s3918
          %s3920 = smul.addr %s23, 3
          %s3921 = smul.addr %s3920, 128
          %s3922 = scalar_lea.hbm %s9, %s3921
          %s3924 = sshll.u32 %s3913, 4
          %s3925 = int_to_ptr.vmem [resolvable:$true] %s3924
          %3927 = dma.vmem_to_hbm [thread:$0]  %s3925, 384, %s3922, %s3910
        $region60: #{tpu_custom_call.1} parent=55 // pred_fallthru
          _
      $region56: #{tpu_custom_call.1} parent=5 // pred_fallthru
        _
      %p3928 = scmp.le.s32.totalorder 2, %s18
      // Predicated region
      $region61: #{tpu_custom_call.1} parent=5 // pred_check
        %p3929 = pneg %p3928
      $region62: #{tpu_custom_call.1} parent=5 // pred_check_branch
        %3931 = sbr.rel (%p3929) target = $region64
      $region63: #{tpu_custom_call.1} parent=5 // pred_region
        %s3932 = ssub.s32 %s18, 2
        // Predicated region
        $region65: #{tpu_custom_call.1} parent=63 // pred_check
          %p3933 = pneg %p241
        $region66: #{tpu_custom_call.1} parent=63 // pred_check_branch
          %3935 = sbr.rel (%p3933) target = $region68
        $region67: #{tpu_custom_call.1} parent=63 // pred_region
          %s3936 = sand.u32 %s226, 1
          %s3937 = scalar_lea.sflag [#allocation3], %s3936
          %s3938 = sand.u32 %s226, 1
          %s3939 = smul.addr %s3938, 24
          %s3940 = scalar_lea.vmem [#allocation2], %s3939
          %3941 = dma.done %s3937, 384
        $region68: #{tpu_custom_call.1} parent=63 // pred_fallthru
          _
      $region64: #{tpu_custom_call.1} parent=5 // pred_fallthru
        _
    $region6: #{tpu_custom_call.1} parent=1 // loop_footer
      %s22 = sadd.s32 1, %s18
    $region7: #{tpu_custom_call.1} parent=1 // loop_footer_branch
      %17 = sbr.rel target = $region3
    $region8: #{tpu_custom_call.1} parent=1 // loop_exit
      _
    %3942 = vsyncpa [#allocation3], 1
    %s3943 = scalar_lea.sflag [#allocation3], 1
    %3944 = vsyncpa %s3943, 1

</llo_original>
